<compile_context>
chip_gen: v7x
topology: tpu7x:2x2x1
jax: 0.10.0
libtpu: 0.0.40
codegen_flags: <defaults>
</compile_context>

<pallas_src>
import functools

import jax
import jax.numpy as jnp
from jax.experimental import pallas as pl
from jax.experimental.pallas import tpu as pltpu

LANE = 128
SUBLANE = 8


def _round_up(x, m):
    return (x + m - 1) // m * m


# ----------------------------- Pallas kernel --------------------------------
def _mapping_network_kernel(
    dom_sched_ref, dom_count_ref,                       # scalar prefetch (SMEM)
    y_ref, z_ref,
    w0_ref, b0_ref, w1_ref, b1_ref, w2_ref, b2_ref, w3_ref, b3_ref,
    wu_ref, wu3_ref, bu_ref,
    out_ref,
    h_scratch,
    *, hidden_dim, s_pad,
):
    d_step = pl.program_id(1)
    H, S = hidden_dim, s_pad

    def lin(x, w, b):
        # bf16 x bf16 MXU matmul, f32 accumulation, f32 bias.
        return jnp.dot(x.astype(jnp.bfloat16), w,
                       preferred_element_type=jnp.float32) + b

    # ---- shared trunk: run once per batch tile (first domain step) ----------
    @pl.when(d_step == 0)
    def _():
        h = z_ref[...]                                        # f32 [TB, L]
        h = jnp.maximum(lin(h, w0_ref[...], b0_ref[...]), 0.0)
        h = jnp.maximum(lin(h, w1_ref[...], b1_ref[...]), 0.0)
        h = jnp.maximum(lin(h, w2_ref[...], b2_ref[...]), 0.0)
        h = jnp.maximum(lin(h, w3_ref[...], b3_ref[...]), 0.0)
        h_scratch[...] = h.astype(jnp.bfloat16)               # cast once for all branches
        out_ref[...] = jnp.zeros_like(out_ref)

    # ---- one unshared domain branch per grid step (present domains only) ----
    @pl.when(d_step < dom_count_ref[0])
    def _():
        dom_id = dom_sched_ref[d_step]
        h = h_scratch[...]                                    # bf16 [TB, H]
        t = jnp.maximum(lin(h, wu_ref[0], bu_ref[0:1, :H]), 0.0)
        t = jnp.maximum(lin(t, wu_ref[1], bu_ref[1:2, :H]), 0.0)
        t = jnp.maximum(lin(t, wu_ref[2], bu_ref[2:3, :H]), 0.0)
        s = lin(t, wu3_ref[...], bu_ref[3:4, :S])             # f32 [TB, S_pad]
        mask = (y_ref[...] == dom_id).astype(jnp.float32)     # [TB, 1]
        out_ref[...] += mask * s


# ------------------------- one-time parameter prep ---------------------------
def prepare_params(params, *, hidden_dim, style_dim, num_domains):
    """bf16 cast + lane padding + branch packing, done ONCE and reused.

    Hoisting this out of the forward removes the per-call XLA cast/pad ops
    that previously read+wrote ~3x the weight bytes the kernel streams.
    """
    H, D = hidden_dim, num_domains
    S_pad = _round_up(style_dim, LANE)
    BH = max(H, S_pad)
    bf = jnp.bfloat16
    f32 = jnp.float32

    prep = {}
    prep["w0"] = params["w0"].astype(bf)
    prep["w1"] = params["w1"].astype(bf)
    prep["w2"] = params["w2"].astype(bf)
    prep["w3"] = params["w3"].astype(bf)
    prep["b0"] = params["b0"].reshape(1, H).astype(f32)
    prep["b1"] = params["b1"].reshape(1, H).astype(f32)
    prep["b2"] = params["b2"].reshape(1, H).astype(f32)
    prep["b3"] = params["b3"].reshape(1, H).astype(f32)

    # Pack the three [H, H] branch weights -> [D, 3, H, H]  (one DMA per step).
    prep["wu"] = jnp.stack(
        [params["wu0"], params["wu1"], params["wu2"]], axis=1).astype(bf)
    # Final branch weight, lane-padded style dim -> [D, H, S_pad].
    prep["wu3"] = jnp.zeros((D, H, S_pad), bf).at[:, :, :style_dim].set(
        params["wu3"].astype(bf))
    # Pack all four branch biases -> [D, 4, BH] f32 (one DMA per step).
    bu = jnp.zeros((D, 4, BH), f32)
    bu = bu.at[:, 0, :H].set(params["bu0"].reshape(D, H))
    bu = bu.at[:, 1, :H].set(params["bu1"].reshape(D, H))
    bu = bu.at[:, 2, :H].set(params["bu2"].reshape(D, H))
    bu = bu.at[:, 3, :style_dim].set(params["bu3"].reshape(D, style_dim))
    prep["bu"] = bu
    return prep


# ------------------------------ wrapper --------------------------------------
def mapping_network_forward(z, y, prep, *, latent_dim, hidden_dim,
                            style_dim, num_domains):
    """z: [B, latent] f32, y: [B] int32, prep: prepare_params(...) output."""
    B = z.shape[0]
    H, L, D = hidden_dim, latent_dim, num_domains
    S_pad = _round_up(style_dim, LANE)
    BH = max(H, S_pad)

    # ---- batch padding (sublane aligned) and tile size -----------------------
    # TB cap 256 fills more MXU rows per vmatmul on v6e/v7x and halves the
    # re-DMA of branch weights across batch tiles (v5e could prefer 128; the
    # difference is minor for this kernel).
    if B <= 256:
        TB = max(SUBLANE, _round_up(B, SUBLANE))
        B_pad = TB
    else:
        TB = 256
        B_pad = _round_up(B, TB)
    nbt = B_pad // TB

    # At most min(D, B) distinct domains can be present -> cap the grid axis so
    # no per-step overhead is spent on guaranteed-skipped steps.
    D_steps = max(1, min(D, B))

    # ---- labels ---------------------------------------------------------------
    # Out-of-range labels produce all-zero output rows (PyTorch would raise);
    # padded rows use y = -1 and never match any domain.
    y = y.astype(jnp.int32)
    valid = (y >= 0) & (y < D)
    y_c = jnp.clip(y, 0, D - 1)
    y_rows = jnp.where(valid, y_c, -1)

    z_p = jnp.zeros((B_pad, L), jnp.float32).at[:B].set(z.astype(jnp.float32))
    y_p = jnp.full((B_pad, 1), -1, jnp.int32).at[:B, 0].set(y_rows)

    # ---- domain schedule (scalar prefetch): fetch only present branches ------
    scatter_idx = jnp.where(valid, y_c, D)            # D is OOB -> dropped
    present = jnp.zeros((D,), jnp.bool_).at[scatter_idx].set(True, mode="drop")
    dom_count = jnp.sum(present).astype(jnp.int32)
    order = jnp.argsort(jnp.logical_not(present).astype(jnp.int32)).astype(jnp.int32)
    last_present = order[jnp.maximum(dom_count - 1, 0)]
    steps = jnp.arange(D_steps, dtype=jnp.int32)
    dom_sched = jnp.where(steps < dom_count, order[:D_steps], last_present)
    dom_count_arr = dom_count.reshape(1)

    # ---- index maps (scalar-prefetch refs arrive as trailing positional args)
    def const_map(i, d, sched, cnt):       # shared weights: resident, loaded once
        return (0, 0)

    def batch_map(i, d, sched, cnt):       # per-batch-tile tensors
        return (i, 0)

    def dom3_map(i, d, sched, cnt):        # 3-D per-domain tensors
        return (sched[d], 0, 0)

    def dom4_map(i, d, sched, cnt):        # 4-D packed branch weights
        return (sched[d], 0, 0, 0)

    grid_spec = pltpu.PrefetchScalarGridSpec(
        num_scalar_prefetch=2,
        grid=(nbt, D_steps),
        in_specs=[
            pl.BlockSpec((TB, 1), batch_map),            # y
            pl.BlockSpec((TB, L), batch_map),            # z
            pl.BlockSpec((L, H), const_map),             # w0
            pl.BlockSpec((1, H), const_map),             # b0
            pl.BlockSpec((H, H), const_map),             # w1
            pl.BlockSpec((1, H), const_map),             # b1
            pl.BlockSpec((H, H), const_map),             # w2
            pl.BlockSpec((1, H), const_map),             # b2
            pl.BlockSpec((H, H), const_map),             # w3
            pl.BlockSpec((1, H), const_map),             # b3
            pl.BlockSpec((None, 3, H, H), dom4_map),     # wu  (3 packed [H,H])
            pl.BlockSpec((None, H, S_pad), dom3_map),    # wu3
            pl.BlockSpec((None, 4, BH), dom3_map),       # bu  (4 packed biases)
        ],
        out_specs=pl.BlockSpec((TB, S_pad), batch_map),
        scratch_shapes=[pltpu.VMEM((TB, H), jnp.bfloat16)],   # bf16 trunk cache
    )

    kernel = functools.partial(_mapping_network_kernel, hidden_dim=H, s_pad=S_pad)

    out_padded = pl.pallas_call(
        kernel,
        out_shape=jax.ShapeDtypeStruct((B_pad, S_pad), jnp.float32),
        grid_spec=grid_spec,
        compiler_params=pltpu.CompilerParams(
            dimension_semantics=("parallel", "arbitrary"),
            vmem_limit_bytes=32 * 1024 * 1024,
        ),
    )(dom_sched, dom_count_arr, y_p, z_p,
      prep["w0"], prep["b0"], prep["w1"], prep["b1"],
      prep["w2"], prep["b2"], prep["w3"], prep["b3"],
      prep["wu"], prep["wu3"], prep["bu"])

    return out_padded[:B, :style_dim]


# ------------------------- deterministic parameters ---------------------------
def init_params(key, latent_dim, hidden_dim, style_dim, num_domains):
    """Synthetic weights; layout [in, out] (= PyTorch weight.T), biases [1, out]."""
    n_layers = 4 + 4 * num_domains
    keys = jax.random.split(key, 2 * n_layers)
    kit = iter(range(2 * n_layers))

    def lin(fan_in, fan_out):
        w = jax.random.normal(keys[next(kit)], (fan_in, fan_out), jnp.float32)
        w = w / jnp.sqrt(fan_in)
        b = 0.1 * jax.random.normal(keys[next(kit)], (1, fan_out), jnp.float32)
        return w, b

    p = {}
    p["w0"], p["b0"] = lin(latent_dim, hidden_dim)
    p["w1"], p["b1"] = lin(hidden_dim, hidden_dim)
    p["w2"], p["b2"] = lin(hidden_dim, hidden_dim)
    p["w3"], p["b3"] = lin(hidden_dim, hidden_dim)

    def stack_lin(fan_in, fan_out):
        ws, bs = [], []
        for _ in range(num_domains):
            w, b = lin(fan_in, fan_out)
            ws.append(w); bs.append(b)
        return jnp.stack(ws, 0), jnp.stack(bs, 0)

    p["wu0"], p["bu0"] = stack_lin(hidden_dim, hidden_dim)
    p["wu1"], p["bu1"] = stack_lin(hidden_dim, hidden_dim)
    p["wu2"], p["bu2"] = stack_lin(hidden_dim, hidden_dim)
    p["wu3"], p["bu3"] = stack_lin(hidden_dim, style_dim)
    return p


# ------------------------------ pure-JAX reference ----------------------------
def mapping_network_ref(z, y, p, *, num_domains):
    # Mirror the kernel numerics: bf16 matmul operands, f32 accumulation/bias.
    bf = jnp.bfloat16

    def lin(x, w, b):
        return jnp.dot(x.astype(bf), w.astype(bf),
                       preferred_element_type=jnp.float32) + b

    h = z.astype(jnp.float32)
    for wk, bk in (("w0", "b0"), ("w1", "b1"), ("w2", "b2"), ("w3", "b3")):
        h = jax.nn.relu(lin(h, p[wk], p[bk]))
    outs = []
    for d in range(num_domains):
        t = h
        for wk, bk in (("wu0", "bu0"), ("wu1", "bu1"), ("wu2", "bu2")):
            t = jax.nn.relu(lin(t, p[wk][d], p[bk][d]))
        outs.append(lin(t, p["wu3"][d], p["bu3"][d]))
    out = jnp.stack(outs, axis=1)                        # [B, D, style]
    return out[jnp.arange(z.shape[0]), y]                # [B, style]


# --------------------------------- main ---------------------------------------
if __name__ == "__main__":
    latent_dim, style_dim, num_domains, hidden_dim = 16, 48, 2, 384
    batch = 2

    key = jax.random.PRNGKey(0)
    kz, ky, kp = jax.random.split(key, 3)

    z = jax.random.normal(kz, (batch, latent_dim), jnp.float32)
    y = jax.random.randint(ky, (batch,), 0, num_domains, jnp.int32)
    params = init_params(kp, latent_dim, hidden_dim, style_dim, num_domains)

    # One-time weight prep (bf16 cast / pad / pack) -- reused by every forward.
    prep = jax.block_until_ready(
        prepare_params(params, hidden_dim=hidden_dim, style_dim=style_dim,
                       num_domains=num_domains))

    fwd = jax.jit(functools.partial(
        mapping_network_forward,
        latent_dim=latent_dim, hidden_dim=hidden_dim,
        style_dim=style_dim, num_domains=num_domains))

    s = jax.block_until_ready(fwd(z, y, prep))

    s_ref = mapping_network_ref(z, y, params, num_domains=num_domains)
    assert s.shape == (batch, style_dim)
    assert jnp.allclose(s, s_ref, atol=5e-2, rtol=5e-2), "mismatch vs JAX reference"

    print("KERNEL_OK")
</pallas_src>

<mosaic_0001>
module attributes {stable_mosaic.version = 11 : i64} {
  func.func @_mapping_network_kernel(%arg0: i32, %arg1: i32, %arg2: memref<2xi32, #tpu.memory_space<smem>>, %arg3: memref<1xi32, #tpu.memory_space<smem>>, %arg4: memref<8x1xi32, #tpu.memory_space<vmem>>, %arg5: memref<8x16xf32, #tpu.memory_space<vmem>>, %arg6: memref<16x384xbf16, #tpu.memory_space<vmem>>, %arg7: memref<1x384xf32, #tpu.memory_space<vmem>>, %arg8: memref<384x384xbf16, #tpu.memory_space<vmem>>, %arg9: memref<1x384xf32, #tpu.memory_space<vmem>>, %arg10: memref<384x384xbf16, #tpu.memory_space<vmem>>, %arg11: memref<1x384xf32, #tpu.memory_space<vmem>>, %arg12: memref<384x384xbf16, #tpu.memory_space<vmem>>, %arg13: memref<1x384xf32, #tpu.memory_space<vmem>>, %arg14: memref<1x3x384x384xbf16, #tpu.memory_space<vmem>>, %arg15: memref<1x384x128xbf16, #tpu.memory_space<vmem>>, %arg16: memref<1x4x384xf32, #tpu.memory_space<vmem>>, %arg17: memref<8x128xf32, #tpu.memory_space<vmem>>, %arg18: memref<8x384xbf16, #tpu.memory_space<vmem>>) attributes {dimension_semantics = [#tpu.dimension_semantics<parallel>, #tpu.dimension_semantics<arbitrary>], iteration_bounds = array<i64: 1, 2>, scalar_prefetch = 2 : i64, scratch_operands = 1 : i64, tpu.core_type = #tpu.core_type<tc>, window_params = [{transform_indices = @transform_0, window_bounds = array<i64: 8, 1>}, {transform_indices = @transform_1, window_bounds = array<i64: 8, 16>}, {pipeline_mode = #tpu.pipeline_mode<synchronous>, transform_indices = @transform_2, window_bounds = array<i64: 16, 384>}, {pipeline_mode = #tpu.pipeline_mode<synchronous>, transform_indices = @transform_3, window_bounds = array<i64: 1, 384>}, {pipeline_mode = #tpu.pipeline_mode<synchronous>, transform_indices = @transform_4, window_bounds = array<i64: 384, 384>}, {pipeline_mode = #tpu.pipeline_mode<synchronous>, transform_indices = @transform_5, window_bounds = array<i64: 1, 384>}, {pipeline_mode = #tpu.pipeline_mode<synchronous>, transform_indices = @transform_6, window_bounds = array<i64: 384, 384>}, {pipeline_mode = #tpu.pipeline_mode<synchronous>, transform_indices = @transform_7, window_bounds = array<i64: 1, 384>}, {pipeline_mode = #tpu.pipeline_mode<synchronous>, transform_indices = @transform_8, window_bounds = array<i64: 384, 384>}, {pipeline_mode = #tpu.pipeline_mode<synchronous>, transform_indices = @transform_9, window_bounds = array<i64: 1, 384>}, {transform_indices = @transform_10, window_bounds = array<i64: 1, 3, 384, 384>}, {transform_indices = @transform_11, window_bounds = array<i64: 1, 384, 128>}, {transform_indices = @transform_12, window_bounds = array<i64: 1, 4, 384>}, {transform_indices = @transform_13, window_bounds = array<i64: 8, 128>}]} {
    %c0_i32 = arith.constant 0 : i32
    %0 = arith.cmpi eq, %arg1, %c0_i32 : i32
    %1 = arith.extui %0 : i1 to i32
    %c0_i32_0 = arith.constant 0 : i32
    %2 = arith.cmpi ne, %1, %c0_i32_0 : i32
    scf.if %2 {
      %c0_2 = arith.constant 0 : index
      %c0_3 = arith.constant 0 : index
      %7 = vector.load %arg5[%c0_2, %c0_3] : memref<8x16xf32, #tpu.memory_space<vmem>>, vector<8x16xf32>
      %c0_4 = arith.constant 0 : index
      %c0_5 = arith.constant 0 : index
      %8 = vector.load %arg6[%c0_4, %c0_5] : memref<16x384xbf16, #tpu.memory_space<vmem>>, vector<16x384xbf16>
      %c0_6 = arith.constant 0 : index
      %c0_7 = arith.constant 0 : index
      %9 = vector.load %arg7[%c0_6, %c0_7] : memref<1x384xf32, #tpu.memory_space<vmem>>, vector<1x384xf32>
      %10 = arith.truncf %7 : vector<8x16xf32> to vector<8x16xbf16>
      %cst = arith.constant dense<0.000000e+00> : vector<8x384xf32>
      %11 = tpu.matmul %10, %8, %cst {dimension_numbers = #tpu.dot_dimension_numbers<[1], [0], [0], [1], [0, 0, 1, 1], [], []>} : vector<8x16xbf16>, vector<16x384xbf16>, vector<8x384xf32> -> vector<8x384xf32>
      %12 = vector.broadcast %9 : vector<1x384xf32> to vector<8x384xf32>
      %13 = arith.addf %11, %12 : vector<8x384xf32>
      %cst_8 = arith.constant 0.000000e+00 : f32
      %14 = vector.broadcast %cst_8 : f32 to vector<8x384xf32>
      %15 = arith.maximumf %13, %14 : vector<8x384xf32>
      %c0_9 = arith.constant 0 : index
      %c0_10 = arith.constant 0 : index
      %16 = vector.load %arg8[%c0_9, %c0_10] : memref<384x384xbf16, #tpu.memory_space<vmem>>, vector<384x384xbf16>
      %c0_11 = arith.constant 0 : index
      %c0_12 = arith.constant 0 : index
      %17 = vector.load %arg9[%c0_11, %c0_12] : memref<1x384xf32, #tpu.memory_space<vmem>>, vector<1x384xf32>
      %18 = arith.truncf %15 : vector<8x384xf32> to vector<8x384xbf16>
      %cst_13 = arith.constant dense<0.000000e+00> : vector<8x384xf32>
      %19 = tpu.matmul %18, %16, %cst_13 {dimension_numbers = #tpu.dot_dimension_numbers<[1], [0], [0], [1], [0, 0, 1, 1], [], []>} : vector<8x384xbf16>, vector<384x384xbf16>, vector<8x384xf32> -> vector<8x384xf32>
      %20 = vector.broadcast %17 : vector<1x384xf32> to vector<8x384xf32>
      %21 = arith.addf %19, %20 : vector<8x384xf32>
      %cst_14 = arith.constant 0.000000e+00 : f32
      %22 = vector.broadcast %cst_14 : f32 to vector<8x384xf32>
      %23 = arith.maximumf %21, %22 : vector<8x384xf32>
      %c0_15 = arith.constant 0 : index
      %c0_16 = arith.constant 0 : index
      %24 = vector.load %arg10[%c0_15, %c0_16] : memref<384x384xbf16, #tpu.memory_space<vmem>>, vector<384x384xbf16>
      %c0_17 = arith.constant 0 : index
      %c0_18 = arith.constant 0 : index
      %25 = vector.load %arg11[%c0_17, %c0_18] : memref<1x384xf32, #tpu.memory_space<vmem>>, vector<1x384xf32>
      %26 = arith.truncf %23 : vector<8x384xf32> to vector<8x384xbf16>
      %cst_19 = arith.constant dense<0.000000e+00> : vector<8x384xf32>
      %27 = tpu.matmul %26, %24, %cst_19 {dimension_numbers = #tpu.dot_dimension_numbers<[1], [0], [0], [1], [0, 0, 1, 1], [], []>} : vector<8x384xbf16>, vector<384x384xbf16>, vector<8x384xf32> -> vector<8x384xf32>
      %28 = vector.broadcast %25 : vector<1x384xf32> to vector<8x384xf32>
      %29 = arith.addf %27, %28 : vector<8x384xf32>
      %cst_20 = arith.constant 0.000000e+00 : f32
      %30 = vector.broadcast %cst_20 : f32 to vector<8x384xf32>
      %31 = arith.maximumf %29, %30 : vector<8x384xf32>
      %c0_21 = arith.constant 0 : index
      %c0_22 = arith.constant 0 : index
      %32 = vector.load %arg12[%c0_21, %c0_22] : memref<384x384xbf16, #tpu.memory_space<vmem>>, vector<384x384xbf16>
      %c0_23 = arith.constant 0 : index
      %c0_24 = arith.constant 0 : index
      %33 = vector.load %arg13[%c0_23, %c0_24] : memref<1x384xf32, #tpu.memory_space<vmem>>, vector<1x384xf32>
      %34 = arith.truncf %31 : vector<8x384xf32> to vector<8x384xbf16>
      %cst_25 = arith.constant dense<0.000000e+00> : vector<8x384xf32>
      %35 = tpu.matmul %34, %32, %cst_25 {dimension_numbers = #tpu.dot_dimension_numbers<[1], [0], [0], [1], [0, 0, 1, 1], [], []>} : vector<8x384xbf16>, vector<384x384xbf16>, vector<8x384xf32> -> vector<8x384xf32>
      %36 = vector.broadcast %33 : vector<1x384xf32> to vector<8x384xf32>
      %37 = arith.addf %35, %36 : vector<8x384xf32>
      %cst_26 = arith.constant 0.000000e+00 : f32
      %38 = vector.broadcast %cst_26 : f32 to vector<8x384xf32>
      %39 = arith.maximumf %37, %38 : vector<8x384xf32>
      %40 = arith.truncf %39 : vector<8x384xf32> to vector<8x384xbf16>
      %c0_27 = arith.constant 0 : index
      %c0_28 = arith.constant 0 : index
      %41 = vector.load %arg18[%c0_27, %c0_28] : memref<8x384xbf16, #tpu.memory_space<vmem>>, vector<8x384xbf16>
      tpu.vector_store %arg18[%c0_27, %c0_28], %40 {strides = array<i32>} : memref<8x384xbf16, #tpu.memory_space<vmem>>, vector<8x384xbf16>,
      %cst_29 = arith.constant 0.000000e+00 : f32
      %42 = vector.broadcast %cst_29 : f32 to vector<8x128xf32>
      %c0_30 = arith.constant 0 : index
      %c0_31 = arith.constant 0 : index
      %43 = vector.load %arg17[%c0_30, %c0_31] : memref<8x128xf32, #tpu.memory_space<vmem>>, vector<8x128xf32>
      tpu.vector_store %arg17[%c0_30, %c0_31], %42 {strides = array<i32>} : memref<8x128xf32, #tpu.memory_space<vmem>>, vector<8x128xf32>,
    } else {
    }
    %c0 = arith.constant 0 : index
    %3 = memref.load %arg3[%c0] : memref<1xi32, #tpu.memory_space<smem>>
    %4 = arith.cmpi slt, %arg1, %3 : i32
    %5 = arith.extui %4 : i1 to i32
    %c0_i32_1 = arith.constant 0 : i32
    %6 = arith.cmpi ne, %5, %c0_i32_1 : i32
    scf.if %6 {
      %7 = arith.index_cast %arg1 : i32 to index
      %8 = memref.load %arg2[%7] : memref<2xi32, #tpu.memory_space<smem>>
      %c0_2 = arith.constant 0 : index
      %c0_3 = arith.constant 0 : index
      %9 = vector.load %arg18[%c0_2, %c0_3] : memref<8x384xbf16, #tpu.memory_space<vmem>>, vector<8x384xbf16>
      %c0_4 = arith.constant 0 : index
      %c0_5 = arith.constant 0 : index
      %c0_6 = arith.constant 0 : index
      %c0_7 = arith.constant 0 : index
      %10 = vector.load %arg14[%c0_4, %c0_5, %c0_6, %c0_7] : memref<1x3x384x384xbf16, #tpu.memory_space<vmem>>, vector<1x1x384x384xbf16>
      %11 = vector.shape_cast %10 : vector<1x1x384x384xbf16> to vector<384x384xbf16>
      %c0_8 = arith.constant 0 : index
      %c0_9 = arith.constant 0 : index
      %c0_10 = arith.constant 0 : index
      %12 = vector.load %arg16[%c0_8, %c0_9, %c0_10] : memref<1x4x384xf32, #tpu.memory_space<vmem>>, vector<1x1x384xf32>
      %13 = vector.shape_cast %12 : vector<1x1x384xf32> to vector<1x384xf32>
      %cst = arith.constant dense<0.000000e+00> : vector<8x384xf32>
      %14 = tpu.matmul %9, %11, %cst {dimension_numbers = #tpu.dot_dimension_numbers<[1], [0], [0], [1], [0, 0, 1, 1], [], []>} : vector<8x384xbf16>, vector<384x384xbf16>, vector<8x384xf32> -> vector<8x384xf32>
      %15 = vector.broadcast %13 : vector<1x384xf32> to vector<8x384xf32>
      %16 = arith.addf %14, %15 : vector<8x384xf32>
      %cst_11 = arith.constant 0.000000e+00 : f32
      %17 = vector.broadcast %cst_11 : f32 to vector<8x384xf32>
      %18 = arith.maximumf %16, %17 : vector<8x384xf32>
      %c0_12 = arith.constant 0 : index
      %c1 = arith.constant 1 : index
      %c0_13 = arith.constant 0 : index
      %c0_14 = arith.constant 0 : index
      %19 = vector.load %arg14[%c0_12, %c1, %c0_13, %c0_14] : memref<1x3x384x384xbf16, #tpu.memory_space<vmem>>, vector<1x1x384x384xbf16>
      %20 = vector.shape_cast %19 : vector<1x1x384x384xbf16> to vector<384x384xbf16>
      %c0_15 = arith.constant 0 : index
      %c1_16 = arith.constant 1 : index
      %c0_17 = arith.constant 0 : index
      %21 = vector.load %arg16[%c0_15, %c1_16, %c0_17] : memref<1x4x384xf32, #tpu.memory_space<vmem>>, vector<1x1x384xf32>
      %22 = vector.shape_cast %21 : vector<1x1x384xf32> to vector<1x384xf32>
      %23 = arith.truncf %18 : vector<8x384xf32> to vector<8x384xbf16>
      %cst_18 = arith.constant dense<0.000000e+00> : vector<8x384xf32>
      %24 = tpu.matmul %23, %20, %cst_18 {dimension_numbers = #tpu.dot_dimension_numbers<[1], [0], [0], [1], [0, 0, 1, 1], [], []>} : vector<8x384xbf16>, vector<384x384xbf16>, vector<8x384xf32> -> vector<8x384xf32>
      %25 = vector.broadcast %22 : vector<1x384xf32> to vector<8x384xf32>
      %26 = arith.addf %24, %25 : vector<8x384xf32>
      %cst_19 = arith.constant 0.000000e+00 : f32
      %27 = vector.broadcast %cst_19 : f32 to vector<8x384xf32>
      %28 = arith.maximumf %26, %27 : vector<8x384xf32>
      %c0_20 = arith.constant 0 : index
      %c2 = arith.constant 2 : index
      %c0_21 = arith.constant 0 : index
      %c0_22 = arith.constant 0 : index
      %29 = vector.load %arg14[%c0_20, %c2, %c0_21, %c0_22] : memref<1x3x384x384xbf16, #tpu.memory_space<vmem>>, vector<1x1x384x384xbf16>
      %30 = vector.shape_cast %29 : vector<1x1x384x384xbf16> to vector<384x384xbf16>
      %c0_23 = arith.constant 0 : index
      %c2_24 = arith.constant 2 : index
      %c0_25 = arith.constant 0 : index
      %31 = vector.load %arg16[%c0_23, %c2_24, %c0_25] : memref<1x4x384xf32, #tpu.memory_space<vmem>>, vector<1x1x384xf32>
      %32 = vector.shape_cast %31 : vector<1x1x384xf32> to vector<1x384xf32>
      %33 = arith.truncf %28 : vector<8x384xf32> to vector<8x384xbf16>
      %cst_26 = arith.constant dense<0.000000e+00> : vector<8x384xf32>
      %34 = tpu.matmul %33, %30, %cst_26 {dimension_numbers = #tpu.dot_dimension_numbers<[1], [0], [0], [1], [0, 0, 1, 1], [], []>} : vector<8x384xbf16>, vector<384x384xbf16>, vector<8x384xf32> -> vector<8x384xf32>
      %35 = vector.broadcast %32 : vector<1x384xf32> to vector<8x384xf32>
      %36 = arith.addf %34, %35 : vector<8x384xf32>
      %cst_27 = arith.constant 0.000000e+00 : f32
      %37 = vector.broadcast %cst_27 : f32 to vector<8x384xf32>
      %38 = arith.maximumf %36, %37 : vector<8x384xf32>
      %c0_28 = arith.constant 0 : index
      %c0_29 = arith.constant 0 : index
      %c0_30 = arith.constant 0 : index
      %39 = vector.load %arg15[%c0_28, %c0_29, %c0_30] : memref<1x384x128xbf16, #tpu.memory_space<vmem>>, vector<1x384x128xbf16>
      %40 = vector.shape_cast %39 : vector<1x384x128xbf16> to vector<384x128xbf16>
      %c0_31 = arith.constant 0 : index
      %c3 = arith.constant 3 : index
      %c0_32 = arith.constant 0 : index
      %41 = vector.load %arg16[%c0_31, %c3, %c0_32] : memref<1x4x384xf32, #tpu.memory_space<vmem>>, vector<1x1x128xf32>
      %42 = vector.shape_cast %41 : vector<1x1x128xf32> to vector<1x128xf32>
      %43 = arith.truncf %38 : vector<8x384xf32> to vector<8x384xbf16>
      %cst_33 = arith.constant dense<0.000000e+00> : vector<8x128xf32>
      %44 = tpu.matmul %43, %40, %cst_33 {dimension_numbers = #tpu.dot_dimension_numbers<[1], [0], [0], [1], [0, 0, 1, 1], [], []>} : vector<8x384xbf16>, vector<384x128xbf16>, vector<8x128xf32> -> vector<8x128xf32>
      %45 = vector.broadcast %42 : vector<1x128xf32> to vector<8x128xf32>
      %46 = arith.addf %44, %45 : vector<8x128xf32>
      %c0_34 = arith.constant 0 : index
      %c0_35 = arith.constant 0 : index
      %47 = vector.load %arg4[%c0_34, %c0_35] : memref<8x1xi32, #tpu.memory_space<vmem>>, vector<8x1xi32>
      %48 = vector.broadcast %8 : i32 to vector<8x1xi32>
      %49 = arith.cmpi eq, %47, %48 : vector<8x1xi32>
      %50 = arith.extui %49 : vector<8x1xi1> to vector<8x1xi32>
      %51 = arith.sitofp %50 : vector<8x1xi32> to vector<8x1xf32>
      %c0_36 = arith.constant 0 : index
      %c0_37 = arith.constant 0 : index
      %52 = vector.load %arg17[%c0_36, %c0_37] : memref<8x128xf32, #tpu.memory_space<vmem>>, vector<8x128xf32>
      %53 = vector.broadcast %51 : vector<8x1xf32> to vector<8x128xf32>
      %54 = arith.mulf %53, %46 : vector<8x128xf32>
      %55 = arith.addf %52, %54 : vector<8x128xf32>
      %c0_38 = arith.constant 0 : index
      %c0_39 = arith.constant 0 : index
      %56 = vector.load %arg17[%c0_38, %c0_39] : memref<8x128xf32, #tpu.memory_space<vmem>>, vector<8x128xf32>
      tpu.vector_store %arg17[%c0_38, %c0_39], %55 {strides = array<i32>} : memref<8x128xf32, #tpu.memory_space<vmem>>, vector<8x128xf32>,
    } else {
    }
    return
  }
  func.func @transform_0(%arg0: i32, %arg1: i32, %arg2: memref<2xi32, #tpu.memory_space<smem>>, %arg3: memref<1xi32, #tpu.memory_space<smem>>) -> (i32, i32) {
    %c0_i32 = arith.constant 0 : i32
    %c0_i32_0 = arith.constant 0 : i32
    return %arg0, %c0_i32 : i32, i32
  }
  func.func @transform_1(%arg0: i32, %arg1: i32, %arg2: memref<2xi32, #tpu.memory_space<smem>>, %arg3: memref<1xi32, #tpu.memory_space<smem>>) -> (i32, i32) {
    %c0_i32 = arith.constant 0 : i32
    %c0_i32_0 = arith.constant 0 : i32
    return %arg0, %c0_i32 : i32, i32
  }
  func.func @transform_2(%arg0: i32, %arg1: i32, %arg2: memref<2xi32, #tpu.memory_space<smem>>, %arg3: memref<1xi32, #tpu.memory_space<smem>>) -> (i32, i32) {
    %c0_i32 = arith.constant 0 : i32
    %c0_i32_0 = arith.constant 0 : i32
    %c0_i32_1 = arith.constant 0 : i32
    return %c0_i32, %c0_i32_0 : i32, i32
  }
  func.func @transform_3(%arg0: i32, %arg1: i32, %arg2: memref<2xi32, #tpu.memory_space<smem>>, %arg3: memref<1xi32, #tpu.memory_space<smem>>) -> (i32, i32) {
    %c0_i32 = arith.constant 0 : i32
    %c0_i32_0 = arith.constant 0 : i32
    %c0_i32_1 = arith.constant 0 : i32
    return %c0_i32, %c0_i32_0 : i32, i32
  }
  func.func @transform_4(%arg0: i32, %arg1: i32, %arg2: memref<2xi32, #tpu.memory_space<smem>>, %arg3: memref<1xi32, #tpu.memory_space<smem>>) -> (i32, i32) {
    %c0_i32 = arith.constant 0 : i32
    %c0_i32_0 = arith.constant 0 : i32
    %c0_i32_1 = arith.constant 0 : i32
    return %c0_i32, %c0_i32_0 : i32, i32
  }
  func.func @transform_5(%arg0: i32, %arg1: i32, %arg2: memref<2xi32, #tpu.memory_space<smem>>, %arg3: memref<1xi32, #tpu.memory_space<smem>>) -> (i32, i32) {
    %c0_i32 = arith.constant 0 : i32
    %c0_i32_0 = arith.constant 0 : i32
    %c0_i32_1 = arith.constant 0 : i32
    return %c0_i32, %c0_i32_0 : i32, i32
  }
  func.func @transform_6(%arg0: i32, %arg1: i32, %arg2: memref<2xi32, #tpu.memory_space<smem>>, %arg3: memref<1xi32, #tpu.memory_space<smem>>) -> (i32, i32) {
    %c0_i32 = arith.constant 0 : i32
    %c0_i32_0 = arith.constant 0 : i32
    %c0_i32_1 = arith.constant 0 : i32
    return %c0_i32, %c0_i32_0 : i32, i32
  }
  func.func @transform_7(%arg0: i32, %arg1: i32, %arg2: memref<2xi32, #tpu.memory_space<smem>>, %arg3: memref<1xi32, #tpu.memory_space<smem>>) -> (i32, i32) {
    %c0_i32 = arith.constant 0 : i32
    %c0_i32_0 = arith.constant 0 : i32
    %c0_i32_1 = arith.constant 0 : i32
    return %c0_i32, %c0_i32_0 : i32, i32
  }
  func.func @transform_8(%arg0: i32, %arg1: i32, %arg2: memref<2xi32, #tpu.memory_space<smem>>, %arg3: memref<1xi32, #tpu.memory_space<smem>>) -> (i32, i32) {
    %c0_i32 = arith.constant 0 : i32
    %c0_i32_0 = arith.constant 0 : i32
    %c0_i32_1 = arith.constant 0 : i32
    return %c0_i32, %c0_i32_0 : i32, i32
  }
  func.func @transform_9(%arg0: i32, %arg1: i32, %arg2: memref<2xi32, #tpu.memory_space<smem>>, %arg3: memref<1xi32, #tpu.memory_space<smem>>) -> (i32, i32) {
    %c0_i32 = arith.constant 0 : i32
    %c0_i32_0 = arith.constant 0 : i32
    %c0_i32_1 = arith.constant 0 : i32
    return %c0_i32, %c0_i32_0 : i32, i32
  }
  func.func @transform_10(%arg0: i32, %arg1: i32, %arg2: memref<2xi32, #tpu.memory_space<smem>>, %arg3: memref<1xi32, #tpu.memory_space<smem>>) -> (i32, i32, i32, i32) {
    %0 = arith.index_cast %arg1 : i32 to index
    %1 = memref.load %arg2[%0] : memref<2xi32, #tpu.memory_space<smem>>
    %c0_i32 = arith.constant 0 : i32
    %c0_i32_0 = arith.constant 0 : i32
    %c0_i32_1 = arith.constant 0 : i32
    %c0_i32_2 = arith.constant 0 : i32
    return %1, %c0_i32, %c0_i32_0, %c0_i32_1 : i32, i32, i32, i32
  }
  func.func @transform_11(%arg0: i32, %arg1: i32, %arg2: memref<2xi32, #tpu.memory_space<smem>>, %arg3: memref<1xi32, #tpu.memory_space<smem>>) -> (i32, i32, i32) {
    %0 = arith.index_cast %arg1 : i32 to index
    %1 = memref.load %arg2[%0] : memref<2xi32, #tpu.memory_space<smem>>
    %c0_i32 = arith.constant 0 : i32
    %c0_i32_0 = arith.constant 0 : i32
    %c0_i32_1 = arith.constant 0 : i32
    return %1, %c0_i32, %c0_i32_0 : i32, i32, i32
  }
  func.func @transform_12(%arg0: i32, %arg1: i32, %arg2: memref<2xi32, #tpu.memory_space<smem>>, %arg3: memref<1xi32, #tpu.memory_space<smem>>) -> (i32, i32, i32) {
    %0 = arith.index_cast %arg1 : i32 to index
    %1 = memref.load %arg2[%0] : memref<2xi32, #tpu.memory_space<smem>>
    %c0_i32 = arith.constant 0 : i32
    %c0_i32_0 = arith.constant 0 : i32
    %c0_i32_1 = arith.constant 0 : i32
    return %1, %c0_i32, %c0_i32_0 : i32, i32, i32
  }
  func.func @transform_13(%arg0: i32, %arg1: i32, %arg2: memref<2xi32, #tpu.memory_space<smem>>, %arg3: memref<1xi32, #tpu.memory_space<smem>>) -> (i32, i32) {
    %c0_i32 = arith.constant 0 : i32
    %c0_i32_0 = arith.constant 0 : i32
    return %arg0, %c0_i32 : i32, i32
  }
}

</mosaic_0001>

<llo_original>
// kernel: mapping_network_forward.1
$region0: #{mapping_network_forward.1}
  #allocation0 [shape = 'u32[]', space=smem, size = 0x4, offset = 0x4, fixed_abs, tag = 'smem constant byte address 0x4 - core index']
  #allocation1 [shape = 'u32[144,128]{1,0:T(1,128)}', space=vmem, size = 0x12000, scoped, tag = 'internal scratch']
  #allocation2 [shape = 'bf16[8,384]{1,0:T(8,128)(2,1)}', space=vmem, size = 0x1800, scoped, tag = 'scratch operand']
  #allocation3 [shape = 's32[1]{0}', space=sflag, size = 0x4, scoped, tag = 'scoped memory for mapping_network_forward.1']
  #allocation4 [shape = 'u8[512]{0}', space=smem, size = 0x200, scoped, tag = 'prefetched SMEM operand 0']
  #allocation5 [shape = 's32[1]{0:T(128)S(6)}', space=smem, size = 0x200, scoped, tag = 'prefetched SMEM operand 1']
  %s0 = inlined_call_operand.vmem [shape: s32[2], index: 0, kind: input, shape index: {}]
  %s1 = inlined_call_operand.<no memory space> [shape: s32[1], index: 1, kind: input, shape index: {}]
  %s2 = inlined_call_operand.vmem [shape: s32[8,1], index: 2, kind: input, shape index: {}]
  %s3 = inlined_call_operand.vmem [shape: f32[8,16], index: 3, kind: input, shape index: {}]
  %s4 = inlined_call_operand.hbm [shape: bf16[16,384], index: 4, kind: input, shape index: {}]
  %s5 = inlined_call_operand.hbm [shape: f32[1,384], index: 5, kind: input, shape index: {}]
  %s6 = inlined_call_operand.hbm [shape: bf16[384,384], index: 6, kind: input, shape index: {}]
  %s7 = inlined_call_operand.hbm [shape: f32[1,384], index: 7, kind: input, shape index: {}]
  %s8 = inlined_call_operand.hbm [shape: bf16[384,384], index: 8, kind: input, shape index: {}]
  %s9 = inlined_call_operand.hbm [shape: f32[1,384], index: 9, kind: input, shape index: {}]
  %s10 = inlined_call_operand.hbm [shape: bf16[384,384], index: 10, kind: input, shape index: {}]
  %s11 = inlined_call_operand.hbm [shape: f32[1,384], index: 11, kind: input, shape index: {}]
  %s12 = inlined_call_operand.hbm [shape: bf16[2,3,384,384], index: 12, kind: input, shape index: {}]
  %s13 = inlined_call_operand.hbm [shape: bf16[2,384,128], index: 13, kind: input, shape index: {}]
  %s14 = inlined_call_operand.hbm [shape: f32[2,4,384], index: 14, kind: input, shape index: {}]
  %s15 = inlined_call_operand.vmem [shape: f32[8,128], index: 15, kind: output, shape index: {}]
  %s16 = sld [smem:[#allocation0]]
  $region137: #{mapping_network_forward.1} parent=0
    _
  %s18 = ssub.s32 1, %s16
  %s19 = scalar_select 0, %s18, %s16
  %s20 = sshll.u32 %s0, 4
  %s21 = int_to_ptr.vmem [resolvable:$true] %s20
  %23 = dma.vmem_to_smem %s21, 16, [#allocation4], [#allocation3]
  %24 = sst [smem:[#allocation5]] %s1
  %25 = dma.done [#allocation3], 16
  %26 = sfence
  $region1: #{mapping_network_forward.1} parent=0
    #allocation6 [shape = 'u8[12288]{0}', space=vmem, size = 0x3000, scoped, tag = 'input window, operand 4, single buffered']
    #allocation7 [shape = 's32[2]{0}', space=sflag, size = 0x8, scoped, tag = 'scoped memory for mapping_network_forward.1']
    #allocation8 [shape = 'u8[1536]{0}', space=vmem, size = 0x800, scoped, tag = 'input window, operand 5, single buffered']
    #allocation9 [shape = 's32[1]{0}', space=sflag, size = 0x4, scoped, tag = 'scoped memory for mapping_network_forward.1']
    #allocation10 [shape = 'u8[294912]{0}', space=vmem, size = 0x48000, scoped, tag = 'input window, operand 6, single buffered']
    #allocation11 [shape = 'u8[1536]{0}', space=vmem, size = 0x800, scoped, tag = 'input window, operand 7, single buffered']
    #allocation12 [shape = 's32[1]{0}', space=sflag, size = 0x4, scoped, tag = 'scoped memory for mapping_network_forward.1']
    #allocation13 [shape = 'u8[294912]{0}', space=vmem, size = 0x48000, scoped, tag = 'input window, operand 8, single buffered']
    #allocation14 [shape = 'u8[1536]{0}', space=vmem, size = 0x800, scoped, tag = 'input window, operand 9, single buffered']
    #allocation15 [shape = 's32[1]{0}', space=sflag, size = 0x4, scoped, tag = 'scoped memory for mapping_network_forward.1']
    #allocation16 [shape = 'u8[294912]{0}', space=vmem, size = 0x48000, scoped, tag = 'input window, operand 10, single buffered']
    #allocation17 [shape = 'u8[1536]{0}', space=vmem, size = 0x800, scoped, tag = 'input window, operand 11, single buffered']
    #allocation18 [shape = 's32[1]{0}', space=sflag, size = 0x4, scoped, tag = 'scoped memory for mapping_network_forward.1']
    #allocation19 [shape = 'u8[1769472]{0}', space=vmem, size = 0x1b0000, scoped, tag = 'input window, operand 12']
    #allocation20 [shape = 'u8[196608]{0}', space=vmem, size = 0x30000, scoped, tag = 'input window, operand 13']
    #allocation21 [shape = 'u8[12288]{0}', space=vmem, size = 0x3000, scoped, tag = 'input window, operand 14']
    %27 = vsyncpa [#allocation7], 0
    %28 = vsyncpa [#allocation9], 0
    %29 = vsyncpa [#allocation12], 0
    %30 = vsyncpa [#allocation15], 0
    %31 = vsyncpa [#allocation18], 0
    loop: start=0, step=1, limit=4
    $region2: #{mapping_network_forward.1} parent=1 // loop_pre_header
      _
    $region3: #{mapping_network_forward.1} parent=1 // loop_header
      %s33 = sphi 0, %s37
      %p34 = scmp.ge.s32.totalorder %s33, 4
      %s40 = sphi 0, %s52
      %s41 = sphi 0, %s48
      %s42 = sphi 0, %s40
      %s43 = sphi 0, %s41
      %s44 = sphi 0, %s42
      %s45 = sphi 0, %s43
      %s55 = sphi 0, %s57
      %s58 = sphi 0, %s55
      %s59 = sphi 0, %s58
      %s75 = sphi 0, %s59
      %s81 = sphi 0, %s83
      %s84 = sphi 0, %s81
      %s85 = sphi 0, %s84
      %s101 = sphi 0, %s85
      %s105 = sphi 0, %s105
      %s107 = sphi 0, %s105
      %s108 = sphi 0, %s107
      %s122 = sphi 0, %s108
      %s126 = sphi 0, %s126
      %s128 = sphi 0, %s126
      %s129 = sphi 0, %s128
      %s143 = sphi 0, %s129
      %s147 = sphi 0, %s147
      %s149 = sphi 0, %s147
      %s150 = sphi 0, %s149
      %s164 = sphi 0, %s150
      %s168 = sphi 0, %s168
      %s170 = sphi 0, %s168
      %s171 = sphi 0, %s170
      %s185 = sphi 0, %s171
      %s189 = sphi 0, %s189
      %s191 = sphi 0, %s189
      %s192 = sphi 0, %s191
      %s206 = sphi 0, %s192
      %s210 = sphi 0, %s210
      %s212 = sphi 0, %s210
      %s213 = sphi 0, %s212
      %s227 = sphi 0, %s213
      %s231 = sphi 0, %s231
      %s233 = sphi 0, %s231
      %s234 = sphi 0, %s233
      %s248 = sphi 0, %s234
      %s252 = sphi 0, %s252
      %s254 = sphi 0, %s252
      %s255 = sphi 0, %s254
      %s269 = sphi 0, %s255
      %s277 = sphi 0, %s279
      %s280 = sphi 0, %s277
      %s281 = sphi 0, %s280
      %s297 = sphi 0, %s281
      %s305 = sphi 0, %s307
      %s308 = sphi 0, %s305
      %s309 = sphi 0, %s308
      %s325 = sphi 0, %s309
      %s333 = sphi 0, %s335
      %s336 = sphi 0, %s333
      %s337 = sphi 0, %s336
      %s353 = sphi 0, %s337
      %s359 = sphi 0, %s361
      %s362 = sphi 0, %s359
      %s363 = sphi 0, %s362
      %s379 = sphi 0, %s363
    $region4: #{mapping_network_forward.1} parent=1 // loop_header_branch
      %36 = sbr.rel (%p34) target = $region8
    $region5: #{mapping_network_forward.1} parent=1 // loop_body
      %s38 = ssub.s32 %s33, 1
      %s39 = ssub.s32 %s33, 2
      %s46 = sadd.s32 1, %s41
      %p47 = scmp.ge.s32.totalorder %s46, 2
      %s48 = scalar_select %p47, 0, %s46
      %s49 = sadd.s32 1, %s40
      %s50 = scalar_select %p47, %s49, %s40
      %p51 = scmp.ge.s32.totalorder %s50, 1
      %s52 = scalar_select %p51, 0, %s50
      %s53 = ssub.s32 %s40, %s52
      %p54 = scmp.eq.s32.totalorder %s53, 0
      %s56 = sadd.s32 %s55, 1
      %s57 = scalar_select %p54, %s55, %s56
      %p60 = pneg %p54
      %p61 = scmp.eq.s32.totalorder %s33, 1
      %p62 = por %p60, %p61
      %p63 = scmp.ne.s32.totalorder %s55, %s58
      %p64 = scmp.eq.s32.totalorder %s33, 0
      %p65 = por %p63, %p64
      %p66 = scmp.ne.s32.totalorder %s55, %s58
      %p67 = scmp.eq.s32.totalorder %s38, 1
      %p68 = por %p66, %p67
      %p69 = scmp.ne.s32.totalorder %s58, %s59
      %p70 = scmp.eq.s32.totalorder %s38, 0
      %p71 = por %p69, %p70
      %p72 = scmp.ne.s32.totalorder %s58, %s59
      %p73 = scmp.eq.s32.totalorder %s39, 1
      %p74 = por %p72, %p73
      %p76 = scmp.ne.s32.totalorder %s59, %s75
      %p77 = scmp.eq.s32.totalorder %s39, 0
      %p78 = por %p76, %p77
      %s79 = ssub.s32 %s40, %s52
      %p80 = scmp.eq.s32.totalorder %s79, 0
      %s82 = sadd.s32 %s81, 1
      %s83 = scalar_select %p80, %s81, %s82
      %p86 = pneg %p80
      %p87 = scmp.eq.s32.totalorder %s33, 1
      %p88 = por %p86, %p87
      %p89 = scmp.ne.s32.totalorder %s81, %s84
      %p90 = scmp.eq.s32.totalorder %s33, 0
      %p91 = por %p89, %p90
      %p92 = scmp.ne.s32.totalorder %s81, %s84
      %p93 = scmp.eq.s32.totalorder %s38, 1
      %p94 = por %p92, %p93
      %p95 = scmp.ne.s32.totalorder %s84, %s85
      %p96 = scmp.eq.s32.totalorder %s38, 0
      %p97 = por %p95, %p96
      %p98 = scmp.ne.s32.totalorder %s84, %s85
      %p99 = scmp.eq.s32.totalorder %s39, 1
      %p100 = por %p98, %p99
      %p102 = scmp.ne.s32.totalorder %s85, %s101
      %p103 = scmp.eq.s32.totalorder %s39, 0
      %p104 = por %p102, %p103
      %s106 = sadd.s32 %s105, 1
      %p109 = scmp.eq.s32.totalorder %s33, 1
      %p110 = scmp.ne.s32.totalorder %s105, %s107
      %p111 = scmp.eq.s32.totalorder %s33, 0
      %p112 = por %p110, %p111
      %p113 = scmp.ne.s32.totalorder %s105, %s107
      %p114 = scmp.eq.s32.totalorder %s38, 1
      %p115 = por %p113, %p114
      %p116 = scmp.ne.s32.totalorder %s107, %s108
      %p117 = scmp.eq.s32.totalorder %s38, 0
      %p118 = por %p116, %p117
      %p119 = scmp.ne.s32.totalorder %s107, %s108
      %p120 = scmp.eq.s32.totalorder %s39, 1
      %p121 = por %p119, %p120
      %p123 = scmp.ne.s32.totalorder %s108, %s122
      %p124 = scmp.eq.s32.totalorder %s39, 0
      %p125 = por %p123, %p124
      %s127 = sadd.s32 %s126, 1
      %p130 = scmp.eq.s32.totalorder %s33, 1
      %p131 = scmp.ne.s32.totalorder %s126, %s128
      %p132 = scmp.eq.s32.totalorder %s33, 0
      %p133 = por %p131, %p132
      %p134 = scmp.ne.s32.totalorder %s126, %s128
      %p135 = scmp.eq.s32.totalorder %s38, 1
      %p136 = por %p134, %p135
      %p137 = scmp.ne.s32.totalorder %s128, %s129
      %p138 = scmp.eq.s32.totalorder %s38, 0
      %p139 = por %p137, %p138
      %p140 = scmp.ne.s32.totalorder %s128, %s129
      %p141 = scmp.eq.s32.totalorder %s39, 1
      %p142 = por %p140, %p141
      %p144 = scmp.ne.s32.totalorder %s129, %s143
      %p145 = scmp.eq.s32.totalorder %s39, 0
      %p146 = por %p144, %p145
      %s148 = sadd.s32 %s147, 1
      %p151 = scmp.eq.s32.totalorder %s33, 1
      %p152 = scmp.ne.s32.totalorder %s147, %s149
      %p153 = scmp.eq.s32.totalorder %s33, 0
      %p154 = por %p152, %p153
      %p155 = scmp.ne.s32.totalorder %s147, %s149
      %p156 = scmp.eq.s32.totalorder %s38, 1
      %p157 = por %p155, %p156
      %p158 = scmp.ne.s32.totalorder %s149, %s150
      %p159 = scmp.eq.s32.totalorder %s38, 0
      %p160 = por %p158, %p159
      %p161 = scmp.ne.s32.totalorder %s149, %s150
      %p162 = scmp.eq.s32.totalorder %s39, 1
      %p163 = por %p161, %p162
      %p165 = scmp.ne.s32.totalorder %s150, %s164
      %p166 = scmp.eq.s32.totalorder %s39, 0
      %p167 = por %p165, %p166
      %s169 = sadd.s32 %s168, 1
      %p172 = scmp.eq.s32.totalorder %s33, 1
      %p173 = scmp.ne.s32.totalorder %s168, %s170
      %p174 = scmp.eq.s32.totalorder %s33, 0
      %p175 = por %p173, %p174
      %p176 = scmp.ne.s32.totalorder %s168, %s170
      %p177 = scmp.eq.s32.totalorder %s38, 1
      %p178 = por %p176, %p177
      %p179 = scmp.ne.s32.totalorder %s170, %s171
      %p180 = scmp.eq.s32.totalorder %s38, 0
      %p181 = por %p179, %p180
      %p182 = scmp.ne.s32.totalorder %s170, %s171
      %p183 = scmp.eq.s32.totalorder %s39, 1
      %p184 = por %p182, %p183
      %p186 = scmp.ne.s32.totalorder %s171, %s185
      %p187 = scmp.eq.s32.totalorder %s39, 0
      %p188 = por %p186, %p187
      %s190 = sadd.s32 %s189, 1
      %p193 = scmp.eq.s32.totalorder %s33, 1
      %p194 = scmp.ne.s32.totalorder %s189, %s191
      %p195 = scmp.eq.s32.totalorder %s33, 0
      %p196 = por %p194, %p195
      %p197 = scmp.ne.s32.totalorder %s189, %s191
      %p198 = scmp.eq.s32.totalorder %s38, 1
      %p199 = por %p197, %p198
      %p200 = scmp.ne.s32.totalorder %s191, %s192
      %p201 = scmp.eq.s32.totalorder %s38, 0
      %p202 = por %p200, %p201
      %p203 = scmp.ne.s32.totalorder %s191, %s192
      %p204 = scmp.eq.s32.totalorder %s39, 1
      %p205 = por %p203, %p204
      %p207 = scmp.ne.s32.totalorder %s192, %s206
      %p208 = scmp.eq.s32.totalorder %s39, 0
      %p209 = por %p207, %p208
      %s211 = sadd.s32 %s210, 1
      %p214 = scmp.eq.s32.totalorder %s33, 1
      %p215 = scmp.ne.s32.totalorder %s210, %s212
      %p216 = scmp.eq.s32.totalorder %s33, 0
      %p217 = por %p215, %p216
      %p218 = scmp.ne.s32.totalorder %s210, %s212
      %p219 = scmp.eq.s32.totalorder %s38, 1
      %p220 = por %p218, %p219
      %p221 = scmp.ne.s32.totalorder %s212, %s213
      %p222 = scmp.eq.s32.totalorder %s38, 0
      %p223 = por %p221, %p222
      %p224 = scmp.ne.s32.totalorder %s212, %s213
      %p225 = scmp.eq.s32.totalorder %s39, 1
      %p226 = por %p224, %p225
      %p228 = scmp.ne.s32.totalorder %s213, %s227
      %p229 = scmp.eq.s32.totalorder %s39, 0
      %p230 = por %p228, %p229
      %s232 = sadd.s32 %s231, 1
      %p235 = scmp.eq.s32.totalorder %s33, 1
      %p236 = scmp.ne.s32.totalorder %s231, %s233
      %p237 = scmp.eq.s32.totalorder %s33, 0
      %p238 = por %p236, %p237
      %p239 = scmp.ne.s32.totalorder %s231, %s233
      %p240 = scmp.eq.s32.totalorder %s38, 1
      %p241 = por %p239, %p240
      %p242 = scmp.ne.s32.totalorder %s233, %s234
      %p243 = scmp.eq.s32.totalorder %s38, 0
      %p244 = por %p242, %p243
      %p245 = scmp.ne.s32.totalorder %s233, %s234
      %p246 = scmp.eq.s32.totalorder %s39, 1
      %p247 = por %p245, %p246
      %p249 = scmp.ne.s32.totalorder %s234, %s248
      %p250 = scmp.eq.s32.totalorder %s39, 0
      %p251 = por %p249, %p250
      %s253 = sadd.s32 %s252, 1
      %p256 = scmp.eq.s32.totalorder %s33, 1
      %p257 = scmp.ne.s32.totalorder %s252, %s254
      %p258 = scmp.eq.s32.totalorder %s33, 0
      %p259 = por %p257, %p258
      %p260 = scmp.ne.s32.totalorder %s252, %s254
      %p261 = scmp.eq.s32.totalorder %s38, 1
      %p262 = por %p260, %p261
      %p263 = scmp.ne.s32.totalorder %s254, %s255
      %p264 = scmp.eq.s32.totalorder %s38, 0
      %p265 = por %p263, %p264
      %p266 = scmp.ne.s32.totalorder %s254, %s255
      %p267 = scmp.eq.s32.totalorder %s39, 1
      %p268 = por %p266, %p267
      %p270 = scmp.ne.s32.totalorder %s255, %s269
      %p271 = scmp.eq.s32.totalorder %s39, 0
      %p272 = por %p270, %p271
      %s273 = sld [smem:[#allocation4 + %s41]]
      %s274 = sld [smem:[#allocation4 + %s48]]
      %s275 = ssub.s32 %s273, %s274
      %p276 = scmp.eq.s32.totalorder %s275, 0
      %s278 = sadd.s32 %s277, 1
      %s279 = scalar_select %p276, %s277, %s278
      %p282 = pneg %p276
      %p283 = scmp.eq.s32.totalorder %s33, 1
      %p284 = por %p282, %p283
      %p285 = scmp.ne.s32.totalorder %s277, %s280
      %p286 = scmp.eq.s32.totalorder %s33, 0
      %p287 = por %p285, %p286
      %p288 = scmp.ne.s32.totalorder %s277, %s280
      %p289 = scmp.eq.s32.totalorder %s38, 1
      %p290 = por %p288, %p289
      %p291 = scmp.ne.s32.totalorder %s280, %s281
      %p292 = scmp.eq.s32.totalorder %s38, 0
      %p293 = por %p291, %p292
      %p294 = scmp.ne.s32.totalorder %s280, %s281
      %p295 = scmp.eq.s32.totalorder %s39, 1
      %p296 = por %p294, %p295
      %p298 = scmp.ne.s32.totalorder %s281, %s297
      %p299 = scmp.eq.s32.totalorder %s39, 0
      %p300 = por %p298, %p299
      %s301 = sld [smem:[#allocation4 + %s41]]
      %s302 = sld [smem:[#allocation4 + %s48]]
      %s303 = ssub.s32 %s301, %s302
      %p304 = scmp.eq.s32.totalorder %s303, 0
      %s306 = sadd.s32 %s305, 1
      %s307 = scalar_select %p304, %s305, %s306
      %p310 = pneg %p304
      %p311 = scmp.eq.s32.totalorder %s33, 1
      %p312 = por %p310, %p311
      %p313 = scmp.ne.s32.totalorder %s305, %s308
      %p314 = scmp.eq.s32.totalorder %s33, 0
      %p315 = por %p313, %p314
      %p316 = scmp.ne.s32.totalorder %s305, %s308
      %p317 = scmp.eq.s32.totalorder %s38, 1
      %p318 = por %p316, %p317
      %p319 = scmp.ne.s32.totalorder %s308, %s309
      %p320 = scmp.eq.s32.totalorder %s38, 0
      %p321 = por %p319, %p320
      %p322 = scmp.ne.s32.totalorder %s308, %s309
      %p323 = scmp.eq.s32.totalorder %s39, 1
      %p324 = por %p322, %p323
      %p326 = scmp.ne.s32.totalorder %s309, %s325
      %p327 = scmp.eq.s32.totalorder %s39, 0
      %p328 = por %p326, %p327
      %s329 = sld [smem:[#allocation4 + %s41]]
      %s330 = sld [smem:[#allocation4 + %s48]]
      %s331 = ssub.s32 %s329, %s330
      %p332 = scmp.eq.s32.totalorder %s331, 0
      %s334 = sadd.s32 %s333, 1
      %s335 = scalar_select %p332, %s333, %s334
      %p338 = pneg %p332
      %p339 = scmp.eq.s32.totalorder %s33, 1
      %p340 = por %p338, %p339
      %p341 = scmp.ne.s32.totalorder %s333, %s336
      %p342 = scmp.eq.s32.totalorder %s33, 0
      %p343 = por %p341, %p342
      %p344 = scmp.ne.s32.totalorder %s333, %s336
      %p345 = scmp.eq.s32.totalorder %s38, 1
      %p346 = por %p344, %p345
      %p347 = scmp.ne.s32.totalorder %s336, %s337
      %p348 = scmp.eq.s32.totalorder %s38, 0
      %p349 = por %p347, %p348
      %p350 = scmp.ne.s32.totalorder %s336, %s337
      %p351 = scmp.eq.s32.totalorder %s39, 1
      %p352 = por %p350, %p351
      %p354 = scmp.ne.s32.totalorder %s337, %s353
      %p355 = scmp.eq.s32.totalorder %s39, 0
      %p356 = por %p354, %p355
      %s357 = ssub.s32 %s40, %s52
      %p358 = scmp.eq.s32.totalorder %s357, 0
      %s360 = sadd.s32 %s359, 1
      %s361 = scalar_select %p358, %s359, %s360
      %p364 = pneg %p358
      %p365 = scmp.eq.s32.totalorder %s33, 1
      %p366 = por %p364, %p365
      %p367 = scmp.ne.s32.totalorder %s359, %s362
      %p368 = scmp.eq.s32.totalorder %s33, 0
      %p369 = por %p367, %p368
      %p370 = scmp.ne.s32.totalorder %s359, %s362
      %p371 = scmp.eq.s32.totalorder %s38, 1
      %p372 = por %p370, %p371
      %p373 = scmp.ne.s32.totalorder %s362, %s363
      %p374 = scmp.eq.s32.totalorder %s38, 0
      %p375 = por %p373, %p374
      %p376 = scmp.ne.s32.totalorder %s362, %s363
      %p377 = scmp.eq.s32.totalorder %s39, 1
      %p378 = por %p376, %p377
      %p380 = scmp.ne.s32.totalorder %s363, %s379
      %p381 = scmp.eq.s32.totalorder %s39, 0
      %p382 = por %p380, %p381
      %p383 = scmp.le.s32.totalorder 1, %s33
      %p384 = scmp.lt.s32.totalorder %s33, 3
      %p385 = pnand %p383, %p384
      %p386 = pneg %p385
      // Predicated region
      $region9: #{mapping_network_forward.1} parent=5 // pred_check
        _
      $region10: #{mapping_network_forward.1} parent=5 // pred_check_branch
        %388 = sbr.rel (%p385) target = $region12
      $region11: #{mapping_network_forward.1} parent=5 // pred_region
        %s389 = ssub.s32 %s33, 1
        // Predicated region
        $region13: #{mapping_network_forward.1} parent=11 // pred_check
          %p390 = pneg %p71
        $region14: #{mapping_network_forward.1} parent=11 // pred_check_branch
          %392 = sbr.rel (%p390) target = $region16
        $region15: #{mapping_network_forward.1} parent=11 // pred_region
          %p393 = scmp.lt.s32.totalorder %s42, 0
          %s394 = scalar_select %p393, %s42, 0
          %s395 = smul.addr %s394, 8
          %s396 = scalar_lea.vmem %s2, %s395
        $region16: #{mapping_network_forward.1} parent=11 // pred_fallthru
          _
        // Predicated region
        $region17: #{mapping_network_forward.1} parent=11 // pred_check
          %p397 = pneg %p97
        $region18: #{mapping_network_forward.1} parent=11 // pred_check_branch
          %399 = sbr.rel (%p397) target = $region20
        $region19: #{mapping_network_forward.1} parent=11 // pred_region
          %p400 = scmp.lt.s32.totalorder %s42, 0
          %s401 = scalar_select %p400, %s42, 0
          %s402 = smul.addr %s401, 8
          %s403 = scalar_lea.vmem %s3, %s402
        $region20: #{mapping_network_forward.1} parent=11 // pred_fallthru
          _
        // Predicated region
        $region21: #{mapping_network_forward.1} parent=11 // pred_check
          %p404 = pneg %p118
        $region22: #{mapping_network_forward.1} parent=11 // pred_check_branch
          %406 = sbr.rel (%p404) target = $region24
        $region23: #{mapping_network_forward.1} parent=11 // pred_region
          %s408 = ssub.s32 384, 384
          %409 = vsyncadd [#allocation7], %s408
          %s410 = sshll.u32 [#allocation6], 4
          %s411 = int_to_ptr.vmem [resolvable:$true] %s410
          %416 = dma.hbm_to_vmem [thread:$0]  %s4, 384, %s411, [#allocation7], 192, 192, 12
        $region24: #{mapping_network_forward.1} parent=11 // pred_fallthru
          _
        // Predicated region
        $region25: #{mapping_network_forward.1} parent=11 // pred_check
          %p417 = pneg %p139
        $region26: #{mapping_network_forward.1} parent=11 // pred_check_branch
          %419 = sbr.rel (%p417) target = $region28
        $region27: #{mapping_network_forward.1} parent=11 // pred_region
          %s421 = ssub.s32 48, 48
          %422 = vsyncadd [#allocation9], %s421
          %s424 = sshll.u32 [#allocation8], 4
          %s425 = int_to_ptr.vmem [resolvable:$true] %s424
          %427 = dma.hbm_to_vmem [thread:$0]  %s5, 48, %s425, [#allocation9]
        $region28: #{mapping_network_forward.1} parent=11 // pred_fallthru
          _
        // Predicated region
        $region29: #{mapping_network_forward.1} parent=11 // pred_check
          %p428 = pneg %p160
        $region30: #{mapping_network_forward.1} parent=11 // pred_check_branch
          %430 = sbr.rel (%p428) target = $region32
        $region31: #{mapping_network_forward.1} parent=11 // pred_region
          %s432 = ssub.s32 9216, 9216
          %433 = vsyncadd [#allocation9], %s432
          %s434 = sshll.u32 [#allocation10], 4
          %s435 = int_to_ptr.vmem [resolvable:$true] %s434
          %440 = dma.hbm_to_vmem [thread:$0]  %s6, 9216, %s435, [#allocation9], 192, 192, 12
        $region32: #{mapping_network_forward.1} parent=11 // pred_fallthru
          _
        // Predicated region
        $region33: #{mapping_network_forward.1} parent=11 // pred_check
          %p441 = pneg %p181
        $region34: #{mapping_network_forward.1} parent=11 // pred_check_branch
          %443 = sbr.rel (%p441) target = $region36
        $region35: #{mapping_network_forward.1} parent=11 // pred_region
          %s445 = ssub.s32 48, 48
          %446 = vsyncadd [#allocation12], %s445
          %s448 = sshll.u32 [#allocation11], 4
          %s449 = int_to_ptr.vmem [resolvable:$true] %s448
          %451 = dma.hbm_to_vmem [thread:$0]  %s7, 48, %s449, [#allocation12]
        $region36: #{mapping_network_forward.1} parent=11 // pred_fallthru
          _
        // Predicated region
        $region37: #{mapping_network_forward.1} parent=11 // pred_check
          %p452 = pneg %p202
        $region38: #{mapping_network_forward.1} parent=11 // pred_check_branch
          %454 = sbr.rel (%p452) target = $region40
        $region39: #{mapping_network_forward.1} parent=11 // pred_region
          %s456 = ssub.s32 9216, 9216
          %457 = vsyncadd [#allocation12], %s456
          %s458 = sshll.u32 [#allocation13], 4
          %s459 = int_to_ptr.vmem [resolvable:$true] %s458
          %464 = dma.hbm_to_vmem [thread:$0]  %s8, 9216, %s459, [#allocation12], 192, 192, 12
        $region40: #{mapping_network_forward.1} parent=11 // pred_fallthru
          _
        // Predicated region
        $region41: #{mapping_network_forward.1} parent=11 // pred_check
          %p465 = pneg %p223
        $region42: #{mapping_network_forward.1} parent=11 // pred_check_branch
          %467 = sbr.rel (%p465) target = $region44
        $region43: #{mapping_network_forward.1} parent=11 // pred_region
          %s469 = ssub.s32 48, 48
          %470 = vsyncadd [#allocation15], %s469
          %s472 = sshll.u32 [#allocation14], 4
          %s473 = int_to_ptr.vmem [resolvable:$true] %s472
          %475 = dma.hbm_to_vmem [thread:$0]  %s9, 48, %s473, [#allocation15]
        $region44: #{mapping_network_forward.1} parent=11 // pred_fallthru
          _
        // Predicated region
        $region45: #{mapping_network_forward.1} parent=11 // pred_check
          %p476 = pneg %p244
        $region46: #{mapping_network_forward.1} parent=11 // pred_check_branch
          %478 = sbr.rel (%p476) target = $region48
        $region47: #{mapping_network_forward.1} parent=11 // pred_region
          %s480 = ssub.s32 9216, 9216
          %481 = vsyncadd [#allocation15], %s480
          %s482 = sshll.u32 [#allocation16], 4
          %s483 = int_to_ptr.vmem [resolvable:$true] %s482
          %488 = dma.hbm_to_vmem [thread:$0]  %s10, 9216, %s483, [#allocation15], 192, 192, 12
        $region48: #{mapping_network_forward.1} parent=11 // pred_fallthru
          _
        // Predicated region
        $region49: #{mapping_network_forward.1} parent=11 // pred_check
          %p489 = pneg %p265
        $region50: #{mapping_network_forward.1} parent=11 // pred_check_branch
          %491 = sbr.rel (%p489) target = $region52
        $region51: #{mapping_network_forward.1} parent=11 // pred_region
          %s493 = ssub.s32 48, 48
          %494 = vsyncadd [#allocation18], %s493
          %s496 = sshll.u32 [#allocation17], 4
          %s497 = int_to_ptr.vmem [resolvable:$true] %s496
          %499 = dma.hbm_to_vmem [thread:$0]  %s11, 48, %s497, [#allocation18]
        $region52: #{mapping_network_forward.1} parent=11 // pred_fallthru
          _
      $region12: #{mapping_network_forward.1} parent=5 // pred_fallthru
        _
      %p500 = scmp.lt.s32.totalorder %s33, 2
      // Predicated region
      $region53: #{mapping_network_forward.1} parent=5 // pred_check
        %p501 = pneg %p500
      $region54: #{mapping_network_forward.1} parent=5 // pred_check_branch
        %503 = sbr.rel (%p501) target = $region56
      $region55: #{mapping_network_forward.1} parent=5 // pred_region
        // Predicated region
        $region57: #{mapping_network_forward.1} parent=55 // pred_check
          %p504 = pneg %p287
        $region58: #{mapping_network_forward.1} parent=55 // pred_check_branch
          %506 = sbr.rel (%p504) target = $region60
        $region59: #{mapping_network_forward.1} parent=55 // pred_region
          %s507 = sand.u32 %s33, 1
          %s508 = scalar_lea.sflag [#allocation7], %s507
          %s509 = sand.u32 %s277, 1
          %s510 = smul.addr %s509, 1728
          %s511 = scalar_lea.vmem [#allocation19], %s510
          %s512 = sld [smem:[#allocation4 + %s41]]
          %s514 = ssub.s32 27648, 27648
          %515 = vsyncadd %s508, %s514
          %s516 = smul.addr %s512, 432
          %s517 = smul.addr %s516, 64
          %s518 = scalar_lea.hbm %s12, %s517
          %s519 = sshll.u32 %s511, 4
          %s520 = int_to_ptr.vmem [resolvable:$true] %s519
          %525 = dma.hbm_to_vmem [thread:$0]  %s518, 27648, %s520, %s508, 192, 192, 12
        $region60: #{mapping_network_forward.1} parent=55 // pred_fallthru
          _
        // Predicated region
        $region61: #{mapping_network_forward.1} parent=55 // pred_check
          %p526 = pneg %p315
        $region62: #{mapping_network_forward.1} parent=55 // pred_check_branch
          %528 = sbr.rel (%p526) target = $region64
        $region63: #{mapping_network_forward.1} parent=55 // pred_region
          %s529 = sand.u32 %s33, 1
          %s530 = scalar_lea.sflag [#allocation7], %s529
          %s531 = sand.u32 %s305, 1
          %s532 = smul.addr %s531, 192
          %s533 = scalar_lea.vmem [#allocation20], %s532
          %s534 = sld [smem:[#allocation4 + %s41]]
          %s536 = ssub.s32 3072, 3072
          %537 = vsyncadd %s530, %s536
          %s538 = smul.addr %s534, 48
          %s539 = smul.addr %s538, 64
          %s540 = scalar_lea.hbm %s13, %s539
          %s541 = sshll.u32 %s533, 4
          %s542 = int_to_ptr.vmem [resolvable:$true] %s541
          %547 = dma.hbm_to_vmem [thread:$0]  %s540, 3072, %s542, %s530, 64, 64, 4
        $region64: #{mapping_network_forward.1} parent=55 // pred_fallthru
          _
        // Predicated region
        $region65: #{mapping_network_forward.1} parent=55 // pred_check
          %p548 = pneg %p343
        $region66: #{mapping_network_forward.1} parent=55 // pred_check_branch
          %550 = sbr.rel (%p548) target = $region68
        $region67: #{mapping_network_forward.1} parent=55 // pred_region
          %s551 = sand.u32 %s33, 1
          %s552 = scalar_lea.sflag [#allocation7], %s551
          %s553 = sand.u32 %s333, 1
          %s554 = smul.addr %s553, 12
          %s555 = scalar_lea.vmem [#allocation21], %s554
          %s556 = sld [smem:[#allocation4 + %s41]]
          %s558 = ssub.s32 192, 192
          %559 = vsyncadd %s552, %s558
          %s560 = smul.addr %s556, 3
          %s561 = smul.addr %s560, 64
          %s562 = scalar_lea.hbm %s14, %s561
          %s564 = sshll.u32 %s555, 4
          %s565 = int_to_ptr.vmem [resolvable:$true] %s564
          %567 = dma.hbm_to_vmem [thread:$0]  %s562, 192, %s565, %s552
        $region68: #{mapping_network_forward.1} parent=55 // pred_fallthru
          _
      $region56: #{mapping_network_forward.1} parent=5 // pred_fallthru
        _
      %p568 = scmp.le.s32.totalorder 1, %s33
      %p569 = scmp.lt.s32.totalorder %s33, 3
      %p570 = pnand %p568, %p569
      %p571 = pneg %p570
      // Predicated region
      $region69: #{mapping_network_forward.1} parent=5 // pred_check
        _
      $region70: #{mapping_network_forward.1} parent=5 // pred_check_branch
        %573 = sbr.rel (%p570) target = $region72
      $region71: #{mapping_network_forward.1} parent=5 // pred_region
        %s574 = ssub.s32 %s33, 1
        // Predicated region
        $region73: #{mapping_network_forward.1} parent=71 // pred_check
          %p575 = pneg %p118
        $region74: #{mapping_network_forward.1} parent=71 // pred_check_branch
          %577 = sbr.rel (%p575) target = $region76
        $region75: #{mapping_network_forward.1} parent=71 // pred_region
          %578 = dma.done [#allocation7], 384
        $region76: #{mapping_network_forward.1} parent=71 // pred_fallthru
          _
        // Predicated region
        $region77: #{mapping_network_forward.1} parent=71 // pred_check
          %p579 = pneg %p139
        $region78: #{mapping_network_forward.1} parent=71 // pred_check_branch
          %581 = sbr.rel (%p579) target = $region80
        $region79: #{mapping_network_forward.1} parent=71 // pred_region
          %582 = dma.done [#allocation9], 48
        $region80: #{mapping_network_forward.1} parent=71 // pred_fallthru
          _
        // Predicated region
        $region81: #{mapping_network_forward.1} parent=71 // pred_check
          %p583 = pneg %p160
        $region82: #{mapping_network_forward.1} parent=71 // pred_check_branch
          %585 = sbr.rel (%p583) target = $region84
        $region83: #{mapping_network_forward.1} parent=71 // pred_region
          %586 = dma.done [#allocation9], 9216
        $region84: #{mapping_network_forward.1} parent=71 // pred_fallthru
          _
        // Predicated region
        $region85: #{mapping_network_forward.1} parent=71 // pred_check
          %p587 = pneg %p181
        $region86: #{mapping_network_forward.1} parent=71 // pred_check_branch
          %589 = sbr.rel (%p587) target = $region88
        $region87: #{mapping_network_forward.1} parent=71 // pred_region
          %590 = dma.done [#allocation12], 48
        $region88: #{mapping_network_forward.1} parent=71 // pred_fallthru
          _
        // Predicated region
        $region89: #{mapping_network_forward.1} parent=71 // pred_check
          %p591 = pneg %p202
        $region90: #{mapping_network_forward.1} parent=71 // pred_check_branch
          %593 = sbr.rel (%p591) target = $region92
        $region91: #{mapping_network_forward.1} parent=71 // pred_region
          %594 = dma.done [#allocation12], 9216
        $region92: #{mapping_network_forward.1} parent=71 // pred_fallthru
          _
        // Predicated region
        $region93: #{mapping_network_forward.1} parent=71 // pred_check
          %p595 = pneg %p223
        $region94: #{mapping_network_forward.1} parent=71 // pred_check_branch
          %597 = sbr.rel (%p595) target = $region96
        $region95: #{mapping_network_forward.1} parent=71 // pred_region
          %598 = dma.done [#allocation15], 48
        $region96: #{mapping_network_forward.1} parent=71 // pred_fallthru
          _
        // Predicated region
        $region97: #{mapping_network_forward.1} parent=71 // pred_check
          %p599 = pneg %p244
        $region98: #{mapping_network_forward.1} parent=71 // pred_check_branch
          %601 = sbr.rel (%p599) target = $region100
        $region99: #{mapping_network_forward.1} parent=71 // pred_region
          %602 = dma.done [#allocation15], 9216
        $region100: #{mapping_network_forward.1} parent=71 // pred_fallthru
          _
        // Predicated region
        $region101: #{mapping_network_forward.1} parent=71 // pred_check
          %p603 = pneg %p265
        $region102: #{mapping_network_forward.1} parent=71 // pred_check_branch
          %605 = sbr.rel (%p603) target = $region104
        $region103: #{mapping_network_forward.1} parent=71 // pred_region
          %606 = dma.done [#allocation18], 48
        $region104: #{mapping_network_forward.1} parent=71 // pred_fallthru
          _
        %s607 = sand.u32 %s38, 1
        %s608 = scalar_lea.sflag [#allocation7], %s607
        %s609 = sand.u32 %s280, 1
        %s610 = smul.addr %s609, 1728
        %s611 = scalar_lea.vmem [#allocation19], %s610
        // Predicated region
        $region105: #{mapping_network_forward.1} parent=71 // pred_check
          %p612 = pneg %p293
        $region106: #{mapping_network_forward.1} parent=71 // pred_check_branch
          %614 = sbr.rel (%p612) target = $region108
        $region107: #{mapping_network_forward.1} parent=71 // pred_region
          %615 = dma.done %s608, 27648
        $region108: #{mapping_network_forward.1} parent=71 // pred_fallthru
          _
        %s616 = sand.u32 %s38, 1
        %s617 = scalar_lea.sflag [#allocation7], %s616
        %s618 = sand.u32 %s308, 1
        %s619 = smul.addr %s618, 192
        %s620 = scalar_lea.vmem [#allocation20], %s619
        // Predicated region
        $region109: #{mapping_network_forward.1} parent=71 // pred_check
          %p621 = pneg %p321
        $region110: #{mapping_network_forward.1} parent=71 // pred_check_branch
          %623 = sbr.rel (%p621) target = $region112
        $region111: #{mapping_network_forward.1} parent=71 // pred_region
          %624 = dma.done %s617, 3072
        $region112: #{mapping_network_forward.1} parent=71 // pred_fallthru
          _
        %s625 = sand.u32 %s38, 1
        %s626 = scalar_lea.sflag [#allocation7], %s625
        %s627 = sand.u32 %s336, 1
        %s628 = smul.addr %s627, 12
        %s629 = scalar_lea.vmem [#allocation21], %s628
        // Predicated region
        $region113: #{mapping_network_forward.1} parent=71 // pred_check
          %p630 = pneg %p349
        $region114: #{mapping_network_forward.1} parent=71 // pred_check_branch
          %632 = sbr.rel (%p630) target = $region116
        $region115: #{mapping_network_forward.1} parent=71 // pred_region
          %633 = dma.done %s626, 192
        $region116: #{mapping_network_forward.1} parent=71 // pred_fallthru
          _
        %p634 = scmp.lt.s32.totalorder %s42, 0
        %s635 = scalar_select %p634, %s42, 0
        %s636 = smul.addr %s635, 8
        %s637 = scalar_lea.vmem %s2, %s636
        %p638 = pneg %p71
        %p639 = pneg %p68
        %p640 = scmp.lt.s32.totalorder %s42, 0
        %s641 = scalar_select %p640, %s42, 0
        %s642 = smul.addr %s641, 8
        %s643 = scalar_lea.vmem %s3, %s642
        %p644 = pneg %p97
        %p645 = pneg %p94
        %p646 = pneg %p118
        %p647 = pneg %p115
        %p648 = pneg %p139
        %p649 = pneg %p136
        %p650 = pneg %p160
        %p651 = pneg %p157
        %p652 = pneg %p181
        %p653 = pneg %p178
        %p654 = pneg %p202
        %p655 = pneg %p199
        %p656 = pneg %p223
        %p657 = pneg %p220
        %p658 = pneg %p244
        %p659 = pneg %p241
        %p660 = pneg %p265
        %p661 = pneg %p262
        %s662 = sand.u32 %s38, 1
        %s663 = scalar_lea.sflag [#allocation7], %s662
        %s664 = sand.u32 %s280, 1
        %s665 = smul.addr %s664, 1728
        %s666 = scalar_lea.vmem [#allocation19], %s665
        %p667 = pneg %p293
        %p668 = pneg %p290
        %s669 = sand.u32 %s38, 1
        %s670 = scalar_lea.sflag [#allocation7], %s669
        %s671 = sand.u32 %s308, 1
        %s672 = smul.addr %s671, 192
        %s673 = scalar_lea.vmem [#allocation20], %s672
        %p674 = pneg %p321
        %p675 = pneg %p318
        %s676 = sand.u32 %s38, 1
        %s677 = scalar_lea.sflag [#allocation7], %s676
        %s678 = sand.u32 %s336, 1
        %s679 = smul.addr %s678, 12
        %s680 = scalar_lea.vmem [#allocation21], %s679
        %p681 = pneg %p349
        %p682 = pneg %p346
        %p683 = pneg %p375
        %p684 = pneg %p372
        %p685 = scmp.lt.s32.totalorder %s42, 0
        %s686 = scalar_select %p685, %s42, 0
        %s687 = smul.addr %s686, 8
        %s688 = scalar_lea.vmem %s15, %s687
        %p689 = scmp.lt.s32.totalorder %s42, 0
        %s690 = scalar_select %p689, %s42, 0
        %s691 = smul.addr %s690, 8
        %s692 = scalar_lea.vmem %s2, %s691
        %p693 = scmp.lt.s32.totalorder %s42, 0
        %s694 = scalar_select %p693, %s42, 0
        %s695 = smul.addr %s694, 8
        %s696 = scalar_lea.vmem %s3, %s695
        %s697 = sld [smem:[#allocation4 + %s43]]
        %s698 = sld [smem:[#allocation4 + %s43]]
        %s699 = sld [smem:[#allocation4 + %s43]]
        %p700 = scmp.lt.s32.totalorder %s42, 0
        %s701 = scalar_select %p700, %s42, 0
        %s702 = smul.addr %s701, 8
        %s703 = scalar_lea.vmem %s15, %s702
        %p705 = scmp.eq.s32.totalorder %s43, 0
        // Predicated region
        $region117: #{mapping_network_forward.1} parent=71 // pred_check
          %p706 = pneg %p705
        $region118: #{mapping_network_forward.1} parent=71 // pred_check_branch
          %708 = sbr.rel (%p706) target = $region120
        $region119: #{mapping_network_forward.1} parent=71 // pred_region
          %v709 = vld [vmem:[%s696] sm:$0xff]
          %v710 = vld [vmem:[#allocation6] sm:$0xff]
          %v711 = vld [vmem:[#allocation6 + $0x8] sm:$0xf]
          %v712 = vld [vmem:[#allocation6 + $0xc] sm:$0xff]
          %v713 = vld [vmem:[#allocation6 + $0x14] sm:$0xf]
          %v714 = vld [vmem:[#allocation8] sm:$0x7]
          %v715 = vpack.c.bf16 %v709, %v709
          %v717 = vlaneseq
          %v718 = vshrl.u32 %v717, 7
          %v719 = vsub.s32 0, %v718
          %v720 = vrot.slane %v714, %v719
          %v721 = vlaneseq
          %v722 = vshrl.u32 %v721, 7
          %v723 = vsub.s32 1, %v722
          %v724 = vrot.slane %v714, %v723
          %v725 = vlaneseq
          %v726 = vshrl.u32 %v725, 7
          %v727 = vsub.s32 2, %v726
          %v728 = vrot.slane %v714, %v727
          %v736 = vunpack.c.l.b16 %v710
          %v737 = vunpack.c.h.b16 %v710
          %v738 = vunpack.c.l.b16 %v711
          %v739 = vunpack.c.l.b16 %v712
          %v740 = vunpack.c.h.b16 %v712
          %v741 = vunpack.c.l.b16 %v713
          %v742 = vpack.c.b16 %v739, %v736
          %v743 = vpack.c.b16 %v740, %v737
          %v744 = vpack.c.b16 %v741, %v738
          %vm748 = vcmask 130048
          %v750 = vsel %vm748, %v715, 0
          %752 = vmatprep.subr.bf16.mxu0 %v743
          %753 = vmatpush1.bf16.msra.mxu0 %v742
          %754 = vmatprep.subr.bf16.mxu0 0
          %755 = vmatpush1.bf16.msra.mxu0 0
          %756 = vmatprep.subr.bf16.mxu0 0
          %757 = vmatpush1.bf16.msra.mxu0 0
          %758 = vmatprep.subr.bf16.mxu0 0
          %759 = vmatpush1.bf16.msra.mxu0 0
          %760 = vmatprep.subr.bf16.mxu0 0
          %761 = vmatpush1.bf16.msra.mxu0 0
          %762 = vmatprep.subr.bf16.mxu0 0
          %763 = vmatpush1.bf16.msra.mxu0 0
          %764 = vmatprep.subr.bf16.mxu0 0
          %765 = vmatpush1.bf16.msra.mxu0 0
          %766 = vmatprep.subr.bf16.mxu0 0
          %767 = vmatpush1.bf16.msra.mxu0 0
          %768 = vmatprep.subr.bf16.mxu0 0
          %769 = vmatpush1.bf16.msra.mxu0 0
          %770 = vmatprep.subr.bf16.mxu0 0
          %771 = vmatpush1.bf16.msra.mxu0 0
          %772 = vmatprep.subr.bf16.mxu0 0
          %773 = vmatpush1.bf16.msra.mxu0 0
          %774 = vmatprep.subr.bf16.mxu0 0
          %775 = vmatpush1.bf16.msra.mxu0 0
          %776 = vmatprep.subr.bf16.mxu0 0
          %777 = vmatpush1.bf16.msra.mxu0 0
          %778 = vmatprep.subr.bf16.mxu0 0
          %779 = vmatpush1.bf16.msra.mxu0 0
          %780 = vmatprep.subr.bf16.mxu0 0
          %781 = vmatpush1.bf16.msra.mxu0 0
          %782 = vmatprep.subr.bf16.mxu0 0
          %783 = vmatpush1.bf16.msra.mxu0 0
          %784 = vmatprep.mubr.bf16.mxu0 0
          %785 = vmatmul.mubr.bf16.gmra.mrb[0].mxu0 %v750
          %v786 = vpop.f32.mrb[0].mxu0
          %v787 = vadd.f32 %v720, %v786
          %v788 = vpop.f32.mrb[0].mxu0
          %v789 = vadd.f32 %v724, %v788
          %v790 = vpop.f32.mrb[0].mxu0
          %v791 = vpop.f32.mrb[0].mxu0
          %792 = vdwg.mxu0
          %793 = vmatprep.subr.bf16.mxu0 0
          %794 = vmatpush1.bf16.msra.mxu0 %v744
          %795 = vmatprep.subr.bf16.mxu0 0
          %796 = vmatpush1.bf16.msra.mxu0 0
          %797 = vmatprep.subr.bf16.mxu0 0
          %798 = vmatpush1.bf16.msra.mxu0 0
          %799 = vmatprep.subr.bf16.mxu0 0
          %800 = vmatpush1.bf16.msra.mxu0 0
          %801 = vmatprep.subr.bf16.mxu0 0
          %802 = vmatpush1.bf16.msra.mxu0 0
          %803 = vmatprep.subr.bf16.mxu0 0
          %804 = vmatpush1.bf16.msra.mxu0 0
          %805 = vmatprep.subr.bf16.mxu0 0
          %806 = vmatpush1.bf16.msra.mxu0 0
          %807 = vmatprep.subr.bf16.mxu0 0
          %808 = vmatpush1.bf16.msra.mxu0 0
          %809 = vmatprep.subr.bf16.mxu0 0
          %810 = vmatpush1.bf16.msra.mxu0 0
          %811 = vmatprep.subr.bf16.mxu0 0
          %812 = vmatpush1.bf16.msra.mxu0 0
          %813 = vmatprep.subr.bf16.mxu0 0
          %814 = vmatpush1.bf16.msra.mxu0 0
          %815 = vmatprep.subr.bf16.mxu0 0
          %816 = vmatpush1.bf16.msra.mxu0 0
          %817 = vmatprep.subr.bf16.mxu0 0
          %818 = vmatpush1.bf16.msra.mxu0 0
          %819 = vmatprep.subr.bf16.mxu0 0
          %820 = vmatpush1.bf16.msra.mxu0 0
          %821 = vmatprep.subr.bf16.mxu0 0
          %822 = vmatpush1.bf16.msra.mxu0 0
          %823 = vmatprep.subr.bf16.mxu0 0
          %824 = vmatpush1.bf16.msra.mxu0 0
          %825 = vmatprep.mubr.bf16.mxu0 0
          %826 = vmatmul.mubr.bf16.gmra.mrb[0].mxu0 %v750
          %v827 = vpop.f32.mrb[0].mxu0
          %v828 = vadd.f32 %v728, %v827
          %v829 = vpop.f32.mrb[0].mxu0
          %v830 = vpop.f32.mrb[0].mxu0
          %v831 = vpop.f32.mrb[0].mxu0
          %832 = vdwg.mxu0
          %v833 = vmax.f32 %v787, 0.0
          %v834 = vmax.f32 %v789, 0.0
          %v835 = vmax.f32 %v828, 0.0
          %v836 = vld [vmem:[#allocation10] sm:$0xff]
          %v837 = vld [vmem:[#allocation10 + $0x8] sm:$0xf]
          %v838 = vld [vmem:[#allocation10 + $0xc] sm:$0xff]
          %v839 = vld [vmem:[#allocation10 + $0x14] sm:$0xf]
          %v840 = vld [vmem:[#allocation10 + $0x18] sm:$0xff]
          %v841 = vld [vmem:[#allocation10 + $0x20] sm:$0xf]
          %v842 = vld [vmem:[#allocation10 + $0x24] sm:$0xff]
          %v843 = vld [vmem:[#allocation10 + $0x2c] sm:$0xf]
          %v844 = vld [vmem:[#allocation10 + $0x30] sm:$0xff]
          %v845 = vld [vmem:[#allocation10 + $0x38] sm:$0xf]
          %v846 = vld [vmem:[#allocation10 + $0x3c] sm:$0xff]
          %v847 = vld [vmem:[#allocation10 + $0x44] sm:$0xf]
          %v848 = vld [vmem:[#allocation10 + $0x48] sm:$0xff]
          %v849 = vld [vmem:[#allocation10 + $0x50] sm:$0xf]
          %v850 = vld [vmem:[#allocation10 + $0x54] sm:$0xff]
          %v851 = vld [vmem:[#allocation10 + $0x5c] sm:$0xf]
          %v852 = vld [vmem:[#allocation10 + $0x60] sm:$0xff]
          %v853 = vld [vmem:[#allocation10 + $0x68] sm:$0xf]
          %v854 = vld [vmem:[#allocation10 + $0x6c] sm:$0xff]
          %v855 = vld [vmem:[#allocation10 + $0x74] sm:$0xf]
          %v856 = vld [vmem:[#allocation10 + $0x78] sm:$0xff]
          %v857 = vld [vmem:[#allocation10 + $0x80] sm:$0xf]
          %v858 = vld [vmem:[#allocation10 + $0x84] sm:$0xff]
          %v859 = vld [vmem:[#allocation10 + $0x8c] sm:$0xf]
          %v860 = vld [vmem:[#allocation10 + $0x90] sm:$0xff]
          %v861 = vld [vmem:[#allocation10 + $0x98] sm:$0xf]
          %v862 = vld [vmem:[#allocation10 + $0x9c] sm:$0xff]
          %v863 = vld [vmem:[#allocation10 + $0xa4] sm:$0xf]
          %v864 = vld [vmem:[#allocation10 + $0xa8] sm:$0xff]
          %v865 = vld [vmem:[#allocation10 + $0xb0] sm:$0xf]
          %v866 = vld [vmem:[#allocation10 + $0xb4] sm:$0xff]
          %v867 = vld [vmem:[#allocation10 + $0xbc] sm:$0xf]
          %v868 = vld [vmem:[#allocation10 + $0xc0] sm:$0xff]
          %v869 = vld [vmem:[#allocation10 + $0xc8] sm:$0xf]
          %v870 = vld [vmem:[#allocation10 + $0xcc] sm:$0xff]
          %v871 = vld [vmem:[#allocation10 + $0xd4] sm:$0xf]
          %v872 = vld [vmem:[#allocation10 + $0xd8] sm:$0xff]
          %v873 = vld [vmem:[#allocation10 + $0xe0] sm:$0xf]
          %v874 = vld [vmem:[#allocation10 + $0xe4] sm:$0xff]
          %v875 = vld [vmem:[#allocation10 + $0xec] sm:$0xf]
          %v876 = vld [vmem:[#allocation10 + $0xf0] sm:$0xff]
          %v877 = vld [vmem:[#allocation10 + $0xf8] sm:$0xf]
          %v878 = vld [vmem:[#allocation10 + $0xfc] sm:$0xff]
          %v879 = vld [vmem:[#allocation10 + $0x104] sm:$0xf]
          %v880 = vld [vmem:[#allocation10 + $0x108] sm:$0xff]
          %v881 = vld [vmem:[#allocation10 + $0x110] sm:$0xf]
          %v882 = vld [vmem:[#allocation10 + $0x114] sm:$0xff]
          %v883 = vld [vmem:[#allocation10 + $0x11c] sm:$0xf]
          %v884 = vld [vmem:[#allocation10 + $0x120] sm:$0xff]
          %v885 = vld [vmem:[#allocation10 + $0x128] sm:$0xf]
          %v886 = vld [vmem:[#allocation10 + $0x12c] sm:$0xff]
          %v887 = vld [vmem:[#allocation10 + $0x134] sm:$0xf]
          %v888 = vld [vmem:[#allocation10 + $0x138] sm:$0xff]
          %v889 = vld [vmem:[#allocation10 + $0x140] sm:$0xf]
          %v890 = vld [vmem:[#allocation10 + $0x144] sm:$0xff]
          %v891 = vld [vmem:[#allocation10 + $0x14c] sm:$0xf]
          %v892 = vld [vmem:[#allocation10 + $0x150] sm:$0xff]
          %v893 = vld [vmem:[#allocation10 + $0x158] sm:$0xf]
          %v894 = vld [vmem:[#allocation10 + $0x15c] sm:$0xff]
          %v895 = vld [vmem:[#allocation10 + $0x164] sm:$0xf]
          %v896 = vld [vmem:[#allocation10 + $0x168] sm:$0xff]
          %v897 = vld [vmem:[#allocation10 + $0x170] sm:$0xf]
          %v898 = vld [vmem:[#allocation10 + $0x174] sm:$0xff]
          %v899 = vld [vmem:[#allocation10 + $0x17c] sm:$0xf]
          %v900 = vld [vmem:[#allocation10 + $0x180] sm:$0xff]
          %v901 = vld [vmem:[#allocation10 + $0x188] sm:$0xf]
          %v902 = vld [vmem:[#allocation10 + $0x18c] sm:$0xff]
          %v903 = vld [vmem:[#allocation10 + $0x194] sm:$0xf]
          %v904 = vld [vmem:[#allocation10 + $0x198] sm:$0xff]
          %v905 = vld [vmem:[#allocation10 + $0x1a0] sm:$0xf]
          %v906 = vld [vmem:[#allocation10 + $0x1a4] sm:$0xff]
          %v907 = vld [vmem:[#allocation10 + $0x1ac] sm:$0xf]
          %v908 = vld [vmem:[#allocation10 + $0x1b0] sm:$0xff]
          %v909 = vld [vmem:[#allocation10 + $0x1b8] sm:$0xf]
          %v910 = vld [vmem:[#allocation10 + $0x1bc] sm:$0xff]
          %v911 = vld [vmem:[#allocation10 + $0x1c4] sm:$0xf]
          %v912 = vld [vmem:[#allocation10 + $0x1c8] sm:$0xff]
          %v913 = vld [vmem:[#allocation10 + $0x1d0] sm:$0xf]
          %v914 = vld [vmem:[#allocation10 + $0x1d4] sm:$0xff]
          %v915 = vld [vmem:[#allocation10 + $0x1dc] sm:$0xf]
          %v916 = vld [vmem:[#allocation10 + $0x1e0] sm:$0xff]
          %v917 = vld [vmem:[#allocation10 + $0x1e8] sm:$0xf]
          %v918 = vld [vmem:[#allocation10 + $0x1ec] sm:$0xff]
          %v919 = vld [vmem:[#allocation10 + $0x1f4] sm:$0xf]
          %v920 = vld [vmem:[#allocation10 + $0x1f8] sm:$0xff]
          %v921 = vld [vmem:[#allocation10 + $0x200] sm:$0xf]
          %v922 = vld [vmem:[#allocation10 + $0x204] sm:$0xff]
          %v923 = vld [vmem:[#allocation10 + $0x20c] sm:$0xf]
          %v924 = vld [vmem:[#allocation10 + $0x210] sm:$0xff]
          %v925 = vld [vmem:[#allocation10 + $0x218] sm:$0xf]
          %v926 = vld [vmem:[#allocation10 + $0x21c] sm:$0xff]
          %v927 = vld [vmem:[#allocation10 + $0x224] sm:$0xf]
          %v928 = vld [vmem:[#allocation10 + $0x228] sm:$0xff]
          %v929 = vld [vmem:[#allocation10 + $0x230] sm:$0xf]
          %v930 = vld [vmem:[#allocation10 + $0x234] sm:$0xff]
          %v931 = vld [vmem:[#allocation10 + $0x23c] sm:$0xf]
          %v932 = vld [vmem:[#allocation11] sm:$0x7]
          %v933 = vpack.c.bf16 %v833, %v833
          %v934 = vpack.c.bf16 %v834, %v834
          %v935 = vpack.c.bf16 %v835, %v835
          %v937 = vlaneseq
          %v938 = vshrl.u32 %v937, 7
          %v939 = vsub.s32 0, %v938
          %v940 = vrot.slane %v932, %v939
          %v941 = vlaneseq
          %v942 = vshrl.u32 %v941, 7
          %v943 = vsub.s32 1, %v942
          %v944 = vrot.slane %v932, %v943
          %v945 = vlaneseq
          %v946 = vshrl.u32 %v945, 7
          %v947 = vsub.s32 2, %v946
          %v948 = vrot.slane %v932, %v947
          %v1048 = vunpack.c.l.b16 %v836
          %v1049 = vunpack.c.h.b16 %v836
          %v1050 = vunpack.c.l.b16 %v837
          %v1051 = vunpack.c.l.b16 %v838
          %v1052 = vunpack.c.h.b16 %v838
          %v1053 = vunpack.c.l.b16 %v839
          %v1054 = vunpack.c.l.b16 %v840
          %v1055 = vunpack.c.h.b16 %v840
          %v1056 = vunpack.c.l.b16 %v841
          %v1057 = vunpack.c.l.b16 %v842
          %v1058 = vunpack.c.h.b16 %v842
          %v1059 = vunpack.c.l.b16 %v843
          %v1060 = vunpack.c.l.b16 %v844
          %v1061 = vunpack.c.h.b16 %v844
          %v1062 = vunpack.c.l.b16 %v845
          %v1063 = vunpack.c.l.b16 %v846
          %v1064 = vunpack.c.h.b16 %v846
          %v1065 = vunpack.c.l.b16 %v847
          %v1066 = vunpack.c.l.b16 %v848
          %v1067 = vunpack.c.h.b16 %v848
          %v1068 = vunpack.c.l.b16 %v849
          %v1069 = vunpack.c.l.b16 %v850
          %v1070 = vunpack.c.h.b16 %v850
          %v1071 = vunpack.c.l.b16 %v851
          %v1072 = vunpack.c.l.b16 %v852
          %v1073 = vunpack.c.h.b16 %v852
          %v1074 = vunpack.c.l.b16 %v853
          %v1075 = vunpack.c.l.b16 %v854
          %v1076 = vunpack.c.h.b16 %v854
          %v1077 = vunpack.c.l.b16 %v855
          %v1078 = vunpack.c.l.b16 %v856
          %v1079 = vunpack.c.h.b16 %v856
          %v1080 = vunpack.c.l.b16 %v857
          %v1081 = vunpack.c.l.b16 %v858
          %v1082 = vunpack.c.h.b16 %v858
          %v1083 = vunpack.c.l.b16 %v859
          %v1084 = vunpack.c.l.b16 %v860
          %v1085 = vunpack.c.h.b16 %v860
          %v1086 = vunpack.c.l.b16 %v861
          %v1087 = vunpack.c.l.b16 %v862
          %v1088 = vunpack.c.h.b16 %v862
          %v1089 = vunpack.c.l.b16 %v863
          %v1090 = vunpack.c.l.b16 %v864
          %v1091 = vunpack.c.h.b16 %v864
          %v1092 = vunpack.c.l.b16 %v865
          %v1093 = vunpack.c.l.b16 %v866
          %v1094 = vunpack.c.h.b16 %v866
          %v1095 = vunpack.c.l.b16 %v867
          %v1096 = vunpack.c.l.b16 %v868
          %v1097 = vunpack.c.h.b16 %v868
          %v1098 = vunpack.c.l.b16 %v869
          %v1099 = vunpack.c.l.b16 %v870
          %v1100 = vunpack.c.h.b16 %v870
          %v1101 = vunpack.c.l.b16 %v871
          %v1102 = vunpack.c.l.b16 %v872
          %v1103 = vunpack.c.h.b16 %v872
          %v1104 = vunpack.c.l.b16 %v873
          %v1105 = vunpack.c.l.b16 %v874
          %v1106 = vunpack.c.h.b16 %v874
          %v1107 = vunpack.c.l.b16 %v875
          %v1108 = vunpack.c.l.b16 %v876
          %v1109 = vunpack.c.h.b16 %v876
          %v1110 = vunpack.c.l.b16 %v877
          %v1111 = vunpack.c.l.b16 %v878
          %v1112 = vunpack.c.h.b16 %v878
          %v1113 = vunpack.c.l.b16 %v879
          %v1114 = vunpack.c.l.b16 %v880
          %v1115 = vunpack.c.h.b16 %v880
          %v1116 = vunpack.c.l.b16 %v881
          %v1117 = vunpack.c.l.b16 %v882
          %v1118 = vunpack.c.h.b16 %v882
          %v1119 = vunpack.c.l.b16 %v883
          %v1120 = vunpack.c.l.b16 %v884
          %v1121 = vunpack.c.h.b16 %v884
          %v1122 = vunpack.c.l.b16 %v885
          %v1123 = vunpack.c.l.b16 %v886
          %v1124 = vunpack.c.h.b16 %v886
          %v1125 = vunpack.c.l.b16 %v887
          %v1126 = vunpack.c.l.b16 %v888
          %v1127 = vunpack.c.h.b16 %v888
          %v1128 = vunpack.c.l.b16 %v889
          %v1129 = vunpack.c.l.b16 %v890
          %v1130 = vunpack.c.h.b16 %v890
          %v1131 = vunpack.c.l.b16 %v891
          %v1132 = vunpack.c.l.b16 %v892
          %v1133 = vunpack.c.h.b16 %v892
          %v1134 = vunpack.c.l.b16 %v893
          %v1135 = vunpack.c.l.b16 %v894
          %v1136 = vunpack.c.h.b16 %v894
          %v1137 = vunpack.c.l.b16 %v895
          %v1138 = vunpack.c.l.b16 %v896
          %v1139 = vunpack.c.h.b16 %v896
          %v1140 = vunpack.c.l.b16 %v897
          %v1141 = vunpack.c.l.b16 %v898
          %v1142 = vunpack.c.h.b16 %v898
          %v1143 = vunpack.c.l.b16 %v899
          %v1144 = vunpack.c.l.b16 %v900
          %v1145 = vunpack.c.h.b16 %v900
          %v1146 = vunpack.c.l.b16 %v901
          %v1147 = vunpack.c.l.b16 %v902
          %v1148 = vunpack.c.h.b16 %v902
          %v1149 = vunpack.c.l.b16 %v903
          %v1150 = vunpack.c.l.b16 %v904
          %v1151 = vunpack.c.h.b16 %v904
          %v1152 = vunpack.c.l.b16 %v905
          %v1153 = vunpack.c.l.b16 %v906
          %v1154 = vunpack.c.h.b16 %v906
          %v1155 = vunpack.c.l.b16 %v907
          %v1156 = vunpack.c.l.b16 %v908
          %v1157 = vunpack.c.h.b16 %v908
          %v1158 = vunpack.c.l.b16 %v909
          %v1159 = vunpack.c.l.b16 %v910
          %v1160 = vunpack.c.h.b16 %v910
          %v1161 = vunpack.c.l.b16 %v911
          %v1162 = vunpack.c.l.b16 %v912
          %v1163 = vunpack.c.h.b16 %v912
          %v1164 = vunpack.c.l.b16 %v913
          %v1165 = vunpack.c.l.b16 %v914
          %v1166 = vunpack.c.h.b16 %v914
          %v1167 = vunpack.c.l.b16 %v915
          %v1168 = vunpack.c.l.b16 %v916
          %v1169 = vunpack.c.h.b16 %v916
          %v1170 = vunpack.c.l.b16 %v917
          %v1171 = vunpack.c.l.b16 %v918
          %v1172 = vunpack.c.h.b16 %v918
          %v1173 = vunpack.c.l.b16 %v919
          %v1174 = vunpack.c.l.b16 %v920
          %v1175 = vunpack.c.h.b16 %v920
          %v1176 = vunpack.c.l.b16 %v921
          %v1177 = vunpack.c.l.b16 %v922
          %v1178 = vunpack.c.h.b16 %v922
          %v1179 = vunpack.c.l.b16 %v923
          %v1180 = vunpack.c.l.b16 %v924
          %v1181 = vunpack.c.h.b16 %v924
          %v1182 = vunpack.c.l.b16 %v925
          %v1183 = vunpack.c.l.b16 %v926
          %v1184 = vunpack.c.h.b16 %v926
          %v1185 = vunpack.c.l.b16 %v927
          %v1186 = vunpack.c.l.b16 %v928
          %v1187 = vunpack.c.h.b16 %v928
          %v1188 = vunpack.c.l.b16 %v929
          %v1189 = vunpack.c.l.b16 %v930
          %v1190 = vunpack.c.h.b16 %v930
          %v1191 = vunpack.c.l.b16 %v931
          %v1192 = vpack.c.b16 %v1051, %v1048
          %v1193 = vpack.c.b16 %v1052, %v1049
          %v1194 = vpack.c.b16 %v1053, %v1050
          %v1195 = vpack.c.b16 %v1057, %v1054
          %v1196 = vpack.c.b16 %v1058, %v1055
          %v1197 = vpack.c.b16 %v1059, %v1056
          %v1198 = vpack.c.b16 %v1063, %v1060
          %v1199 = vpack.c.b16 %v1064, %v1061
          %v1200 = vpack.c.b16 %v1065, %v1062
          %v1201 = vpack.c.b16 %v1069, %v1066
          %v1202 = vpack.c.b16 %v1070, %v1067
          %v1203 = vpack.c.b16 %v1071, %v1068
          %v1204 = vpack.c.b16 %v1075, %v1072
          %v1205 = vpack.c.b16 %v1076, %v1073
          %v1206 = vpack.c.b16 %v1077, %v1074
          %v1207 = vpack.c.b16 %v1081, %v1078
          %v1208 = vpack.c.b16 %v1082, %v1079
          %v1209 = vpack.c.b16 %v1083, %v1080
          %v1210 = vpack.c.b16 %v1087, %v1084
          %v1211 = vpack.c.b16 %v1088, %v1085
          %v1212 = vpack.c.b16 %v1089, %v1086
          %v1213 = vpack.c.b16 %v1093, %v1090
          %v1214 = vpack.c.b16 %v1094, %v1091
          %v1215 = vpack.c.b16 %v1095, %v1092
          %v1216 = vpack.c.b16 %v1099, %v1096
          %v1217 = vpack.c.b16 %v1100, %v1097
          %v1218 = vpack.c.b16 %v1101, %v1098
          %v1219 = vpack.c.b16 %v1105, %v1102
          %v1220 = vpack.c.b16 %v1106, %v1103
          %v1221 = vpack.c.b16 %v1107, %v1104
          %v1222 = vpack.c.b16 %v1111, %v1108
          %v1223 = vpack.c.b16 %v1112, %v1109
          %v1224 = vpack.c.b16 %v1113, %v1110
          %v1225 = vpack.c.b16 %v1117, %v1114
          %v1226 = vpack.c.b16 %v1118, %v1115
          %v1227 = vpack.c.b16 %v1119, %v1116
          %v1228 = vpack.c.b16 %v1123, %v1120
          %v1229 = vpack.c.b16 %v1124, %v1121
          %v1230 = vpack.c.b16 %v1125, %v1122
          %v1231 = vpack.c.b16 %v1129, %v1126
          %v1232 = vpack.c.b16 %v1130, %v1127
          %v1233 = vpack.c.b16 %v1131, %v1128
          %v1234 = vpack.c.b16 %v1135, %v1132
          %v1235 = vpack.c.b16 %v1136, %v1133
          %v1236 = vpack.c.b16 %v1137, %v1134
          %v1237 = vpack.c.b16 %v1141, %v1138
          %v1238 = vpack.c.b16 %v1142, %v1139
          %v1239 = vpack.c.b16 %v1143, %v1140
          %v1240 = vpack.c.b16 %v1147, %v1144
          %v1241 = vpack.c.b16 %v1148, %v1145
          %v1242 = vpack.c.b16 %v1149, %v1146
          %v1243 = vpack.c.b16 %v1153, %v1150
          %v1244 = vpack.c.b16 %v1154, %v1151
          %v1245 = vpack.c.b16 %v1155, %v1152
          %v1246 = vpack.c.b16 %v1159, %v1156
          %v1247 = vpack.c.b16 %v1160, %v1157
          %v1248 = vpack.c.b16 %v1161, %v1158
          %v1249 = vpack.c.b16 %v1165, %v1162
          %v1250 = vpack.c.b16 %v1166, %v1163
          %v1251 = vpack.c.b16 %v1167, %v1164
          %v1252 = vpack.c.b16 %v1171, %v1168
          %v1253 = vpack.c.b16 %v1172, %v1169
          %v1254 = vpack.c.b16 %v1173, %v1170
          %v1255 = vpack.c.b16 %v1177, %v1174
          %v1256 = vpack.c.b16 %v1178, %v1175
          %v1257 = vpack.c.b16 %v1179, %v1176
          %v1258 = vpack.c.b16 %v1183, %v1180
          %v1259 = vpack.c.b16 %v1184, %v1181
          %v1260 = vpack.c.b16 %v1185, %v1182
          %v1261 = vpack.c.b16 %v1189, %v1186
          %v1262 = vpack.c.b16 %v1190, %v1187
          %v1263 = vpack.c.b16 %v1191, %v1188
          %1336 = vmatprep.subr.bf16.mxu0 %v1193
          %1337 = vmatpush1.bf16.msra.mxu0 %v1192
          %1338 = vmatprep.subr.bf16.mxu0 %v1196
          %1339 = vmatpush1.bf16.msra.mxu0 %v1195
          %1340 = vmatprep.subr.bf16.mxu0 %v1199
          %1341 = vmatpush1.bf16.msra.mxu0 %v1198
          %1342 = vmatprep.subr.bf16.mxu0 %v1202
          %1343 = vmatpush1.bf16.msra.mxu0 %v1201
          %1344 = vmatprep.subr.bf16.mxu0 %v1205
          %1345 = vmatpush1.bf16.msra.mxu0 %v1204
          %1346 = vmatprep.subr.bf16.mxu0 %v1208
          %1347 = vmatpush1.bf16.msra.mxu0 %v1207
          %1348 = vmatprep.subr.bf16.mxu0 %v1211
          %1349 = vmatpush1.bf16.msra.mxu0 %v1210
          %1350 = vmatprep.subr.bf16.mxu0 %v1214
          %1351 = vmatpush1.bf16.msra.mxu0 %v1213
          %1352 = vmatprep.subr.bf16.mxu0 %v1217
          %1353 = vmatpush1.bf16.msra.mxu0 %v1216
          %1354 = vmatprep.subr.bf16.mxu0 %v1220
          %1355 = vmatpush1.bf16.msra.mxu0 %v1219
          %1356 = vmatprep.subr.bf16.mxu0 %v1223
          %1357 = vmatpush1.bf16.msra.mxu0 %v1222
          %1358 = vmatprep.subr.bf16.mxu0 %v1226
          %1359 = vmatpush1.bf16.msra.mxu0 %v1225
          %1360 = vmatprep.subr.bf16.mxu0 %v1229
          %1361 = vmatpush1.bf16.msra.mxu0 %v1228
          %1362 = vmatprep.subr.bf16.mxu0 %v1232
          %1363 = vmatpush1.bf16.msra.mxu0 %v1231
          %1364 = vmatprep.subr.bf16.mxu0 %v1235
          %1365 = vmatpush1.bf16.msra.mxu0 %v1234
          %1366 = vmatprep.subr.bf16.mxu0 %v1238
          %1367 = vmatpush1.bf16.msra.mxu0 %v1237
          %1368 = vmatprep.mubr.bf16.mxu0 %v934
          %1369 = vmatmul.mubr.bf16.gmra.mrb[0].mxu0 %v933
          %v1370 = vpop.f32.mrb[0].mxu0
          %v1371 = vadd.f32 %v940, %v1370
          %v1372 = vpop.f32.mrb[0].mxu0
          %v1373 = vadd.f32 %v944, %v1372
          %v1374 = vpop.f32.mrb[0].mxu0
          %v1375 = vpop.f32.mrb[0].mxu0
          %1376 = vdwg.mxu0
          %1377 = vmatprep.subr.bf16.mxu0 %v1241
          %1378 = vmatpush1.bf16.msra.mxu0 %v1240
          %1379 = vmatprep.subr.bf16.mxu0 %v1244
          %1380 = vmatpush1.bf16.msra.mxu0 %v1243
          %1381 = vmatprep.subr.bf16.mxu0 %v1247
          %1382 = vmatpush1.bf16.msra.mxu0 %v1246
          %1383 = vmatprep.subr.bf16.mxu0 %v1250
          %1384 = vmatpush1.bf16.msra.mxu0 %v1249
          %1385 = vmatprep.subr.bf16.mxu0 %v1253
          %1386 = vmatpush1.bf16.msra.mxu0 %v1252
          %1387 = vmatprep.subr.bf16.mxu0 %v1256
          %1388 = vmatpush1.bf16.msra.mxu0 %v1255
          %1389 = vmatprep.subr.bf16.mxu0 %v1259
          %1390 = vmatpush1.bf16.msra.mxu0 %v1258
          %1391 = vmatprep.subr.bf16.mxu0 %v1262
          %1392 = vmatpush1.bf16.msra.mxu0 %v1261
          %1393 = vmatprep.subr.bf16.mxu0 0
          %1394 = vmatpush1.bf16.msra.mxu0 0
          %1395 = vmatprep.subr.bf16.mxu0 0
          %1396 = vmatpush1.bf16.msra.mxu0 0
          %1397 = vmatprep.subr.bf16.mxu0 0
          %1398 = vmatpush1.bf16.msra.mxu0 0
          %1399 = vmatprep.subr.bf16.mxu0 0
          %1400 = vmatpush1.bf16.msra.mxu0 0
          %1401 = vmatprep.subr.bf16.mxu0 0
          %1402 = vmatpush1.bf16.msra.mxu0 0
          %1403 = vmatprep.subr.bf16.mxu0 0
          %1404 = vmatpush1.bf16.msra.mxu0 0
          %1405 = vmatprep.subr.bf16.mxu0 0
          %1406 = vmatpush1.bf16.msra.mxu0 0
          %1407 = vmatprep.subr.bf16.mxu0 0
          %1408 = vmatpush1.bf16.msra.mxu0 0
          %1409 = vmatprep.mubr.bf16.mxu0 0
          %1410 = vmatmul.mubr.bf16.gmra.mrb[0].mxu0 %v935
          %v1411 = vpop.f32.mrb[0].mxu0
          %v1412 = vadd.f32 %v1371, %v1411
          %v1413 = vpop.f32.mrb[0].mxu0
          %v1414 = vadd.f32 %v1373, %v1413
          %v1415 = vpop.f32.mrb[0].mxu0
          %v1416 = vpop.f32.mrb[0].mxu0
          %1417 = vdwg.mxu0
          %1418 = vmatprep.subr.bf16.mxu0 0
          %1419 = vmatpush1.bf16.msra.mxu0 %v1194
          %1420 = vmatprep.subr.bf16.mxu0 0
          %1421 = vmatpush1.bf16.msra.mxu0 %v1197
          %1422 = vmatprep.subr.bf16.mxu0 0
          %1423 = vmatpush1.bf16.msra.mxu0 %v1200
          %1424 = vmatprep.subr.bf16.mxu0 0
          %1425 = vmatpush1.bf16.msra.mxu0 %v1203
          %1426 = vmatprep.subr.bf16.mxu0 0
          %1427 = vmatpush1.bf16.msra.mxu0 %v1206
          %1428 = vmatprep.subr.bf16.mxu0 0
          %1429 = vmatpush1.bf16.msra.mxu0 %v1209
          %1430 = vmatprep.subr.bf16.mxu0 0
          %1431 = vmatpush1.bf16.msra.mxu0 %v1212
          %1432 = vmatprep.subr.bf16.mxu0 0
          %1433 = vmatpush1.bf16.msra.mxu0 %v1215
          %1434 = vmatprep.subr.bf16.mxu0 0
          %1435 = vmatpush1.bf16.msra.mxu0 %v1218
          %1436 = vmatprep.subr.bf16.mxu0 0
          %1437 = vmatpush1.bf16.msra.mxu0 %v1221
          %1438 = vmatprep.subr.bf16.mxu0 0
          %1439 = vmatpush1.bf16.msra.mxu0 %v1224
          %1440 = vmatprep.subr.bf16.mxu0 0
          %1441 = vmatpush1.bf16.msra.mxu0 %v1227
          %1442 = vmatprep.subr.bf16.mxu0 0
          %1443 = vmatpush1.bf16.msra.mxu0 %v1230
          %1444 = vmatprep.subr.bf16.mxu0 0
          %1445 = vmatpush1.bf16.msra.mxu0 %v1233
          %1446 = vmatprep.subr.bf16.mxu0 0
          %1447 = vmatpush1.bf16.msra.mxu0 %v1236
          %1448 = vmatprep.subr.bf16.mxu0 0
          %1449 = vmatpush1.bf16.msra.mxu0 %v1239
          %1450 = vmatprep.mubr.bf16.mxu0 %v934
          %1451 = vmatmul.mubr.bf16.gmra.mrb[0].mxu0 %v933
          %v1452 = vpop.f32.mrb[0].mxu0
          %v1453 = vadd.f32 %v948, %v1452
          %v1454 = vpop.f32.mrb[0].mxu0
          %v1455 = vpop.f32.mrb[0].mxu0
          %v1456 = vpop.f32.mrb[0].mxu0
          %1457 = vdwg.mxu0
          %1458 = vmatprep.subr.bf16.mxu0 0
          %1459 = vmatpush1.bf16.msra.mxu0 %v1242
          %1460 = vmatprep.subr.bf16.mxu0 0
          %1461 = vmatpush1.bf16.msra.mxu0 %v1245
          %1462 = vmatprep.subr.bf16.mxu0 0
          %1463 = vmatpush1.bf16.msra.mxu0 %v1248
          %1464 = vmatprep.subr.bf16.mxu0 0
          %1465 = vmatpush1.bf16.msra.mxu0 %v1251
          %1466 = vmatprep.subr.bf16.mxu0 0
          %1467 = vmatpush1.bf16.msra.mxu0 %v1254
          %1468 = vmatprep.subr.bf16.mxu0 0
          %1469 = vmatpush1.bf16.msra.mxu0 %v1257
          %1470 = vmatprep.subr.bf16.mxu0 0
          %1471 = vmatpush1.bf16.msra.mxu0 %v1260
          %1472 = vmatprep.subr.bf16.mxu0 0
          %1473 = vmatpush1.bf16.msra.mxu0 %v1263
          %1474 = vmatprep.subr.bf16.mxu0 0
          %1475 = vmatpush1.bf16.msra.mxu0 0
          %1476 = vmatprep.subr.bf16.mxu0 0
          %1477 = vmatpush1.bf16.msra.mxu0 0
          %1478 = vmatprep.subr.bf16.mxu0 0
          %1479 = vmatpush1.bf16.msra.mxu0 0
          %1480 = vmatprep.subr.bf16.mxu0 0
          %1481 = vmatpush1.bf16.msra.mxu0 0
          %1482 = vmatprep.subr.bf16.mxu0 0
          %1483 = vmatpush1.bf16.msra.mxu0 0
          %1484 = vmatprep.subr.bf16.mxu0 0
          %1485 = vmatpush1.bf16.msra.mxu0 0
          %1486 = vmatprep.subr.bf16.mxu0 0
          %1487 = vmatpush1.bf16.msra.mxu0 0
          %1488 = vmatprep.subr.bf16.mxu0 0
          %1489 = vmatpush1.bf16.msra.mxu0 0
          %1490 = vmatprep.mubr.bf16.mxu0 0
          %1491 = vmatmul.mubr.bf16.gmra.mrb[0].mxu0 %v935
          %v1492 = vpop.f32.mrb[0].mxu0
          %v1493 = vadd.f32 %v1453, %v1492
          %v1494 = vpop.f32.mrb[0].mxu0
          %v1495 = vpop.f32.mrb[0].mxu0
          %v1496 = vpop.f32.mrb[0].mxu0
          %1497 = vdwg.mxu0
          %v1498 = vmax.f32 %v1412, 0.0
          %v1499 = vmax.f32 %v1414, 0.0
          %v1500 = vmax.f32 %v1493, 0.0
          %v1501 = vld [vmem:[#allocation13] sm:$0xff]
          %v1502 = vld [vmem:[#allocation13 + $0x8] sm:$0xf]
          %v1503 = vld [vmem:[#allocation13 + $0xc] sm:$0xff]
          %v1504 = vld [vmem:[#allocation13 + $0x14] sm:$0xf]
          %v1505 = vld [vmem:[#allocation13 + $0x18] sm:$0xff]
          %v1506 = vld [vmem:[#allocation13 + $0x20] sm:$0xf]
          %v1507 = vld [vmem:[#allocation13 + $0x24] sm:$0xff]
          %v1508 = vld [vmem:[#allocation13 + $0x2c] sm:$0xf]
          %v1509 = vld [vmem:[#allocation13 + $0x30] sm:$0xff]
          %v1510 = vld [vmem:[#allocation13 + $0x38] sm:$0xf]
          %v1511 = vld [vmem:[#allocation13 + $0x3c] sm:$0xff]
          %v1512 = vld [vmem:[#allocation13 + $0x44] sm:$0xf]
          %v1513 = vld [vmem:[#allocation13 + $0x48] sm:$0xff]
          %v1514 = vld [vmem:[#allocation13 + $0x50] sm:$0xf]
          %v1515 = vld [vmem:[#allocation13 + $0x54] sm:$0xff]
          %v1516 = vld [vmem:[#allocation13 + $0x5c] sm:$0xf]
          %v1517 = vld [vmem:[#allocation13 + $0x60] sm:$0xff]
          %v1518 = vld [vmem:[#allocation13 + $0x68] sm:$0xf]
          %v1519 = vld [vmem:[#allocation13 + $0x6c] sm:$0xff]
          %v1520 = vld [vmem:[#allocation13 + $0x74] sm:$0xf]
          %v1521 = vld [vmem:[#allocation13 + $0x78] sm:$0xff]
          %v1522 = vld [vmem:[#allocation13 + $0x80] sm:$0xf]
          %v1523 = vld [vmem:[#allocation13 + $0x84] sm:$0xff]
          %v1524 = vld [vmem:[#allocation13 + $0x8c] sm:$0xf]
          %v1525 = vld [vmem:[#allocation13 + $0x90] sm:$0xff]
          %v1526 = vld [vmem:[#allocation13 + $0x98] sm:$0xf]
          %v1527 = vld [vmem:[#allocation13 + $0x9c] sm:$0xff]
          %v1528 = vld [vmem:[#allocation13 + $0xa4] sm:$0xf]
          %v1529 = vld [vmem:[#allocation13 + $0xa8] sm:$0xff]
          %v1530 = vld [vmem:[#allocation13 + $0xb0] sm:$0xf]
          %v1531 = vld [vmem:[#allocation13 + $0xb4] sm:$0xff]
          %v1532 = vld [vmem:[#allocation13 + $0xbc] sm:$0xf]
          %v1533 = vld [vmem:[#allocation13 + $0xc0] sm:$0xff]
          %v1534 = vld [vmem:[#allocation13 + $0xc8] sm:$0xf]
          %v1535 = vld [vmem:[#allocation13 + $0xcc] sm:$0xff]
          %v1536 = vld [vmem:[#allocation13 + $0xd4] sm:$0xf]
          %v1537 = vld [vmem:[#allocation13 + $0xd8] sm:$0xff]
          %v1538 = vld [vmem:[#allocation13 + $0xe0] sm:$0xf]
          %v1539 = vld [vmem:[#allocation13 + $0xe4] sm:$0xff]
          %v1540 = vld [vmem:[#allocation13 + $0xec] sm:$0xf]
          %v1541 = vld [vmem:[#allocation13 + $0xf0] sm:$0xff]
          %v1542 = vld [vmem:[#allocation13 + $0xf8] sm:$0xf]
          %v1543 = vld [vmem:[#allocation13 + $0xfc] sm:$0xff]
          %v1544 = vld [vmem:[#allocation13 + $0x104] sm:$0xf]
          %v1545 = vld [vmem:[#allocation13 + $0x108] sm:$0xff]
          %v1546 = vld [vmem:[#allocation13 + $0x110] sm:$0xf]
          %v1547 = vld [vmem:[#allocation13 + $0x114] sm:$0xff]
          %v1548 = vld [vmem:[#allocation13 + $0x11c] sm:$0xf]
          %v1549 = vld [vmem:[#allocation13 + $0x120] sm:$0xff]
          %v1550 = vld [vmem:[#allocation13 + $0x128] sm:$0xf]
          %v1551 = vld [vmem:[#allocation13 + $0x12c] sm:$0xff]
          %v1552 = vld [vmem:[#allocation13 + $0x134] sm:$0xf]
          %v1553 = vld [vmem:[#allocation13 + $0x138] sm:$0xff]
          %v1554 = vld [vmem:[#allocation13 + $0x140] sm:$0xf]
          %v1555 = vld [vmem:[#allocation13 + $0x144] sm:$0xff]
          %v1556 = vld [vmem:[#allocation13 + $0x14c] sm:$0xf]
          %v1557 = vld [vmem:[#allocation13 + $0x150] sm:$0xff]
          %v1558 = vld [vmem:[#allocation13 + $0x158] sm:$0xf]
          %v1559 = vld [vmem:[#allocation13 + $0x15c] sm:$0xff]
          %v1560 = vld [vmem:[#allocation13 + $0x164] sm:$0xf]
          %v1561 = vld [vmem:[#allocation13 + $0x168] sm:$0xff]
          %v1562 = vld [vmem:[#allocation13 + $0x170] sm:$0xf]
          %v1563 = vld [vmem:[#allocation13 + $0x174] sm:$0xff]
          %v1564 = vld [vmem:[#allocation13 + $0x17c] sm:$0xf]
          %v1565 = vld [vmem:[#allocation13 + $0x180] sm:$0xff]
          %v1566 = vld [vmem:[#allocation13 + $0x188] sm:$0xf]
          %v1567 = vld [vmem:[#allocation13 + $0x18c] sm:$0xff]
          %v1568 = vld [vmem:[#allocation13 + $0x194] sm:$0xf]
          %v1569 = vld [vmem:[#allocation13 + $0x198] sm:$0xff]
          %v1570 = vld [vmem:[#allocation13 + $0x1a0] sm:$0xf]
          %v1571 = vld [vmem:[#allocation13 + $0x1a4] sm:$0xff]
          %v1572 = vld [vmem:[#allocation13 + $0x1ac] sm:$0xf]
          %v1573 = vld [vmem:[#allocation13 + $0x1b0] sm:$0xff]
          %v1574 = vld [vmem:[#allocation13 + $0x1b8] sm:$0xf]
          %v1575 = vld [vmem:[#allocation13 + $0x1bc] sm:$0xff]
          %v1576 = vld [vmem:[#allocation13 + $0x1c4] sm:$0xf]
          %v1577 = vld [vmem:[#allocation13 + $0x1c8] sm:$0xff]
          %v1578 = vld [vmem:[#allocation13 + $0x1d0] sm:$0xf]
          %v1579 = vld [vmem:[#allocation13 + $0x1d4] sm:$0xff]
          %v1580 = vld [vmem:[#allocation13 + $0x1dc] sm:$0xf]
          %v1581 = vld [vmem:[#allocation13 + $0x1e0] sm:$0xff]
          %v1582 = vld [vmem:[#allocation13 + $0x1e8] sm:$0xf]
          %v1583 = vld [vmem:[#allocation13 + $0x1ec] sm:$0xff]
          %v1584 = vld [vmem:[#allocation13 + $0x1f4] sm:$0xf]
          %v1585 = vld [vmem:[#allocation13 + $0x1f8] sm:$0xff]
          %v1586 = vld [vmem:[#allocation13 + $0x200] sm:$0xf]
          %v1587 = vld [vmem:[#allocation13 + $0x204] sm:$0xff]
          %v1588 = vld [vmem:[#allocation13 + $0x20c] sm:$0xf]
          %v1589 = vld [vmem:[#allocation13 + $0x210] sm:$0xff]
          %v1590 = vld [vmem:[#allocation13 + $0x218] sm:$0xf]
          %v1591 = vld [vmem:[#allocation13 + $0x21c] sm:$0xff]
          %v1592 = vld [vmem:[#allocation13 + $0x224] sm:$0xf]
          %v1593 = vld [vmem:[#allocation13 + $0x228] sm:$0xff]
          %v1594 = vld [vmem:[#allocation13 + $0x230] sm:$0xf]
          %v1595 = vld [vmem:[#allocation13 + $0x234] sm:$0xff]
          %v1596 = vld [vmem:[#allocation13 + $0x23c] sm:$0xf]
          %v1597 = vld [vmem:[#allocation14] sm:$0x7]
          %v1598 = vpack.c.bf16 %v1498, %v1498
          %v1599 = vpack.c.bf16 %v1499, %v1499
          %v1600 = vpack.c.bf16 %v1500, %v1500
          %v1602 = vlaneseq
          %v1603 = vshrl.u32 %v1602, 7
          %v1604 = vsub.s32 0, %v1603
          %v1605 = vrot.slane %v1597, %v1604
          %v1606 = vlaneseq
          %v1607 = vshrl.u32 %v1606, 7
          %v1608 = vsub.s32 1, %v1607
          %v1609 = vrot.slane %v1597, %v1608
          %v1610 = vlaneseq
          %v1611 = vshrl.u32 %v1610, 7
          %v1612 = vsub.s32 2, %v1611
          %v1613 = vrot.slane %v1597, %v1612
          %v1713 = vunpack.c.l.b16 %v1501
          %v1714 = vunpack.c.h.b16 %v1501
          %v1715 = vunpack.c.l.b16 %v1502
          %v1716 = vunpack.c.l.b16 %v1503
          %v1717 = vunpack.c.h.b16 %v1503
          %v1718 = vunpack.c.l.b16 %v1504
          %v1719 = vunpack.c.l.b16 %v1505
          %v1720 = vunpack.c.h.b16 %v1505
          %v1721 = vunpack.c.l.b16 %v1506
          %v1722 = vunpack.c.l.b16 %v1507
          %v1723 = vunpack.c.h.b16 %v1507
          %v1724 = vunpack.c.l.b16 %v1508
          %v1725 = vunpack.c.l.b16 %v1509
          %v1726 = vunpack.c.h.b16 %v1509
          %v1727 = vunpack.c.l.b16 %v1510
          %v1728 = vunpack.c.l.b16 %v1511
          %v1729 = vunpack.c.h.b16 %v1511
          %v1730 = vunpack.c.l.b16 %v1512
          %v1731 = vunpack.c.l.b16 %v1513
          %v1732 = vunpack.c.h.b16 %v1513
          %v1733 = vunpack.c.l.b16 %v1514
          %v1734 = vunpack.c.l.b16 %v1515
          %v1735 = vunpack.c.h.b16 %v1515
          %v1736 = vunpack.c.l.b16 %v1516
          %v1737 = vunpack.c.l.b16 %v1517
          %v1738 = vunpack.c.h.b16 %v1517
          %v1739 = vunpack.c.l.b16 %v1518
          %v1740 = vunpack.c.l.b16 %v1519
          %v1741 = vunpack.c.h.b16 %v1519
          %v1742 = vunpack.c.l.b16 %v1520
          %v1743 = vunpack.c.l.b16 %v1521
          %v1744 = vunpack.c.h.b16 %v1521
          %v1745 = vunpack.c.l.b16 %v1522
          %v1746 = vunpack.c.l.b16 %v1523
          %v1747 = vunpack.c.h.b16 %v1523
          %v1748 = vunpack.c.l.b16 %v1524
          %v1749 = vunpack.c.l.b16 %v1525
          %v1750 = vunpack.c.h.b16 %v1525
          %v1751 = vunpack.c.l.b16 %v1526
          %v1752 = vunpack.c.l.b16 %v1527
          %v1753 = vunpack.c.h.b16 %v1527
          %v1754 = vunpack.c.l.b16 %v1528
          %v1755 = vunpack.c.l.b16 %v1529
          %v1756 = vunpack.c.h.b16 %v1529
          %v1757 = vunpack.c.l.b16 %v1530
          %v1758 = vunpack.c.l.b16 %v1531
          %v1759 = vunpack.c.h.b16 %v1531
          %v1760 = vunpack.c.l.b16 %v1532
          %v1761 = vunpack.c.l.b16 %v1533
          %v1762 = vunpack.c.h.b16 %v1533
          %v1763 = vunpack.c.l.b16 %v1534
          %v1764 = vunpack.c.l.b16 %v1535
          %v1765 = vunpack.c.h.b16 %v1535
          %v1766 = vunpack.c.l.b16 %v1536
          %v1767 = vunpack.c.l.b16 %v1537
          %v1768 = vunpack.c.h.b16 %v1537
          %v1769 = vunpack.c.l.b16 %v1538
          %v1770 = vunpack.c.l.b16 %v1539
          %v1771 = vunpack.c.h.b16 %v1539
          %v1772 = vunpack.c.l.b16 %v1540
          %v1773 = vunpack.c.l.b16 %v1541
          %v1774 = vunpack.c.h.b16 %v1541
          %v1775 = vunpack.c.l.b16 %v1542
          %v1776 = vunpack.c.l.b16 %v1543
          %v1777 = vunpack.c.h.b16 %v1543
          %v1778 = vunpack.c.l.b16 %v1544
          %v1779 = vunpack.c.l.b16 %v1545
          %v1780 = vunpack.c.h.b16 %v1545
          %v1781 = vunpack.c.l.b16 %v1546
          %v1782 = vunpack.c.l.b16 %v1547
          %v1783 = vunpack.c.h.b16 %v1547
          %v1784 = vunpack.c.l.b16 %v1548
          %v1785 = vunpack.c.l.b16 %v1549
          %v1786 = vunpack.c.h.b16 %v1549
          %v1787 = vunpack.c.l.b16 %v1550
          %v1788 = vunpack.c.l.b16 %v1551
          %v1789 = vunpack.c.h.b16 %v1551
          %v1790 = vunpack.c.l.b16 %v1552
          %v1791 = vunpack.c.l.b16 %v1553
          %v1792 = vunpack.c.h.b16 %v1553
          %v1793 = vunpack.c.l.b16 %v1554
          %v1794 = vunpack.c.l.b16 %v1555
          %v1795 = vunpack.c.h.b16 %v1555
          %v1796 = vunpack.c.l.b16 %v1556
          %v1797 = vunpack.c.l.b16 %v1557
          %v1798 = vunpack.c.h.b16 %v1557
          %v1799 = vunpack.c.l.b16 %v1558
          %v1800 = vunpack.c.l.b16 %v1559
          %v1801 = vunpack.c.h.b16 %v1559
          %v1802 = vunpack.c.l.b16 %v1560
          %v1803 = vunpack.c.l.b16 %v1561
          %v1804 = vunpack.c.h.b16 %v1561
          %v1805 = vunpack.c.l.b16 %v1562
          %v1806 = vunpack.c.l.b16 %v1563
          %v1807 = vunpack.c.h.b16 %v1563
          %v1808 = vunpack.c.l.b16 %v1564
          %v1809 = vunpack.c.l.b16 %v1565
          %v1810 = vunpack.c.h.b16 %v1565
          %v1811 = vunpack.c.l.b16 %v1566
          %v1812 = vunpack.c.l.b16 %v1567
          %v1813 = vunpack.c.h.b16 %v1567
          %v1814 = vunpack.c.l.b16 %v1568
          %v1815 = vunpack.c.l.b16 %v1569
          %v1816 = vunpack.c.h.b16 %v1569
          %v1817 = vunpack.c.l.b16 %v1570
          %v1818 = vunpack.c.l.b16 %v1571
          %v1819 = vunpack.c.h.b16 %v1571
          %v1820 = vunpack.c.l.b16 %v1572
          %v1821 = vunpack.c.l.b16 %v1573
          %v1822 = vunpack.c.h.b16 %v1573
          %v1823 = vunpack.c.l.b16 %v1574
          %v1824 = vunpack.c.l.b16 %v1575
          %v1825 = vunpack.c.h.b16 %v1575
          %v1826 = vunpack.c.l.b16 %v1576
          %v1827 = vunpack.c.l.b16 %v1577
          %v1828 = vunpack.c.h.b16 %v1577
          %v1829 = vunpack.c.l.b16 %v1578
          %v1830 = vunpack.c.l.b16 %v1579
          %v1831 = vunpack.c.h.b16 %v1579
          %v1832 = vunpack.c.l.b16 %v1580
          %v1833 = vunpack.c.l.b16 %v1581
          %v1834 = vunpack.c.h.b16 %v1581
          %v1835 = vunpack.c.l.b16 %v1582
          %v1836 = vunpack.c.l.b16 %v1583
          %v1837 = vunpack.c.h.b16 %v1583
          %v1838 = vunpack.c.l.b16 %v1584
          %v1839 = vunpack.c.l.b16 %v1585
          %v1840 = vunpack.c.h.b16 %v1585
          %v1841 = vunpack.c.l.b16 %v1586
          %v1842 = vunpack.c.l.b16 %v1587
          %v1843 = vunpack.c.h.b16 %v1587
          %v1844 = vunpack.c.l.b16 %v1588
          %v1845 = vunpack.c.l.b16 %v1589
          %v1846 = vunpack.c.h.b16 %v1589
          %v1847 = vunpack.c.l.b16 %v1590
          %v1848 = vunpack.c.l.b16 %v1591
          %v1849 = vunpack.c.h.b16 %v1591
          %v1850 = vunpack.c.l.b16 %v1592
          %v1851 = vunpack.c.l.b16 %v1593
          %v1852 = vunpack.c.h.b16 %v1593
          %v1853 = vunpack.c.l.b16 %v1594
          %v1854 = vunpack.c.l.b16 %v1595
          %v1855 = vunpack.c.h.b16 %v1595
          %v1856 = vunpack.c.l.b16 %v1596
          %v1857 = vpack.c.b16 %v1716, %v1713
          %v1858 = vpack.c.b16 %v1717, %v1714
          %v1859 = vpack.c.b16 %v1718, %v1715
          %v1860 = vpack.c.b16 %v1722, %v1719
          %v1861 = vpack.c.b16 %v1723, %v1720
          %v1862 = vpack.c.b16 %v1724, %v1721
          %v1863 = vpack.c.b16 %v1728, %v1725
          %v1864 = vpack.c.b16 %v1729, %v1726
          %v1865 = vpack.c.b16 %v1730, %v1727
          %v1866 = vpack.c.b16 %v1734, %v1731
          %v1867 = vpack.c.b16 %v1735, %v1732
          %v1868 = vpack.c.b16 %v1736, %v1733
          %v1869 = vpack.c.b16 %v1740, %v1737
          %v1870 = vpack.c.b16 %v1741, %v1738
          %v1871 = vpack.c.b16 %v1742, %v1739
          %v1872 = vpack.c.b16 %v1746, %v1743
          %v1873 = vpack.c.b16 %v1747, %v1744
          %v1874 = vpack.c.b16 %v1748, %v1745
          %v1875 = vpack.c.b16 %v1752, %v1749
          %v1876 = vpack.c.b16 %v1753, %v1750
          %v1877 = vpack.c.b16 %v1754, %v1751
          %v1878 = vpack.c.b16 %v1758, %v1755
          %v1879 = vpack.c.b16 %v1759, %v1756
          %v1880 = vpack.c.b16 %v1760, %v1757
          %v1881 = vpack.c.b16 %v1764, %v1761
          %v1882 = vpack.c.b16 %v1765, %v1762
          %v1883 = vpack.c.b16 %v1766, %v1763
          %v1884 = vpack.c.b16 %v1770, %v1767
          %v1885 = vpack.c.b16 %v1771, %v1768
          %v1886 = vpack.c.b16 %v1772, %v1769
          %v1887 = vpack.c.b16 %v1776, %v1773
          %v1888 = vpack.c.b16 %v1777, %v1774
          %v1889 = vpack.c.b16 %v1778, %v1775
          %v1890 = vpack.c.b16 %v1782, %v1779
          %v1891 = vpack.c.b16 %v1783, %v1780
          %v1892 = vpack.c.b16 %v1784, %v1781
          %v1893 = vpack.c.b16 %v1788, %v1785
          %v1894 = vpack.c.b16 %v1789, %v1786
          %v1895 = vpack.c.b16 %v1790, %v1787
          %v1896 = vpack.c.b16 %v1794, %v1791
          %v1897 = vpack.c.b16 %v1795, %v1792
          %v1898 = vpack.c.b16 %v1796, %v1793
          %v1899 = vpack.c.b16 %v1800, %v1797
          %v1900 = vpack.c.b16 %v1801, %v1798
          %v1901 = vpack.c.b16 %v1802, %v1799
          %v1902 = vpack.c.b16 %v1806, %v1803
          %v1903 = vpack.c.b16 %v1807, %v1804
          %v1904 = vpack.c.b16 %v1808, %v1805
          %v1905 = vpack.c.b16 %v1812, %v1809
          %v1906 = vpack.c.b16 %v1813, %v1810
          %v1907 = vpack.c.b16 %v1814, %v1811
          %v1908 = vpack.c.b16 %v1818, %v1815
          %v1909 = vpack.c.b16 %v1819, %v1816
          %v1910 = vpack.c.b16 %v1820, %v1817
          %v1911 = vpack.c.b16 %v1824, %v1821
          %v1912 = vpack.c.b16 %v1825, %v1822
          %v1913 = vpack.c.b16 %v1826, %v1823
          %v1914 = vpack.c.b16 %v1830, %v1827
          %v1915 = vpack.c.b16 %v1831, %v1828
          %v1916 = vpack.c.b16 %v1832, %v1829
          %v1917 = vpack.c.b16 %v1836, %v1833
          %v1918 = vpack.c.b16 %v1837, %v1834
          %v1919 = vpack.c.b16 %v1838, %v1835
          %v1920 = vpack.c.b16 %v1842, %v1839
          %v1921 = vpack.c.b16 %v1843, %v1840
          %v1922 = vpack.c.b16 %v1844, %v1841
          %v1923 = vpack.c.b16 %v1848, %v1845
          %v1924 = vpack.c.b16 %v1849, %v1846
          %v1925 = vpack.c.b16 %v1850, %v1847
          %v1926 = vpack.c.b16 %v1854, %v1851
          %v1927 = vpack.c.b16 %v1855, %v1852
          %v1928 = vpack.c.b16 %v1856, %v1853
          %2001 = vmatprep.subr.bf16.mxu0 %v1858
          %2002 = vmatpush1.bf16.msra.mxu0 %v1857
          %2003 = vmatprep.subr.bf16.mxu0 %v1861
          %2004 = vmatpush1.bf16.msra.mxu0 %v1860
          %2005 = vmatprep.subr.bf16.mxu0 %v1864
          %2006 = vmatpush1.bf16.msra.mxu0 %v1863
          %2007 = vmatprep.subr.bf16.mxu0 %v1867
          %2008 = vmatpush1.bf16.msra.mxu0 %v1866
          %2009 = vmatprep.subr.bf16.mxu0 %v1870
          %2010 = vmatpush1.bf16.msra.mxu0 %v1869
          %2011 = vmatprep.subr.bf16.mxu0 %v1873
          %2012 = vmatpush1.bf16.msra.mxu0 %v1872
          %2013 = vmatprep.subr.bf16.mxu0 %v1876
          %2014 = vmatpush1.bf16.msra.mxu0 %v1875
          %2015 = vmatprep.subr.bf16.mxu0 %v1879
          %2016 = vmatpush1.bf16.msra.mxu0 %v1878
          %2017 = vmatprep.subr.bf16.mxu0 %v1882
          %2018 = vmatpush1.bf16.msra.mxu0 %v1881
          %2019 = vmatprep.subr.bf16.mxu0 %v1885
          %2020 = vmatpush1.bf16.msra.mxu0 %v1884
          %2021 = vmatprep.subr.bf16.mxu0 %v1888
          %2022 = vmatpush1.bf16.msra.mxu0 %v1887
          %2023 = vmatprep.subr.bf16.mxu0 %v1891
          %2024 = vmatpush1.bf16.msra.mxu0 %v1890
          %2025 = vmatprep.subr.bf16.mxu0 %v1894
          %2026 = vmatpush1.bf16.msra.mxu0 %v1893
          %2027 = vmatprep.subr.bf16.mxu0 %v1897
          %2028 = vmatpush1.bf16.msra.mxu0 %v1896
          %2029 = vmatprep.subr.bf16.mxu0 %v1900
          %2030 = vmatpush1.bf16.msra.mxu0 %v1899
          %2031 = vmatprep.subr.bf16.mxu0 %v1903
          %2032 = vmatpush1.bf16.msra.mxu0 %v1902
          %2033 = vmatprep.mubr.bf16.mxu0 %v1599
          %2034 = vmatmul.mubr.bf16.gmra.mrb[0].mxu0 %v1598
          %v2035 = vpop.f32.mrb[0].mxu0
          %v2036 = vadd.f32 %v1605, %v2035
          %v2037 = vpop.f32.mrb[0].mxu0
          %v2038 = vadd.f32 %v1609, %v2037
          %v2039 = vpop.f32.mrb[0].mxu0
          %v2040 = vpop.f32.mrb[0].mxu0
          %2041 = vdwg.mxu0
          %2042 = vmatprep.subr.bf16.mxu0 %v1906
          %2043 = vmatpush1.bf16.msra.mxu0 %v1905
          %2044 = vmatprep.subr.bf16.mxu0 %v1909
          %2045 = vmatpush1.bf16.msra.mxu0 %v1908
          %2046 = vmatprep.subr.bf16.mxu0 %v1912
          %2047 = vmatpush1.bf16.msra.mxu0 %v1911
          %2048 = vmatprep.subr.bf16.mxu0 %v1915
          %2049 = vmatpush1.bf16.msra.mxu0 %v1914
          %2050 = vmatprep.subr.bf16.mxu0 %v1918
          %2051 = vmatpush1.bf16.msra.mxu0 %v1917
          %2052 = vmatprep.subr.bf16.mxu0 %v1921
          %2053 = vmatpush1.bf16.msra.mxu0 %v1920
          %2054 = vmatprep.subr.bf16.mxu0 %v1924
          %2055 = vmatpush1.bf16.msra.mxu0 %v1923
          %2056 = vmatprep.subr.bf16.mxu0 %v1927
          %2057 = vmatpush1.bf16.msra.mxu0 %v1926
          %2058 = vmatprep.subr.bf16.mxu0 0
          %2059 = vmatpush1.bf16.msra.mxu0 0
          %2060 = vmatprep.subr.bf16.mxu0 0
          %2061 = vmatpush1.bf16.msra.mxu0 0
          %2062 = vmatprep.subr.bf16.mxu0 0
          %2063 = vmatpush1.bf16.msra.mxu0 0
          %2064 = vmatprep.subr.bf16.mxu0 0
          %2065 = vmatpush1.bf16.msra.mxu0 0
          %2066 = vmatprep.subr.bf16.mxu0 0
          %2067 = vmatpush1.bf16.msra.mxu0 0
          %2068 = vmatprep.subr.bf16.mxu0 0
          %2069 = vmatpush1.bf16.msra.mxu0 0
          %2070 = vmatprep.subr.bf16.mxu0 0
          %2071 = vmatpush1.bf16.msra.mxu0 0
          %2072 = vmatprep.subr.bf16.mxu0 0
          %2073 = vmatpush1.bf16.msra.mxu0 0
          %2074 = vmatprep.mubr.bf16.mxu0 0
          %2075 = vmatmul.mubr.bf16.gmra.mrb[0].mxu0 %v1600
          %v2076 = vpop.f32.mrb[0].mxu0
          %v2077 = vadd.f32 %v2036, %v2076
          %v2078 = vpop.f32.mrb[0].mxu0
          %v2079 = vadd.f32 %v2038, %v2078
          %v2080 = vpop.f32.mrb[0].mxu0
          %v2081 = vpop.f32.mrb[0].mxu0
          %2082 = vdwg.mxu0
          %2083 = vmatprep.subr.bf16.mxu0 0
          %2084 = vmatpush1.bf16.msra.mxu0 %v1859
          %2085 = vmatprep.subr.bf16.mxu0 0
          %2086 = vmatpush1.bf16.msra.mxu0 %v1862
          %2087 = vmatprep.subr.bf16.mxu0 0
          %2088 = vmatpush1.bf16.msra.mxu0 %v1865
          %2089 = vmatprep.subr.bf16.mxu0 0
          %2090 = vmatpush1.bf16.msra.mxu0 %v1868
          %2091 = vmatprep.subr.bf16.mxu0 0
          %2092 = vmatpush1.bf16.msra.mxu0 %v1871
          %2093 = vmatprep.subr.bf16.mxu0 0
          %2094 = vmatpush1.bf16.msra.mxu0 %v1874
          %2095 = vmatprep.subr.bf16.mxu0 0
          %2096 = vmatpush1.bf16.msra.mxu0 %v1877
          %2097 = vmatprep.subr.bf16.mxu0 0
          %2098 = vmatpush1.bf16.msra.mxu0 %v1880
          %2099 = vmatprep.subr.bf16.mxu0 0
          %2100 = vmatpush1.bf16.msra.mxu0 %v1883
          %2101 = vmatprep.subr.bf16.mxu0 0
          %2102 = vmatpush1.bf16.msra.mxu0 %v1886
          %2103 = vmatprep.subr.bf16.mxu0 0
          %2104 = vmatpush1.bf16.msra.mxu0 %v1889
          %2105 = vmatprep.subr.bf16.mxu0 0
          %2106 = vmatpush1.bf16.msra.mxu0 %v1892
          %2107 = vmatprep.subr.bf16.mxu0 0
          %2108 = vmatpush1.bf16.msra.mxu0 %v1895
          %2109 = vmatprep.subr.bf16.mxu0 0
          %2110 = vmatpush1.bf16.msra.mxu0 %v1898
          %2111 = vmatprep.subr.bf16.mxu0 0
          %2112 = vmatpush1.bf16.msra.mxu0 %v1901
          %2113 = vmatprep.subr.bf16.mxu0 0
          %2114 = vmatpush1.bf16.msra.mxu0 %v1904
          %2115 = vmatprep.mubr.bf16.mxu0 %v1599
          %2116 = vmatmul.mubr.bf16.gmra.mrb[0].mxu0 %v1598
          %v2117 = vpop.f32.mrb[0].mxu0
          %v2118 = vadd.f32 %v1613, %v2117
          %v2119 = vpop.f32.mrb[0].mxu0
          %v2120 = vpop.f32.mrb[0].mxu0
          %v2121 = vpop.f32.mrb[0].mxu0
          %2122 = vdwg.mxu0
          %2123 = vmatprep.subr.bf16.mxu0 0
          %2124 = vmatpush1.bf16.msra.mxu0 %v1907
          %2125 = vmatprep.subr.bf16.mxu0 0
          %2126 = vmatpush1.bf16.msra.mxu0 %v1910
          %2127 = vmatprep.subr.bf16.mxu0 0
          %2128 = vmatpush1.bf16.msra.mxu0 %v1913
          %2129 = vmatprep.subr.bf16.mxu0 0
          %2130 = vmatpush1.bf16.msra.mxu0 %v1916
          %2131 = vmatprep.subr.bf16.mxu0 0
          %2132 = vmatpush1.bf16.msra.mxu0 %v1919
          %2133 = vmatprep.subr.bf16.mxu0 0
          %2134 = vmatpush1.bf16.msra.mxu0 %v1922
          %2135 = vmatprep.subr.bf16.mxu0 0
          %2136 = vmatpush1.bf16.msra.mxu0 %v1925
          %2137 = vmatprep.subr.bf16.mxu0 0
          %2138 = vmatpush1.bf16.msra.mxu0 %v1928
          %2139 = vmatprep.subr.bf16.mxu0 0
          %2140 = vmatpush1.bf16.msra.mxu0 0
          %2141 = vmatprep.subr.bf16.mxu0 0
          %2142 = vmatpush1.bf16.msra.mxu0 0
          %2143 = vmatprep.subr.bf16.mxu0 0
          %2144 = vmatpush1.bf16.msra.mxu0 0
          %2145 = vmatprep.subr.bf16.mxu0 0
          %2146 = vmatpush1.bf16.msra.mxu0 0
          %2147 = vmatprep.subr.bf16.mxu0 0
          %2148 = vmatpush1.bf16.msra.mxu0 0
          %2149 = vmatprep.subr.bf16.mxu0 0
          %2150 = vmatpush1.bf16.msra.mxu0 0
          %2151 = vmatprep.subr.bf16.mxu0 0
          %2152 = vmatpush1.bf16.msra.mxu0 0
          %2153 = vmatprep.subr.bf16.mxu0 0
          %2154 = vmatpush1.bf16.msra.mxu0 0
          %2155 = vmatprep.mubr.bf16.mxu0 0
          %2156 = vmatmul.mubr.bf16.gmra.mrb[0].mxu0 %v1600
          %v2157 = vpop.f32.mrb[0].mxu0
          %v2158 = vadd.f32 %v2118, %v2157
          %v2159 = vpop.f32.mrb[0].mxu0
          %v2160 = vpop.f32.mrb[0].mxu0
          %v2161 = vpop.f32.mrb[0].mxu0
          %2162 = vdwg.mxu0
          %v2163 = vmax.f32 %v2077, 0.0
          %v2164 = vmax.f32 %v2079, 0.0
          %v2165 = vmax.f32 %v2158, 0.0
          %v2166 = vld [vmem:[#allocation16] sm:$0xff]
          %v2167 = vld [vmem:[#allocation16 + $0x8] sm:$0xf]
          %v2168 = vld [vmem:[#allocation16 + $0xc] sm:$0xff]
          %v2169 = vld [vmem:[#allocation16 + $0x14] sm:$0xf]
          %v2170 = vld [vmem:[#allocation16 + $0x18] sm:$0xff]
          %v2171 = vld [vmem:[#allocation16 + $0x20] sm:$0xf]
          %v2172 = vld [vmem:[#allocation16 + $0x24] sm:$0xff]
          %v2173 = vld [vmem:[#allocation16 + $0x2c] sm:$0xf]
          %v2174 = vld [vmem:[#allocation16 + $0x30] sm:$0xff]
          %v2175 = vld [vmem:[#allocation16 + $0x38] sm:$0xf]
          %v2176 = vld [vmem:[#allocation16 + $0x3c] sm:$0xff]
          %v2177 = vld [vmem:[#allocation16 + $0x44] sm:$0xf]
          %v2178 = vld [vmem:[#allocation16 + $0x48] sm:$0xff]
          %v2179 = vld [vmem:[#allocation16 + $0x50] sm:$0xf]
          %v2180 = vld [vmem:[#allocation16 + $0x54] sm:$0xff]
          %v2181 = vld [vmem:[#allocation16 + $0x5c] sm:$0xf]
          %v2182 = vld [vmem:[#allocation16 + $0x60] sm:$0xff]
          %v2183 = vld [vmem:[#allocation16 + $0x68] sm:$0xf]
          %v2184 = vld [vmem:[#allocation16 + $0x6c] sm:$0xff]
          %v2185 = vld [vmem:[#allocation16 + $0x74] sm:$0xf]
          %v2186 = vld [vmem:[#allocation16 + $0x78] sm:$0xff]
          %v2187 = vld [vmem:[#allocation16 + $0x80] sm:$0xf]
          %v2188 = vld [vmem:[#allocation16 + $0x84] sm:$0xff]
          %v2189 = vld [vmem:[#allocation16 + $0x8c] sm:$0xf]
          %v2190 = vld [vmem:[#allocation16 + $0x90] sm:$0xff]
          %v2191 = vld [vmem:[#allocation16 + $0x98] sm:$0xf]
          %v2192 = vld [vmem:[#allocation16 + $0x9c] sm:$0xff]
          %v2193 = vld [vmem:[#allocation16 + $0xa4] sm:$0xf]
          %v2194 = vld [vmem:[#allocation16 + $0xa8] sm:$0xff]
          %v2195 = vld [vmem:[#allocation16 + $0xb0] sm:$0xf]
          %v2196 = vld [vmem:[#allocation16 + $0xb4] sm:$0xff]
          %v2197 = vld [vmem:[#allocation16 + $0xbc] sm:$0xf]
          %v2198 = vld [vmem:[#allocation16 + $0xc0] sm:$0xff]
          %v2199 = vld [vmem:[#allocation16 + $0xc8] sm:$0xf]
          %v2200 = vld [vmem:[#allocation16 + $0xcc] sm:$0xff]
          %v2201 = vld [vmem:[#allocation16 + $0xd4] sm:$0xf]
          %v2202 = vld [vmem:[#allocation16 + $0xd8] sm:$0xff]
          %v2203 = vld [vmem:[#allocation16 + $0xe0] sm:$0xf]
          %v2204 = vld [vmem:[#allocation16 + $0xe4] sm:$0xff]
          %v2205 = vld [vmem:[#allocation16 + $0xec] sm:$0xf]
          %v2206 = vld [vmem:[#allocation16 + $0xf0] sm:$0xff]
          %v2207 = vld [vmem:[#allocation16 + $0xf8] sm:$0xf]
          %v2208 = vld [vmem:[#allocation16 + $0xfc] sm:$0xff]
          %v2209 = vld [vmem:[#allocation16 + $0x104] sm:$0xf]
          %v2210 = vld [vmem:[#allocation16 + $0x108] sm:$0xff]
          %v2211 = vld [vmem:[#allocation16 + $0x110] sm:$0xf]
          %v2212 = vld [vmem:[#allocation16 + $0x114] sm:$0xff]
          %v2213 = vld [vmem:[#allocation16 + $0x11c] sm:$0xf]
          %v2214 = vld [vmem:[#allocation16 + $0x120] sm:$0xff]
          %v2215 = vld [vmem:[#allocation16 + $0x128] sm:$0xf]
          %v2216 = vld [vmem:[#allocation16 + $0x12c] sm:$0xff]
          %v2217 = vld [vmem:[#allocation16 + $0x134] sm:$0xf]
          %v2218 = vld [vmem:[#allocation16 + $0x138] sm:$0xff]
          %v2219 = vld [vmem:[#allocation16 + $0x140] sm:$0xf]
          %v2220 = vld [vmem:[#allocation16 + $0x144] sm:$0xff]
          %v2221 = vld [vmem:[#allocation16 + $0x14c] sm:$0xf]
          %v2222 = vld [vmem:[#allocation16 + $0x150] sm:$0xff]
          %v2223 = vld [vmem:[#allocation16 + $0x158] sm:$0xf]
          %v2224 = vld [vmem:[#allocation16 + $0x15c] sm:$0xff]
          %v2225 = vld [vmem:[#allocation16 + $0x164] sm:$0xf]
          %v2226 = vld [vmem:[#allocation16 + $0x168] sm:$0xff]
          %v2227 = vld [vmem:[#allocation16 + $0x170] sm:$0xf]
          %v2228 = vld [vmem:[#allocation16 + $0x174] sm:$0xff]
          %v2229 = vld [vmem:[#allocation16 + $0x17c] sm:$0xf]
          %v2230 = vld [vmem:[#allocation16 + $0x180] sm:$0xff]
          %v2231 = vld [vmem:[#allocation16 + $0x188] sm:$0xf]
          %v2232 = vld [vmem:[#allocation16 + $0x18c] sm:$0xff]
          %v2233 = vld [vmem:[#allocation16 + $0x194] sm:$0xf]
          %v2234 = vld [vmem:[#allocation16 + $0x198] sm:$0xff]
          %v2235 = vld [vmem:[#allocation16 + $0x1a0] sm:$0xf]
          %v2236 = vld [vmem:[#allocation16 + $0x1a4] sm:$0xff]
          %v2237 = vld [vmem:[#allocation16 + $0x1ac] sm:$0xf]
          %v2238 = vld [vmem:[#allocation16 + $0x1b0] sm:$0xff]
          %v2239 = vld [vmem:[#allocation16 + $0x1b8] sm:$0xf]
          %v2240 = vld [vmem:[#allocation16 + $0x1bc] sm:$0xff]
          %v2241 = vld [vmem:[#allocation16 + $0x1c4] sm:$0xf]
          %v2242 = vld [vmem:[#allocation16 + $0x1c8] sm:$0xff]
          %v2243 = vld [vmem:[#allocation16 + $0x1d0] sm:$0xf]
          %v2244 = vld [vmem:[#allocation16 + $0x1d4] sm:$0xff]
          %v2245 = vld [vmem:[#allocation16 + $0x1dc] sm:$0xf]
          %v2246 = vld [vmem:[#allocation16 + $0x1e0] sm:$0xff]
          %v2247 = vld [vmem:[#allocation16 + $0x1e8] sm:$0xf]
          %v2248 = vld [vmem:[#allocation16 + $0x1ec] sm:$0xff]
          %v2249 = vld [vmem:[#allocation16 + $0x1f4] sm:$0xf]
          %v2250 = vld [vmem:[#allocation16 + $0x1f8] sm:$0xff]
          %v2251 = vld [vmem:[#allocation16 + $0x200] sm:$0xf]
          %v2252 = vld [vmem:[#allocation16 + $0x204] sm:$0xff]
          %v2253 = vld [vmem:[#allocation16 + $0x20c] sm:$0xf]
          %v2254 = vld [vmem:[#allocation16 + $0x210] sm:$0xff]
          %v2255 = vld [vmem:[#allocation16 + $0x218] sm:$0xf]
          %v2256 = vld [vmem:[#allocation16 + $0x21c] sm:$0xff]
          %v2257 = vld [vmem:[#allocation16 + $0x224] sm:$0xf]
          %v2258 = vld [vmem:[#allocation16 + $0x228] sm:$0xff]
          %v2259 = vld [vmem:[#allocation16 + $0x230] sm:$0xf]
          %v2260 = vld [vmem:[#allocation16 + $0x234] sm:$0xff]
          %v2261 = vld [vmem:[#allocation16 + $0x23c] sm:$0xf]
          %v2262 = vld [vmem:[#allocation17] sm:$0x7]
          %v2263 = vpack.c.bf16 %v2163, %v2163
          %v2264 = vpack.c.bf16 %v2164, %v2164
          %v2265 = vpack.c.bf16 %v2165, %v2165
          %v2267 = vlaneseq
          %v2268 = vshrl.u32 %v2267, 7
          %v2269 = vsub.s32 0, %v2268
          %v2270 = vrot.slane %v2262, %v2269
          %v2271 = vlaneseq
          %v2272 = vshrl.u32 %v2271, 7
          %v2273 = vsub.s32 1, %v2272
          %v2274 = vrot.slane %v2262, %v2273
          %v2275 = vlaneseq
          %v2276 = vshrl.u32 %v2275, 7
          %v2277 = vsub.s32 2, %v2276
          %v2278 = vrot.slane %v2262, %v2277
          %v2378 = vunpack.c.l.b16 %v2166
          %v2379 = vunpack.c.h.b16 %v2166
          %v2380 = vunpack.c.l.b16 %v2167
          %v2381 = vunpack.c.l.b16 %v2168
          %v2382 = vunpack.c.h.b16 %v2168
          %v2383 = vunpack.c.l.b16 %v2169
          %v2384 = vunpack.c.l.b16 %v2170
          %v2385 = vunpack.c.h.b16 %v2170
          %v2386 = vunpack.c.l.b16 %v2171
          %v2387 = vunpack.c.l.b16 %v2172
          %v2388 = vunpack.c.h.b16 %v2172
          %v2389 = vunpack.c.l.b16 %v2173
          %v2390 = vunpack.c.l.b16 %v2174
          %v2391 = vunpack.c.h.b16 %v2174
          %v2392 = vunpack.c.l.b16 %v2175
          %v2393 = vunpack.c.l.b16 %v2176
          %v2394 = vunpack.c.h.b16 %v2176
          %v2395 = vunpack.c.l.b16 %v2177
          %v2396 = vunpack.c.l.b16 %v2178
          %v2397 = vunpack.c.h.b16 %v2178
          %v2398 = vunpack.c.l.b16 %v2179
          %v2399 = vunpack.c.l.b16 %v2180
          %v2400 = vunpack.c.h.b16 %v2180
          %v2401 = vunpack.c.l.b16 %v2181
          %v2402 = vunpack.c.l.b16 %v2182
          %v2403 = vunpack.c.h.b16 %v2182
          %v2404 = vunpack.c.l.b16 %v2183
          %v2405 = vunpack.c.l.b16 %v2184
          %v2406 = vunpack.c.h.b16 %v2184
          %v2407 = vunpack.c.l.b16 %v2185
          %v2408 = vunpack.c.l.b16 %v2186
          %v2409 = vunpack.c.h.b16 %v2186
          %v2410 = vunpack.c.l.b16 %v2187
          %v2411 = vunpack.c.l.b16 %v2188
          %v2412 = vunpack.c.h.b16 %v2188
          %v2413 = vunpack.c.l.b16 %v2189
          %v2414 = vunpack.c.l.b16 %v2190
          %v2415 = vunpack.c.h.b16 %v2190
          %v2416 = vunpack.c.l.b16 %v2191
          %v2417 = vunpack.c.l.b16 %v2192
          %v2418 = vunpack.c.h.b16 %v2192
          %v2419 = vunpack.c.l.b16 %v2193
          %v2420 = vunpack.c.l.b16 %v2194
          %v2421 = vunpack.c.h.b16 %v2194
          %v2422 = vunpack.c.l.b16 %v2195
          %v2423 = vunpack.c.l.b16 %v2196
          %v2424 = vunpack.c.h.b16 %v2196
          %v2425 = vunpack.c.l.b16 %v2197
          %v2426 = vunpack.c.l.b16 %v2198
          %v2427 = vunpack.c.h.b16 %v2198
          %v2428 = vunpack.c.l.b16 %v2199
          %v2429 = vunpack.c.l.b16 %v2200
          %v2430 = vunpack.c.h.b16 %v2200
          %v2431 = vunpack.c.l.b16 %v2201
          %v2432 = vunpack.c.l.b16 %v2202
          %v2433 = vunpack.c.h.b16 %v2202
          %v2434 = vunpack.c.l.b16 %v2203
          %v2435 = vunpack.c.l.b16 %v2204
          %v2436 = vunpack.c.h.b16 %v2204
          %v2437 = vunpack.c.l.b16 %v2205
          %v2438 = vunpack.c.l.b16 %v2206
          %v2439 = vunpack.c.h.b16 %v2206
          %v2440 = vunpack.c.l.b16 %v2207
          %v2441 = vunpack.c.l.b16 %v2208
          %v2442 = vunpack.c.h.b16 %v2208
          %v2443 = vunpack.c.l.b16 %v2209
          %v2444 = vunpack.c.l.b16 %v2210
          %v2445 = vunpack.c.h.b16 %v2210
          %v2446 = vunpack.c.l.b16 %v2211
          %v2447 = vunpack.c.l.b16 %v2212
          %v2448 = vunpack.c.h.b16 %v2212
          %v2449 = vunpack.c.l.b16 %v2213
          %v2450 = vunpack.c.l.b16 %v2214
          %v2451 = vunpack.c.h.b16 %v2214
          %v2452 = vunpack.c.l.b16 %v2215
          %v2453 = vunpack.c.l.b16 %v2216
          %v2454 = vunpack.c.h.b16 %v2216
          %v2455 = vunpack.c.l.b16 %v2217
          %v2456 = vunpack.c.l.b16 %v2218
          %v2457 = vunpack.c.h.b16 %v2218
          %v2458 = vunpack.c.l.b16 %v2219
          %v2459 = vunpack.c.l.b16 %v2220
          %v2460 = vunpack.c.h.b16 %v2220
          %v2461 = vunpack.c.l.b16 %v2221
          %v2462 = vunpack.c.l.b16 %v2222
          %v2463 = vunpack.c.h.b16 %v2222
          %v2464 = vunpack.c.l.b16 %v2223
          %v2465 = vunpack.c.l.b16 %v2224
          %v2466 = vunpack.c.h.b16 %v2224
          %v2467 = vunpack.c.l.b16 %v2225
          %v2468 = vunpack.c.l.b16 %v2226
          %v2469 = vunpack.c.h.b16 %v2226
          %v2470 = vunpack.c.l.b16 %v2227
          %v2471 = vunpack.c.l.b16 %v2228
          %v2472 = vunpack.c.h.b16 %v2228
          %v2473 = vunpack.c.l.b16 %v2229
          %v2474 = vunpack.c.l.b16 %v2230
          %v2475 = vunpack.c.h.b16 %v2230
          %v2476 = vunpack.c.l.b16 %v2231
          %v2477 = vunpack.c.l.b16 %v2232
          %v2478 = vunpack.c.h.b16 %v2232
          %v2479 = vunpack.c.l.b16 %v2233
          %v2480 = vunpack.c.l.b16 %v2234
          %v2481 = vunpack.c.h.b16 %v2234
          %v2482 = vunpack.c.l.b16 %v2235
          %v2483 = vunpack.c.l.b16 %v2236
          %v2484 = vunpack.c.h.b16 %v2236
          %v2485 = vunpack.c.l.b16 %v2237
          %v2486 = vunpack.c.l.b16 %v2238
          %v2487 = vunpack.c.h.b16 %v2238
          %v2488 = vunpack.c.l.b16 %v2239
          %v2489 = vunpack.c.l.b16 %v2240
          %v2490 = vunpack.c.h.b16 %v2240
          %v2491 = vunpack.c.l.b16 %v2241
          %v2492 = vunpack.c.l.b16 %v2242
          %v2493 = vunpack.c.h.b16 %v2242
          %v2494 = vunpack.c.l.b16 %v2243
          %v2495 = vunpack.c.l.b16 %v2244
          %v2496 = vunpack.c.h.b16 %v2244
          %v2497 = vunpack.c.l.b16 %v2245
          %v2498 = vunpack.c.l.b16 %v2246
          %v2499 = vunpack.c.h.b16 %v2246
          %v2500 = vunpack.c.l.b16 %v2247
          %v2501 = vunpack.c.l.b16 %v2248
          %v2502 = vunpack.c.h.b16 %v2248
          %v2503 = vunpack.c.l.b16 %v2249
          %v2504 = vunpack.c.l.b16 %v2250
          %v2505 = vunpack.c.h.b16 %v2250
          %v2506 = vunpack.c.l.b16 %v2251
          %v2507 = vunpack.c.l.b16 %v2252
          %v2508 = vunpack.c.h.b16 %v2252
          %v2509 = vunpack.c.l.b16 %v2253
          %v2510 = vunpack.c.l.b16 %v2254
          %v2511 = vunpack.c.h.b16 %v2254
          %v2512 = vunpack.c.l.b16 %v2255
          %v2513 = vunpack.c.l.b16 %v2256
          %v2514 = vunpack.c.h.b16 %v2256
          %v2515 = vunpack.c.l.b16 %v2257
          %v2516 = vunpack.c.l.b16 %v2258
          %v2517 = vunpack.c.h.b16 %v2258
          %v2518 = vunpack.c.l.b16 %v2259
          %v2519 = vunpack.c.l.b16 %v2260
          %v2520 = vunpack.c.h.b16 %v2260
          %v2521 = vunpack.c.l.b16 %v2261
          %v2522 = vpack.c.b16 %v2381, %v2378
          %v2523 = vpack.c.b16 %v2382, %v2379
          %v2524 = vpack.c.b16 %v2383, %v2380
          %v2525 = vpack.c.b16 %v2387, %v2384
          %v2526 = vpack.c.b16 %v2388, %v2385
          %v2527 = vpack.c.b16 %v2389, %v2386
          %v2528 = vpack.c.b16 %v2393, %v2390
          %v2529 = vpack.c.b16 %v2394, %v2391
          %v2530 = vpack.c.b16 %v2395, %v2392
          %v2531 = vpack.c.b16 %v2399, %v2396
          %v2532 = vpack.c.b16 %v2400, %v2397
          %v2533 = vpack.c.b16 %v2401, %v2398
          %v2534 = vpack.c.b16 %v2405, %v2402
          %v2535 = vpack.c.b16 %v2406, %v2403
          %v2536 = vpack.c.b16 %v2407, %v2404
          %v2537 = vpack.c.b16 %v2411, %v2408
          %v2538 = vpack.c.b16 %v2412, %v2409
          %v2539 = vpack.c.b16 %v2413, %v2410
          %v2540 = vpack.c.b16 %v2417, %v2414
          %v2541 = vpack.c.b16 %v2418, %v2415
          %v2542 = vpack.c.b16 %v2419, %v2416
          %v2543 = vpack.c.b16 %v2423, %v2420
          %v2544 = vpack.c.b16 %v2424, %v2421
          %v2545 = vpack.c.b16 %v2425, %v2422
          %v2546 = vpack.c.b16 %v2429, %v2426
          %v2547 = vpack.c.b16 %v2430, %v2427
          %v2548 = vpack.c.b16 %v2431, %v2428
          %v2549 = vpack.c.b16 %v2435, %v2432
          %v2550 = vpack.c.b16 %v2436, %v2433
          %v2551 = vpack.c.b16 %v2437, %v2434
          %v2552 = vpack.c.b16 %v2441, %v2438
          %v2553 = vpack.c.b16 %v2442, %v2439
          %v2554 = vpack.c.b16 %v2443, %v2440
          %v2555 = vpack.c.b16 %v2447, %v2444
          %v2556 = vpack.c.b16 %v2448, %v2445
          %v2557 = vpack.c.b16 %v2449, %v2446
          %v2558 = vpack.c.b16 %v2453, %v2450
          %v2559 = vpack.c.b16 %v2454, %v2451
          %v2560 = vpack.c.b16 %v2455, %v2452
          %v2561 = vpack.c.b16 %v2459, %v2456
          %v2562 = vpack.c.b16 %v2460, %v2457
          %v2563 = vpack.c.b16 %v2461, %v2458
          %v2564 = vpack.c.b16 %v2465, %v2462
          %v2565 = vpack.c.b16 %v2466, %v2463
          %v2566 = vpack.c.b16 %v2467, %v2464
          %v2567 = vpack.c.b16 %v2471, %v2468
          %v2568 = vpack.c.b16 %v2472, %v2469
          %v2569 = vpack.c.b16 %v2473, %v2470
          %v2570 = vpack.c.b16 %v2477, %v2474
          %v2571 = vpack.c.b16 %v2478, %v2475
          %v2572 = vpack.c.b16 %v2479, %v2476
          %v2573 = vpack.c.b16 %v2483, %v2480
          %v2574 = vpack.c.b16 %v2484, %v2481
          %v2575 = vpack.c.b16 %v2485, %v2482
          %v2576 = vpack.c.b16 %v2489, %v2486
          %v2577 = vpack.c.b16 %v2490, %v2487
          %v2578 = vpack.c.b16 %v2491, %v2488
          %v2579 = vpack.c.b16 %v2495, %v2492
          %v2580 = vpack.c.b16 %v2496, %v2493
          %v2581 = vpack.c.b16 %v2497, %v2494
          %v2582 = vpack.c.b16 %v2501, %v2498
          %v2583 = vpack.c.b16 %v2502, %v2499
          %v2584 = vpack.c.b16 %v2503, %v2500
          %v2585 = vpack.c.b16 %v2507, %v2504
          %v2586 = vpack.c.b16 %v2508, %v2505
          %v2587 = vpack.c.b16 %v2509, %v2506
          %v2588 = vpack.c.b16 %v2513, %v2510
          %v2589 = vpack.c.b16 %v2514, %v2511
          %v2590 = vpack.c.b16 %v2515, %v2512
          %v2591 = vpack.c.b16 %v2519, %v2516
          %v2592 = vpack.c.b16 %v2520, %v2517
          %v2593 = vpack.c.b16 %v2521, %v2518
          %2666 = vmatprep.subr.bf16.mxu0 %v2523
          %2667 = vmatpush1.bf16.msra.mxu0 %v2522
          %2668 = vmatprep.subr.bf16.mxu0 %v2526
          %2669 = vmatpush1.bf16.msra.mxu0 %v2525
          %2670 = vmatprep.subr.bf16.mxu0 %v2529
          %2671 = vmatpush1.bf16.msra.mxu0 %v2528
          %2672 = vmatprep.subr.bf16.mxu0 %v2532
          %2673 = vmatpush1.bf16.msra.mxu0 %v2531
          %2674 = vmatprep.subr.bf16.mxu0 %v2535
          %2675 = vmatpush1.bf16.msra.mxu0 %v2534
          %2676 = vmatprep.subr.bf16.mxu0 %v2538
          %2677 = vmatpush1.bf16.msra.mxu0 %v2537
          %2678 = vmatprep.subr.bf16.mxu0 %v2541
          %2679 = vmatpush1.bf16.msra.mxu0 %v2540
          %2680 = vmatprep.subr.bf16.mxu0 %v2544
          %2681 = vmatpush1.bf16.msra.mxu0 %v2543
          %2682 = vmatprep.subr.bf16.mxu0 %v2547
          %2683 = vmatpush1.bf16.msra.mxu0 %v2546
          %2684 = vmatprep.subr.bf16.mxu0 %v2550
          %2685 = vmatpush1.bf16.msra.mxu0 %v2549
          %2686 = vmatprep.subr.bf16.mxu0 %v2553
          %2687 = vmatpush1.bf16.msra.mxu0 %v2552
          %2688 = vmatprep.subr.bf16.mxu0 %v2556
          %2689 = vmatpush1.bf16.msra.mxu0 %v2555
          %2690 = vmatprep.subr.bf16.mxu0 %v2559
          %2691 = vmatpush1.bf16.msra.mxu0 %v2558
          %2692 = vmatprep.subr.bf16.mxu0 %v2562
          %2693 = vmatpush1.bf16.msra.mxu0 %v2561
          %2694 = vmatprep.subr.bf16.mxu0 %v2565
          %2695 = vmatpush1.bf16.msra.mxu0 %v2564
          %2696 = vmatprep.subr.bf16.mxu0 %v2568
          %2697 = vmatpush1.bf16.msra.mxu0 %v2567
          %2698 = vmatprep.mubr.bf16.mxu0 %v2264
          %2699 = vmatmul.mubr.bf16.gmra.mrb[0].mxu0 %v2263
          %v2700 = vpop.f32.mrb[0].mxu0
          %v2701 = vadd.f32 %v2270, %v2700
          %v2702 = vpop.f32.mrb[0].mxu0
          %v2703 = vadd.f32 %v2274, %v2702
          %v2704 = vpop.f32.mrb[0].mxu0
          %v2705 = vpop.f32.mrb[0].mxu0
          %2706 = vdwg.mxu0
          %2707 = vmatprep.subr.bf16.mxu0 %v2571
          %2708 = vmatpush1.bf16.msra.mxu0 %v2570
          %2709 = vmatprep.subr.bf16.mxu0 %v2574
          %2710 = vmatpush1.bf16.msra.mxu0 %v2573
          %2711 = vmatprep.subr.bf16.mxu0 %v2577
          %2712 = vmatpush1.bf16.msra.mxu0 %v2576
          %2713 = vmatprep.subr.bf16.mxu0 %v2580
          %2714 = vmatpush1.bf16.msra.mxu0 %v2579
          %2715 = vmatprep.subr.bf16.mxu0 %v2583
          %2716 = vmatpush1.bf16.msra.mxu0 %v2582
          %2717 = vmatprep.subr.bf16.mxu0 %v2586
          %2718 = vmatpush1.bf16.msra.mxu0 %v2585
          %2719 = vmatprep.subr.bf16.mxu0 %v2589
          %2720 = vmatpush1.bf16.msra.mxu0 %v2588
          %2721 = vmatprep.subr.bf16.mxu0 %v2592
          %2722 = vmatpush1.bf16.msra.mxu0 %v2591
          %2723 = vmatprep.subr.bf16.mxu0 0
          %2724 = vmatpush1.bf16.msra.mxu0 0
          %2725 = vmatprep.subr.bf16.mxu0 0
          %2726 = vmatpush1.bf16.msra.mxu0 0
          %2727 = vmatprep.subr.bf16.mxu0 0
          %2728 = vmatpush1.bf16.msra.mxu0 0
          %2729 = vmatprep.subr.bf16.mxu0 0
          %2730 = vmatpush1.bf16.msra.mxu0 0
          %2731 = vmatprep.subr.bf16.mxu0 0
          %2732 = vmatpush1.bf16.msra.mxu0 0
          %2733 = vmatprep.subr.bf16.mxu0 0
          %2734 = vmatpush1.bf16.msra.mxu0 0
          %2735 = vmatprep.subr.bf16.mxu0 0
          %2736 = vmatpush1.bf16.msra.mxu0 0
          %2737 = vmatprep.subr.bf16.mxu0 0
          %2738 = vmatpush1.bf16.msra.mxu0 0
          %2739 = vmatprep.mubr.bf16.mxu0 0
          %2740 = vmatmul.mubr.bf16.gmra.mrb[0].mxu0 %v2265
          %v2741 = vpop.f32.mrb[0].mxu0
          %v2742 = vadd.f32 %v2701, %v2741
          %v2743 = vpop.f32.mrb[0].mxu0
          %v2744 = vadd.f32 %v2703, %v2743
          %v2745 = vpop.f32.mrb[0].mxu0
          %v2746 = vpop.f32.mrb[0].mxu0
          %2747 = vdwg.mxu0
          %2748 = vmatprep.subr.bf16.mxu0 0
          %2749 = vmatpush1.bf16.msra.mxu0 %v2524
          %2750 = vmatprep.subr.bf16.mxu0 0
          %2751 = vmatpush1.bf16.msra.mxu0 %v2527
          %2752 = vmatprep.subr.bf16.mxu0 0
          %2753 = vmatpush1.bf16.msra.mxu0 %v2530
          %2754 = vmatprep.subr.bf16.mxu0 0
          %2755 = vmatpush1.bf16.msra.mxu0 %v2533
          %2756 = vmatprep.subr.bf16.mxu0 0
          %2757 = vmatpush1.bf16.msra.mxu0 %v2536
          %2758 = vmatprep.subr.bf16.mxu0 0
          %2759 = vmatpush1.bf16.msra.mxu0 %v2539
          %2760 = vmatprep.subr.bf16.mxu0 0
          %2761 = vmatpush1.bf16.msra.mxu0 %v2542
          %2762 = vmatprep.subr.bf16.mxu0 0
          %2763 = vmatpush1.bf16.msra.mxu0 %v2545
          %2764 = vmatprep.subr.bf16.mxu0 0
          %2765 = vmatpush1.bf16.msra.mxu0 %v2548
          %2766 = vmatprep.subr.bf16.mxu0 0
          %2767 = vmatpush1.bf16.msra.mxu0 %v2551
          %2768 = vmatprep.subr.bf16.mxu0 0
          %2769 = vmatpush1.bf16.msra.mxu0 %v2554
          %2770 = vmatprep.subr.bf16.mxu0 0
          %2771 = vmatpush1.bf16.msra.mxu0 %v2557
          %2772 = vmatprep.subr.bf16.mxu0 0
          %2773 = vmatpush1.bf16.msra.mxu0 %v2560
          %2774 = vmatprep.subr.bf16.mxu0 0
          %2775 = vmatpush1.bf16.msra.mxu0 %v2563
          %2776 = vmatprep.subr.bf16.mxu0 0
          %2777 = vmatpush1.bf16.msra.mxu0 %v2566
          %2778 = vmatprep.subr.bf16.mxu0 0
          %2779 = vmatpush1.bf16.msra.mxu0 %v2569
          %2780 = vmatprep.mubr.bf16.mxu0 %v2264
          %2781 = vmatmul.mubr.bf16.gmra.mrb[0].mxu0 %v2263
          %v2782 = vpop.f32.mrb[0].mxu0
          %v2783 = vadd.f32 %v2278, %v2782
          %v2784 = vpop.f32.mrb[0].mxu0
          %v2785 = vpop.f32.mrb[0].mxu0
          %v2786 = vpop.f32.mrb[0].mxu0
          %2787 = vdwg.mxu0
          %2788 = vmatprep.subr.bf16.mxu0 0
          %2789 = vmatpush1.bf16.msra.mxu0 %v2572
          %2790 = vmatprep.subr.bf16.mxu0 0
          %2791 = vmatpush1.bf16.msra.mxu0 %v2575
          %2792 = vmatprep.subr.bf16.mxu0 0
          %2793 = vmatpush1.bf16.msra.mxu0 %v2578
          %2794 = vmatprep.subr.bf16.mxu0 0
          %2795 = vmatpush1.bf16.msra.mxu0 %v2581
          %2796 = vmatprep.subr.bf16.mxu0 0
          %2797 = vmatpush1.bf16.msra.mxu0 %v2584
          %2798 = vmatprep.subr.bf16.mxu0 0
          %2799 = vmatpush1.bf16.msra.mxu0 %v2587
          %2800 = vmatprep.subr.bf16.mxu0 0
          %2801 = vmatpush1.bf16.msra.mxu0 %v2590
          %2802 = vmatprep.subr.bf16.mxu0 0
          %2803 = vmatpush1.bf16.msra.mxu0 %v2593
          %2804 = vmatprep.subr.bf16.mxu0 0
          %2805 = vmatpush1.bf16.msra.mxu0 0
          %2806 = vmatprep.subr.bf16.mxu0 0
          %2807 = vmatpush1.bf16.msra.mxu0 0
          %2808 = vmatprep.subr.bf16.mxu0 0
          %2809 = vmatpush1.bf16.msra.mxu0 0
          %2810 = vmatprep.subr.bf16.mxu0 0
          %2811 = vmatpush1.bf16.msra.mxu0 0
          %2812 = vmatprep.subr.bf16.mxu0 0
          %2813 = vmatpush1.bf16.msra.mxu0 0
          %2814 = vmatprep.subr.bf16.mxu0 0
          %2815 = vmatpush1.bf16.msra.mxu0 0
          %2816 = vmatprep.subr.bf16.mxu0 0
          %2817 = vmatpush1.bf16.msra.mxu0 0
          %2818 = vmatprep.subr.bf16.mxu0 0
          %2819 = vmatpush1.bf16.msra.mxu0 0
          %2820 = vmatprep.mubr.bf16.mxu0 0
          %2821 = vmatmul.mubr.bf16.gmra.mrb[0].mxu0 %v2265
          %v2822 = vpop.f32.mrb[0].mxu0
          %v2823 = vadd.f32 %v2783, %v2822
          %v2824 = vpop.f32.mrb[0].mxu0
          %v2825 = vpop.f32.mrb[0].mxu0
          %v2826 = vpop.f32.mrb[0].mxu0
          %2827 = vdwg.mxu0
          %v2828 = vmax.f32 %v2742, 0.0
          %v2829 = vmax.f32 %v2744, 0.0
          %v2830 = vmax.f32 %v2823, 0.0
          %v2831 = vpack.c.bf16 %v2828, %v2828
          %v2832 = vpack.c.bf16 %v2829, %v2829
          %v2833 = vpack.c.bf16 %v2830, %v2830
          %v2837 = vunpack.c.l.b16 %v2831
          %v2838 = vunpack.c.l.b16 %v2832
          %v2839 = vunpack.c.l.b16 %v2833
          %v2840 = vpack.c.b16 %v2838, %v2837
          %v2841 = vpack.c.b16 %v2839, %v2839
          %2844 = vst [vmem:[#allocation2] sm:$0xff] %v2840
          %2845 = vst [vmem:[#allocation2 + $0x8] sm:$0xf] %v2841
          %2846 = vst [vmem:[%s703] sm:$0xff] 0.0
        $region120: #{mapping_network_forward.1} parent=71 // pred_fallthru
          _
        %s2847 = sld [smem:[#allocation5]]
        %p2848 = scmp.lt.s32.totalorder %s43, %s2847
        // Predicated region
        $region121: #{mapping_network_forward.1} parent=71 // pred_check
          %p2849 = pneg %p2848
        $region122: #{mapping_network_forward.1} parent=71 // pred_check_branch
          %2851 = sbr.rel (%p2849) target = $region124
        $region123: #{mapping_network_forward.1} parent=71 // pred_region
          %s2852 = sld [smem:[#allocation4 + %s43]]
          %v2853 = vld [vmem:[#allocation2] sm:$0xff]
          %v2854 = vld [vmem:[#allocation2 + $0x8] sm:$0xf]
          %v2855 = vld [vmem:[%s611] sm:$0xff]
          %v2856 = vld [vmem:[%s611 + $0x8] sm:$0xf]
          %v2857 = vld [vmem:[%s611 + $0xc] sm:$0xff]
          %v2858 = vld [vmem:[%s611 + $0x14] sm:$0xf]
          %v2859 = vld [vmem:[%s611 + $0x18] sm:$0xff]
          %v2860 = vld [vmem:[%s611 + $0x20] sm:$0xf]
          %v2861 = vld [vmem:[%s611 + $0x24] sm:$0xff]
          %v2862 = vld [vmem:[%s611 + $0x2c] sm:$0xf]
          %v2863 = vld [vmem:[%s611 + $0x30] sm:$0xff]
          %v2864 = vld [vmem:[%s611 + $0x38] sm:$0xf]
          %v2865 = vld [vmem:[%s611 + $0x3c] sm:$0xff]
          %v2866 = vld [vmem:[%s611 + $0x44] sm:$0xf]
          %v2867 = vld [vmem:[%s611 + $0x48] sm:$0xff]
          %v2868 = vld [vmem:[%s611 + $0x50] sm:$0xf]
          %v2869 = vld [vmem:[%s611 + $0x54] sm:$0xff]
          %v2870 = vld [vmem:[%s611 + $0x5c] sm:$0xf]
          %v2871 = vld [vmem:[%s611 + $0x60] sm:$0xff]
          %v2872 = vld [vmem:[%s611 + $0x68] sm:$0xf]
          %v2873 = vld [vmem:[%s611 + $0x6c] sm:$0xff]
          %v2874 = vld [vmem:[%s611 + $0x74] sm:$0xf]
          %v2875 = vld [vmem:[%s611 + $0x78] sm:$0xff]
          %v2876 = vld [vmem:[%s611 + $0x80] sm:$0xf]
          %v2877 = vld [vmem:[%s611 + $0x84] sm:$0xff]
          %v2878 = vld [vmem:[%s611 + $0x8c] sm:$0xf]
          %v2879 = vld [vmem:[%s611 + $0x90] sm:$0xff]
          %v2880 = vld [vmem:[%s611 + $0x98] sm:$0xf]
          %v2881 = vld [vmem:[%s611 + $0x9c] sm:$0xff]
          %v2882 = vld [vmem:[%s611 + $0xa4] sm:$0xf]
          %v2883 = vld [vmem:[%s611 + $0xa8] sm:$0xff]
          %v2884 = vld [vmem:[%s611 + $0xb0] sm:$0xf]
          %v2885 = vld [vmem:[%s611 + $0xb4] sm:$0xff]
          %v2886 = vld [vmem:[%s611 + $0xbc] sm:$0xf]
          %v2887 = vld [vmem:[%s611 + $0xc0] sm:$0xff]
          %v2888 = vld [vmem:[%s611 + $0xc8] sm:$0xf]
          %v2889 = vld [vmem:[%s611 + $0xcc] sm:$0xff]
          %v2890 = vld [vmem:[%s611 + $0xd4] sm:$0xf]
          %v2891 = vld [vmem:[%s611 + $0xd8] sm:$0xff]
          %v2892 = vld [vmem:[%s611 + $0xe0] sm:$0xf]
          %v2893 = vld [vmem:[%s611 + $0xe4] sm:$0xff]
          %v2894 = vld [vmem:[%s611 + $0xec] sm:$0xf]
          %v2895 = vld [vmem:[%s611 + $0xf0] sm:$0xff]
          %v2896 = vld [vmem:[%s611 + $0xf8] sm:$0xf]
          %v2897 = vld [vmem:[%s611 + $0xfc] sm:$0xff]
          %v2898 = vld [vmem:[%s611 + $0x104] sm:$0xf]
          %v2899 = vld [vmem:[%s611 + $0x108] sm:$0xff]
          %v2900 = vld [vmem:[%s611 + $0x110] sm:$0xf]
          %v2901 = vld [vmem:[%s611 + $0x114] sm:$0xff]
          %v2902 = vld [vmem:[%s611 + $0x11c] sm:$0xf]
          %v2903 = vld [vmem:[%s611 + $0x120] sm:$0xff]
          %v2904 = vld [vmem:[%s611 + $0x128] sm:$0xf]
          %v2905 = vld [vmem:[%s611 + $0x12c] sm:$0xff]
          %v2906 = vld [vmem:[%s611 + $0x134] sm:$0xf]
          %v2907 = vld [vmem:[%s611 + $0x138] sm:$0xff]
          %v2908 = vld [vmem:[%s611 + $0x140] sm:$0xf]
          %v2909 = vld [vmem:[%s611 + $0x144] sm:$0xff]
          %v2910 = vld [vmem:[%s611 + $0x14c] sm:$0xf]
          %v2911 = vld [vmem:[%s611 + $0x150] sm:$0xff]
          %v2912 = vld [vmem:[%s611 + $0x158] sm:$0xf]
          %v2913 = vld [vmem:[%s611 + $0x15c] sm:$0xff]
          %v2914 = vld [vmem:[%s611 + $0x164] sm:$0xf]
          %v2915 = vld [vmem:[%s611 + $0x168] sm:$0xff]
          %v2916 = vld [vmem:[%s611 + $0x170] sm:$0xf]
          %v2917 = vld [vmem:[%s611 + $0x174] sm:$0xff]
          %v2918 = vld [vmem:[%s611 + $0x17c] sm:$0xf]
          %v2919 = vld [vmem:[%s611 + $0x180] sm:$0xff]
          %v2920 = vld [vmem:[%s611 + $0x188] sm:$0xf]
          %v2921 = vld [vmem:[%s611 + $0x18c] sm:$0xff]
          %v2922 = vld [vmem:[%s611 + $0x194] sm:$0xf]
          %v2923 = vld [vmem:[%s611 + $0x198] sm:$0xff]
          %v2924 = vld [vmem:[%s611 + $0x1a0] sm:$0xf]
          %v2925 = vld [vmem:[%s611 + $0x1a4] sm:$0xff]
          %v2926 = vld [vmem:[%s611 + $0x1ac] sm:$0xf]
          %v2927 = vld [vmem:[%s611 + $0x1b0] sm:$0xff]
          %v2928 = vld [vmem:[%s611 + $0x1b8] sm:$0xf]
          %v2929 = vld [vmem:[%s611 + $0x1bc] sm:$0xff]
          %v2930 = vld [vmem:[%s611 + $0x1c4] sm:$0xf]
          %v2931 = vld [vmem:[%s611 + $0x1c8] sm:$0xff]
          %v2932 = vld [vmem:[%s611 + $0x1d0] sm:$0xf]
          %v2933 = vld [vmem:[%s611 + $0x1d4] sm:$0xff]
          %v2934 = vld [vmem:[%s611 + $0x1dc] sm:$0xf]
          %v2935 = vld [vmem:[%s611 + $0x1e0] sm:$0xff]
          %v2936 = vld [vmem:[%s611 + $0x1e8] sm:$0xf]
          %v2937 = vld [vmem:[%s611 + $0x1ec] sm:$0xff]
          %v2938 = vld [vmem:[%s611 + $0x1f4] sm:$0xf]
          %v2939 = vld [vmem:[%s611 + $0x1f8] sm:$0xff]
          %v2940 = vld [vmem:[%s611 + $0x200] sm:$0xf]
          %v2941 = vld [vmem:[%s611 + $0x204] sm:$0xff]
          %v2942 = vld [vmem:[%s611 + $0x20c] sm:$0xf]
          %v2943 = vld [vmem:[%s611 + $0x210] sm:$0xff]
          %v2944 = vld [vmem:[%s611 + $0x218] sm:$0xf]
          %v2945 = vld [vmem:[%s611 + $0x21c] sm:$0xff]
          %v2946 = vld [vmem:[%s611 + $0x224] sm:$0xf]
          %v2947 = vld [vmem:[%s611 + $0x228] sm:$0xff]
          %v2948 = vld [vmem:[%s611 + $0x230] sm:$0xf]
          %v2949 = vld [vmem:[%s611 + $0x234] sm:$0xff]
          %v2950 = vld [vmem:[%s611 + $0x23c] sm:$0xf]
          %v2951 = vld [vmem:[%s629] ss:$4 sm:$0x7]
          %v2953 = vlaneseq
          %v2954 = vshrl.u32 %v2953, 7
          %v2955 = vsub.s32 0, %v2954
          %v2956 = vrot.slane %v2951, %v2955
          %v2957 = vlaneseq
          %v2958 = vshrl.u32 %v2957, 7
          %v2959 = vsub.s32 1, %v2958
          %v2960 = vrot.slane %v2951, %v2959
          %v2961 = vlaneseq
          %v2962 = vshrl.u32 %v2961, 7
          %v2963 = vsub.s32 2, %v2962
          %v2964 = vrot.slane %v2951, %v2963
          %v2970 = vunpack.c.l.b16 %v2853
          %v2971 = vunpack.c.h.b16 %v2853
          %v2972 = vunpack.c.l.b16 %v2854
          %v2973 = vpack.c.b16 %v2970, %v2970
          %v2974 = vpack.c.b16 %v2971, %v2971
          %v2975 = vpack.c.b16 %v2972, %v2972
          %v3075 = vunpack.c.l.b16 %v2855
          %v3076 = vunpack.c.h.b16 %v2855
          %v3077 = vunpack.c.l.b16 %v2856
          %v3078 = vunpack.c.l.b16 %v2857
          %v3079 = vunpack.c.h.b16 %v2857
          %v3080 = vunpack.c.l.b16 %v2858
          %v3081 = vunpack.c.l.b16 %v2859
          %v3082 = vunpack.c.h.b16 %v2859
          %v3083 = vunpack.c.l.b16 %v2860
          %v3084 = vunpack.c.l.b16 %v2861
          %v3085 = vunpack.c.h.b16 %v2861
          %v3086 = vunpack.c.l.b16 %v2862
          %v3087 = vunpack.c.l.b16 %v2863
          %v3088 = vunpack.c.h.b16 %v2863
          %v3089 = vunpack.c.l.b16 %v2864
          %v3090 = vunpack.c.l.b16 %v2865
          %v3091 = vunpack.c.h.b16 %v2865
          %v3092 = vunpack.c.l.b16 %v2866
          %v3093 = vunpack.c.l.b16 %v2867
          %v3094 = vunpack.c.h.b16 %v2867
          %v3095 = vunpack.c.l.b16 %v2868
          %v3096 = vunpack.c.l.b16 %v2869
          %v3097 = vunpack.c.h.b16 %v2869
          %v3098 = vunpack.c.l.b16 %v2870
          %v3099 = vunpack.c.l.b16 %v2871
          %v3100 = vunpack.c.h.b16 %v2871
          %v3101 = vunpack.c.l.b16 %v2872
          %v3102 = vunpack.c.l.b16 %v2873
          %v3103 = vunpack.c.h.b16 %v2873
          %v3104 = vunpack.c.l.b16 %v2874
          %v3105 = vunpack.c.l.b16 %v2875
          %v3106 = vunpack.c.h.b16 %v2875
          %v3107 = vunpack.c.l.b16 %v2876
          %v3108 = vunpack.c.l.b16 %v2877
          %v3109 = vunpack.c.h.b16 %v2877
          %v3110 = vunpack.c.l.b16 %v2878
          %v3111 = vunpack.c.l.b16 %v2879
          %v3112 = vunpack.c.h.b16 %v2879
          %v3113 = vunpack.c.l.b16 %v2880
          %v3114 = vunpack.c.l.b16 %v2881
          %v3115 = vunpack.c.h.b16 %v2881
          %v3116 = vunpack.c.l.b16 %v2882
          %v3117 = vunpack.c.l.b16 %v2883
          %v3118 = vunpack.c.h.b16 %v2883
          %v3119 = vunpack.c.l.b16 %v2884
          %v3120 = vunpack.c.l.b16 %v2885
          %v3121 = vunpack.c.h.b16 %v2885
          %v3122 = vunpack.c.l.b16 %v2886
          %v3123 = vunpack.c.l.b16 %v2887
          %v3124 = vunpack.c.h.b16 %v2887
          %v3125 = vunpack.c.l.b16 %v2888
          %v3126 = vunpack.c.l.b16 %v2889
          %v3127 = vunpack.c.h.b16 %v2889
          %v3128 = vunpack.c.l.b16 %v2890
          %v3129 = vunpack.c.l.b16 %v2891
          %v3130 = vunpack.c.h.b16 %v2891
          %v3131 = vunpack.c.l.b16 %v2892
          %v3132 = vunpack.c.l.b16 %v2893
          %v3133 = vunpack.c.h.b16 %v2893
          %v3134 = vunpack.c.l.b16 %v2894
          %v3135 = vunpack.c.l.b16 %v2895
          %v3136 = vunpack.c.h.b16 %v2895
          %v3137 = vunpack.c.l.b16 %v2896
          %v3138 = vunpack.c.l.b16 %v2897
          %v3139 = vunpack.c.h.b16 %v2897
          %v3140 = vunpack.c.l.b16 %v2898
          %v3141 = vunpack.c.l.b16 %v2899
          %v3142 = vunpack.c.h.b16 %v2899
          %v3143 = vunpack.c.l.b16 %v2900
          %v3144 = vunpack.c.l.b16 %v2901
          %v3145 = vunpack.c.h.b16 %v2901
          %v3146 = vunpack.c.l.b16 %v2902
          %v3147 = vunpack.c.l.b16 %v2903
          %v3148 = vunpack.c.h.b16 %v2903
          %v3149 = vunpack.c.l.b16 %v2904
          %v3150 = vunpack.c.l.b16 %v2905
          %v3151 = vunpack.c.h.b16 %v2905
          %v3152 = vunpack.c.l.b16 %v2906
          %v3153 = vunpack.c.l.b16 %v2907
          %v3154 = vunpack.c.h.b16 %v2907
          %v3155 = vunpack.c.l.b16 %v2908
          %v3156 = vunpack.c.l.b16 %v2909
          %v3157 = vunpack.c.h.b16 %v2909
          %v3158 = vunpack.c.l.b16 %v2910
          %v3159 = vunpack.c.l.b16 %v2911
          %v3160 = vunpack.c.h.b16 %v2911
          %v3161 = vunpack.c.l.b16 %v2912
          %v3162 = vunpack.c.l.b16 %v2913
          %v3163 = vunpack.c.h.b16 %v2913
          %v3164 = vunpack.c.l.b16 %v2914
          %v3165 = vunpack.c.l.b16 %v2915
          %v3166 = vunpack.c.h.b16 %v2915
          %v3167 = vunpack.c.l.b16 %v2916
          %v3168 = vunpack.c.l.b16 %v2917
          %v3169 = vunpack.c.h.b16 %v2917
          %v3170 = vunpack.c.l.b16 %v2918
          %v3171 = vunpack.c.l.b16 %v2919
          %v3172 = vunpack.c.h.b16 %v2919
          %v3173 = vunpack.c.l.b16 %v2920
          %v3174 = vunpack.c.l.b16 %v2921
          %v3175 = vunpack.c.h.b16 %v2921
          %v3176 = vunpack.c.l.b16 %v2922
          %v3177 = vunpack.c.l.b16 %v2923
          %v3178 = vunpack.c.h.b16 %v2923
          %v3179 = vunpack.c.l.b16 %v2924
          %v3180 = vunpack.c.l.b16 %v2925
          %v3181 = vunpack.c.h.b16 %v2925
          %v3182 = vunpack.c.l.b16 %v2926
          %v3183 = vunpack.c.l.b16 %v2927
          %v3184 = vunpack.c.h.b16 %v2927
          %v3185 = vunpack.c.l.b16 %v2928
          %v3186 = vunpack.c.l.b16 %v2929
          %v3187 = vunpack.c.h.b16 %v2929
          %v3188 = vunpack.c.l.b16 %v2930
          %v3189 = vunpack.c.l.b16 %v2931
          %v3190 = vunpack.c.h.b16 %v2931
          %v3191 = vunpack.c.l.b16 %v2932
          %v3192 = vunpack.c.l.b16 %v2933
          %v3193 = vunpack.c.h.b16 %v2933
          %v3194 = vunpack.c.l.b16 %v2934
          %v3195 = vunpack.c.l.b16 %v2935
          %v3196 = vunpack.c.h.b16 %v2935
          %v3197 = vunpack.c.l.b16 %v2936
          %v3198 = vunpack.c.l.b16 %v2937
          %v3199 = vunpack.c.h.b16 %v2937
          %v3200 = vunpack.c.l.b16 %v2938
          %v3201 = vunpack.c.l.b16 %v2939
          %v3202 = vunpack.c.h.b16 %v2939
          %v3203 = vunpack.c.l.b16 %v2940
          %v3204 = vunpack.c.l.b16 %v2941
          %v3205 = vunpack.c.h.b16 %v2941
          %v3206 = vunpack.c.l.b16 %v2942
          %v3207 = vunpack.c.l.b16 %v2943
          %v3208 = vunpack.c.h.b16 %v2943
          %v3209 = vunpack.c.l.b16 %v2944
          %v3210 = vunpack.c.l.b16 %v2945
          %v3211 = vunpack.c.h.b16 %v2945
          %v3212 = vunpack.c.l.b16 %v2946
          %v3213 = vunpack.c.l.b16 %v2947
          %v3214 = vunpack.c.h.b16 %v2947
          %v3215 = vunpack.c.l.b16 %v2948
          %v3216 = vunpack.c.l.b16 %v2949
          %v3217 = vunpack.c.h.b16 %v2949
          %v3218 = vunpack.c.l.b16 %v2950
          %v3219 = vpack.c.b16 %v3078, %v3075
          %v3220 = vpack.c.b16 %v3079, %v3076
          %v3221 = vpack.c.b16 %v3080, %v3077
          %v3222 = vpack.c.b16 %v3084, %v3081
          %v3223 = vpack.c.b16 %v3085, %v3082
          %v3224 = vpack.c.b16 %v3086, %v3083
          %v3225 = vpack.c.b16 %v3090, %v3087
          %v3226 = vpack.c.b16 %v3091, %v3088
          %v3227 = vpack.c.b16 %v3092, %v3089
          %v3228 = vpack.c.b16 %v3096, %v3093
          %v3229 = vpack.c.b16 %v3097, %v3094
          %v3230 = vpack.c.b16 %v3098, %v3095
          %v3231 = vpack.c.b16 %v3102, %v3099
          %v3232 = vpack.c.b16 %v3103, %v3100
          %v3233 = vpack.c.b16 %v3104, %v3101
          %v3234 = vpack.c.b16 %v3108, %v3105
          %v3235 = vpack.c.b16 %v3109, %v3106
          %v3236 = vpack.c.b16 %v3110, %v3107
          %v3237 = vpack.c.b16 %v3114, %v3111
          %v3238 = vpack.c.b16 %v3115, %v3112
          %v3239 = vpack.c.b16 %v3116, %v3113
          %v3240 = vpack.c.b16 %v3120, %v3117
          %v3241 = vpack.c.b16 %v3121, %v3118
          %v3242 = vpack.c.b16 %v3122, %v3119
          %v3243 = vpack.c.b16 %v3126, %v3123
          %v3244 = vpack.c.b16 %v3127, %v3124
          %v3245 = vpack.c.b16 %v3128, %v3125
          %v3246 = vpack.c.b16 %v3132, %v3129
          %v3247 = vpack.c.b16 %v3133, %v3130
          %v3248 = vpack.c.b16 %v3134, %v3131
          %v3249 = vpack.c.b16 %v3138, %v3135
          %v3250 = vpack.c.b16 %v3139, %v3136
          %v3251 = vpack.c.b16 %v3140, %v3137
          %v3252 = vpack.c.b16 %v3144, %v3141
          %v3253 = vpack.c.b16 %v3145, %v3142
          %v3254 = vpack.c.b16 %v3146, %v3143
          %v3255 = vpack.c.b16 %v3150, %v3147
          %v3256 = vpack.c.b16 %v3151, %v3148
          %v3257 = vpack.c.b16 %v3152, %v3149
          %v3258 = vpack.c.b16 %v3156, %v3153
          %v3259 = vpack.c.b16 %v3157, %v3154
          %v3260 = vpack.c.b16 %v3158, %v3155
          %v3261 = vpack.c.b16 %v3162, %v3159
          %v3262 = vpack.c.b16 %v3163, %v3160
          %v3263 = vpack.c.b16 %v3164, %v3161
          %v3264 = vpack.c.b16 %v3168, %v3165
          %v3265 = vpack.c.b16 %v3169, %v3166
          %v3266 = vpack.c.b16 %v3170, %v3167
          %v3267 = vpack.c.b16 %v3174, %v3171
          %v3268 = vpack.c.b16 %v3175, %v3172
          %v3269 = vpack.c.b16 %v3176, %v3173
          %v3270 = vpack.c.b16 %v3180, %v3177
          %v3271 = vpack.c.b16 %v3181, %v3178
          %v3272 = vpack.c.b16 %v3182, %v3179
          %v3273 = vpack.c.b16 %v3186, %v3183
          %v3274 = vpack.c.b16 %v3187, %v3184
          %v3275 = vpack.c.b16 %v3188, %v3185
          %v3276 = vpack.c.b16 %v3192, %v3189
          %v3277 = vpack.c.b16 %v3193, %v3190
          %v3278 = vpack.c.b16 %v3194, %v3191
          %v3279 = vpack.c.b16 %v3198, %v3195
          %v3280 = vpack.c.b16 %v3199, %v3196
          %v3281 = vpack.c.b16 %v3200, %v3197
          %v3282 = vpack.c.b16 %v3204, %v3201
          %v3283 = vpack.c.b16 %v3205, %v3202
          %v3284 = vpack.c.b16 %v3206, %v3203
          %v3285 = vpack.c.b16 %v3210, %v3207
          %v3286 = vpack.c.b16 %v3211, %v3208
          %v3287 = vpack.c.b16 %v3212, %v3209
          %v3288 = vpack.c.b16 %v3216, %v3213
          %v3289 = vpack.c.b16 %v3217, %v3214
          %v3290 = vpack.c.b16 %v3218, %v3215
          %3363 = vmatprep.subr.bf16.mxu0 %v3220
          %3364 = vmatpush1.bf16.msra.mxu0 %v3219
          %3365 = vmatprep.subr.bf16.mxu0 %v3223
          %3366 = vmatpush1.bf16.msra.mxu0 %v3222
          %3367 = vmatprep.subr.bf16.mxu0 %v3226
          %3368 = vmatpush1.bf16.msra.mxu0 %v3225
          %3369 = vmatprep.subr.bf16.mxu0 %v3229
          %3370 = vmatpush1.bf16.msra.mxu0 %v3228
          %3371 = vmatprep.subr.bf16.mxu0 %v3232
          %3372 = vmatpush1.bf16.msra.mxu0 %v3231
          %3373 = vmatprep.subr.bf16.mxu0 %v3235
          %3374 = vmatpush1.bf16.msra.mxu0 %v3234
          %3375 = vmatprep.subr.bf16.mxu0 %v3238
          %3376 = vmatpush1.bf16.msra.mxu0 %v3237
          %3377 = vmatprep.subr.bf16.mxu0 %v3241
          %3378 = vmatpush1.bf16.msra.mxu0 %v3240
          %3379 = vmatprep.subr.bf16.mxu0 %v3244
          %3380 = vmatpush1.bf16.msra.mxu0 %v3243
          %3381 = vmatprep.subr.bf16.mxu0 %v3247
          %3382 = vmatpush1.bf16.msra.mxu0 %v3246
          %3383 = vmatprep.subr.bf16.mxu0 %v3250
          %3384 = vmatpush1.bf16.msra.mxu0 %v3249
          %3385 = vmatprep.subr.bf16.mxu0 %v3253
          %3386 = vmatpush1.bf16.msra.mxu0 %v3252
          %3387 = vmatprep.subr.bf16.mxu0 %v3256
          %3388 = vmatpush1.bf16.msra.mxu0 %v3255
          %3389 = vmatprep.subr.bf16.mxu0 %v3259
          %3390 = vmatpush1.bf16.msra.mxu0 %v3258
          %3391 = vmatprep.subr.bf16.mxu0 %v3262
          %3392 = vmatpush1.bf16.msra.mxu0 %v3261
          %3393 = vmatprep.subr.bf16.mxu0 %v3265
          %3394 = vmatpush1.bf16.msra.mxu0 %v3264
          %3395 = vmatprep.mubr.bf16.mxu0 %v2974
          %3396 = vmatmul.mubr.bf16.gmra.mrb[0].mxu0 %v2973
          %v3397 = vpop.f32.mrb[0].mxu0
          %v3398 = vadd.f32 %v2956, %v3397
          %v3399 = vpop.f32.mrb[0].mxu0
          %v3400 = vadd.f32 %v2960, %v3399
          %v3401 = vpop.f32.mrb[0].mxu0
          %v3402 = vpop.f32.mrb[0].mxu0
          %3403 = vdwg.mxu0
          %3404 = vmatprep.subr.bf16.mxu0 %v3268
          %3405 = vmatpush1.bf16.msra.mxu0 %v3267
          %3406 = vmatprep.subr.bf16.mxu0 %v3271
          %3407 = vmatpush1.bf16.msra.mxu0 %v3270
          %3408 = vmatprep.subr.bf16.mxu0 %v3274
          %3409 = vmatpush1.bf16.msra.mxu0 %v3273
          %3410 = vmatprep.subr.bf16.mxu0 %v3277
          %3411 = vmatpush1.bf16.msra.mxu0 %v3276
          %3412 = vmatprep.subr.bf16.mxu0 %v3280
          %3413 = vmatpush1.bf16.msra.mxu0 %v3279
          %3414 = vmatprep.subr.bf16.mxu0 %v3283
          %3415 = vmatpush1.bf16.msra.mxu0 %v3282
          %3416 = vmatprep.subr.bf16.mxu0 %v3286
          %3417 = vmatpush1.bf16.msra.mxu0 %v3285
          %3418 = vmatprep.subr.bf16.mxu0 %v3289
          %3419 = vmatpush1.bf16.msra.mxu0 %v3288
          %3420 = vmatprep.subr.bf16.mxu0 0
          %3421 = vmatpush1.bf16.msra.mxu0 0
          %3422 = vmatprep.subr.bf16.mxu0 0
          %3423 = vmatpush1.bf16.msra.mxu0 0
          %3424 = vmatprep.subr.bf16.mxu0 0
          %3425 = vmatpush1.bf16.msra.mxu0 0
          %3426 = vmatprep.subr.bf16.mxu0 0
          %3427 = vmatpush1.bf16.msra.mxu0 0
          %3428 = vmatprep.subr.bf16.mxu0 0
          %3429 = vmatpush1.bf16.msra.mxu0 0
          %3430 = vmatprep.subr.bf16.mxu0 0
          %3431 = vmatpush1.bf16.msra.mxu0 0
          %3432 = vmatprep.subr.bf16.mxu0 0
          %3433 = vmatpush1.bf16.msra.mxu0 0
          %3434 = vmatprep.subr.bf16.mxu0 0
          %3435 = vmatpush1.bf16.msra.mxu0 0
          %3436 = vmatprep.mubr.bf16.mxu0 0
          %3437 = vmatmul.mubr.bf16.gmra.mrb[0].mxu0 %v2975
          %v3438 = vpop.f32.mrb[0].mxu0
          %v3439 = vadd.f32 %v3398, %v3438
          %v3440 = vpop.f32.mrb[0].mxu0
          %v3441 = vadd.f32 %v3400, %v3440
          %v3442 = vpop.f32.mrb[0].mxu0
          %v3443 = vpop.f32.mrb[0].mxu0
          %3444 = vdwg.mxu0
          %3445 = vmatprep.subr.bf16.mxu0 0
          %3446 = vmatpush1.bf16.msra.mxu0 %v3221
          %3447 = vmatprep.subr.bf16.mxu0 0
          %3448 = vmatpush1.bf16.msra.mxu0 %v3224
          %3449 = vmatprep.subr.bf16.mxu0 0
          %3450 = vmatpush1.bf16.msra.mxu0 %v3227
          %3451 = vmatprep.subr.bf16.mxu0 0
          %3452 = vmatpush1.bf16.msra.mxu0 %v3230
          %3453 = vmatprep.subr.bf16.mxu0 0
          %3454 = vmatpush1.bf16.msra.mxu0 %v3233
          %3455 = vmatprep.subr.bf16.mxu0 0
          %3456 = vmatpush1.bf16.msra.mxu0 %v3236
          %3457 = vmatprep.subr.bf16.mxu0 0
          %3458 = vmatpush1.bf16.msra.mxu0 %v3239
          %3459 = vmatprep.subr.bf16.mxu0 0
          %3460 = vmatpush1.bf16.msra.mxu0 %v3242
          %3461 = vmatprep.subr.bf16.mxu0 0
          %3462 = vmatpush1.bf16.msra.mxu0 %v3245
          %3463 = vmatprep.subr.bf16.mxu0 0
          %3464 = vmatpush1.bf16.msra.mxu0 %v3248
          %3465 = vmatprep.subr.bf16.mxu0 0
          %3466 = vmatpush1.bf16.msra.mxu0 %v3251
          %3467 = vmatprep.subr.bf16.mxu0 0
          %3468 = vmatpush1.bf16.msra.mxu0 %v3254
          %3469 = vmatprep.subr.bf16.mxu0 0
          %3470 = vmatpush1.bf16.msra.mxu0 %v3257
          %3471 = vmatprep.subr.bf16.mxu0 0
          %3472 = vmatpush1.bf16.msra.mxu0 %v3260
          %3473 = vmatprep.subr.bf16.mxu0 0
          %3474 = vmatpush1.bf16.msra.mxu0 %v3263
          %3475 = vmatprep.subr.bf16.mxu0 0
          %3476 = vmatpush1.bf16.msra.mxu0 %v3266
          %3477 = vmatprep.mubr.bf16.mxu0 %v2974
          %3478 = vmatmul.mubr.bf16.gmra.mrb[0].mxu0 %v2973
          %v3479 = vpop.f32.mrb[0].mxu0
          %v3480 = vadd.f32 %v2964, %v3479
          %v3481 = vpop.f32.mrb[0].mxu0
          %v3482 = vpop.f32.mrb[0].mxu0
          %v3483 = vpop.f32.mrb[0].mxu0
          %3484 = vdwg.mxu0
          %3485 = vmatprep.subr.bf16.mxu0 0
          %3486 = vmatpush1.bf16.msra.mxu0 %v3269
          %3487 = vmatprep.subr.bf16.mxu0 0
          %3488 = vmatpush1.bf16.msra.mxu0 %v3272
          %3489 = vmatprep.subr.bf16.mxu0 0
          %3490 = vmatpush1.bf16.msra.mxu0 %v3275
          %3491 = vmatprep.subr.bf16.mxu0 0
          %3492 = vmatpush1.bf16.msra.mxu0 %v3278
          %3493 = vmatprep.subr.bf16.mxu0 0
          %3494 = vmatpush1.bf16.msra.mxu0 %v3281
          %3495 = vmatprep.subr.bf16.mxu0 0
          %3496 = vmatpush1.bf16.msra.mxu0 %v3284
          %3497 = vmatprep.subr.bf16.mxu0 0
          %3498 = vmatpush1.bf16.msra.mxu0 %v3287
          %3499 = vmatprep.subr.bf16.mxu0 0
          %3500 = vmatpush1.bf16.msra.mxu0 %v3290
          %3501 = vmatprep.subr.bf16.mxu0 0
          %3502 = vmatpush1.bf16.msra.mxu0 0
          %3503 = vmatprep.subr.bf16.mxu0 0
          %3504 = vmatpush1.bf16.msra.mxu0 0
          %3505 = vmatprep.subr.bf16.mxu0 0
          %3506 = vmatpush1.bf16.msra.mxu0 0
          %3507 = vmatprep.subr.bf16.mxu0 0
          %3508 = vmatpush1.bf16.msra.mxu0 0
          %3509 = vmatprep.subr.bf16.mxu0 0
          %3510 = vmatpush1.bf16.msra.mxu0 0
          %3511 = vmatprep.subr.bf16.mxu0 0
          %3512 = vmatpush1.bf16.msra.mxu0 0
          %3513 = vmatprep.subr.bf16.mxu0 0
          %3514 = vmatpush1.bf16.msra.mxu0 0
          %3515 = vmatprep.subr.bf16.mxu0 0
          %3516 = vmatpush1.bf16.msra.mxu0 0
          %3517 = vmatprep.mubr.bf16.mxu0 0
          %3518 = vmatmul.mubr.bf16.gmra.mrb[0].mxu0 %v2975
          %v3519 = vpop.f32.mrb[0].mxu0
          %v3520 = vadd.f32 %v3480, %v3519
          %v3521 = vpop.f32.mrb[0].mxu0
          %v3522 = vpop.f32.mrb[0].mxu0
          %v3523 = vpop.f32.mrb[0].mxu0
          %3524 = vdwg.mxu0
          %v3525 = vmax.f32 %v3439, 0.0
          %v3526 = vmax.f32 %v3441, 0.0
          %v3527 = vmax.f32 %v3520, 0.0
          %s3528 = scalar_lea.vmem %s611, 576 [#allocation19]
          %v3529 = vld [vmem:[%s3528] sm:$0xff]
          %v3530 = vld [vmem:[%s3528 + $0x8] sm:$0xf]
          %v3531 = vld [vmem:[%s3528 + $0xc] sm:$0xff]
          %v3532 = vld [vmem:[%s3528 + $0x14] sm:$0xf]
          %v3533 = vld [vmem:[%s3528 + $0x18] sm:$0xff]
          %v3534 = vld [vmem:[%s3528 + $0x20] sm:$0xf]
          %v3535 = vld [vmem:[%s3528 + $0x24] sm:$0xff]
          %v3536 = vld [vmem:[%s3528 + $0x2c] sm:$0xf]
          %v3537 = vld [vmem:[%s3528 + $0x30] sm:$0xff]
          %v3538 = vld [vmem:[%s3528 + $0x38] sm:$0xf]
          %v3539 = vld [vmem:[%s3528 + $0x3c] sm:$0xff]
          %v3540 = vld [vmem:[%s3528 + $0x44] sm:$0xf]
          %v3541 = vld [vmem:[%s3528 + $0x48] sm:$0xff]
          %v3542 = vld [vmem:[%s3528 + $0x50] sm:$0xf]
          %v3543 = vld [vmem:[%s3528 + $0x54] sm:$0xff]
          %v3544 = vld [vmem:[%s3528 + $0x5c] sm:$0xf]
          %v3545 = vld [vmem:[%s3528 + $0x60] sm:$0xff]
          %v3546 = vld [vmem:[%s3528 + $0x68] sm:$0xf]
          %v3547 = vld [vmem:[%s3528 + $0x6c] sm:$0xff]
          %v3548 = vld [vmem:[%s3528 + $0x74] sm:$0xf]
          %v3549 = vld [vmem:[%s3528 + $0x78] sm:$0xff]
          %v3550 = vld [vmem:[%s3528 + $0x80] sm:$0xf]
          %v3551 = vld [vmem:[%s3528 + $0x84] sm:$0xff]
          %v3552 = vld [vmem:[%s3528 + $0x8c] sm:$0xf]
          %v3553 = vld [vmem:[%s3528 + $0x90] sm:$0xff]
          %v3554 = vld [vmem:[%s3528 + $0x98] sm:$0xf]
          %v3555 = vld [vmem:[%s3528 + $0x9c] sm:$0xff]
          %v3556 = vld [vmem:[%s3528 + $0xa4] sm:$0xf]
          %v3557 = vld [vmem:[%s3528 + $0xa8] sm:$0xff]
          %v3558 = vld [vmem:[%s3528 + $0xb0] sm:$0xf]
          %v3559 = vld [vmem:[%s3528 + $0xb4] sm:$0xff]
          %v3560 = vld [vmem:[%s3528 + $0xbc] sm:$0xf]
          %v3561 = vld [vmem:[%s3528 + $0xc0] sm:$0xff]
          %v3562 = vld [vmem:[%s3528 + $0xc8] sm:$0xf]
          %v3563 = vld [vmem:[%s3528 + $0xcc] sm:$0xff]
          %v3564 = vld [vmem:[%s3528 + $0xd4] sm:$0xf]
          %v3565 = vld [vmem:[%s3528 + $0xd8] sm:$0xff]
          %v3566 = vld [vmem:[%s3528 + $0xe0] sm:$0xf]
          %v3567 = vld [vmem:[%s3528 + $0xe4] sm:$0xff]
          %v3568 = vld [vmem:[%s3528 + $0xec] sm:$0xf]
          %v3569 = vld [vmem:[%s3528 + $0xf0] sm:$0xff]
          %v3570 = vld [vmem:[%s3528 + $0xf8] sm:$0xf]
          %v3571 = vld [vmem:[%s3528 + $0xfc] sm:$0xff]
          %v3572 = vld [vmem:[%s3528 + $0x104] sm:$0xf]
          %v3573 = vld [vmem:[%s3528 + $0x108] sm:$0xff]
          %v3574 = vld [vmem:[%s3528 + $0x110] sm:$0xf]
          %v3575 = vld [vmem:[%s3528 + $0x114] sm:$0xff]
          %v3576 = vld [vmem:[%s3528 + $0x11c] sm:$0xf]
          %v3577 = vld [vmem:[%s3528 + $0x120] sm:$0xff]
          %v3578 = vld [vmem:[%s3528 + $0x128] sm:$0xf]
          %v3579 = vld [vmem:[%s3528 + $0x12c] sm:$0xff]
          %v3580 = vld [vmem:[%s3528 + $0x134] sm:$0xf]
          %v3581 = vld [vmem:[%s3528 + $0x138] sm:$0xff]
          %v3582 = vld [vmem:[%s3528 + $0x140] sm:$0xf]
          %v3583 = vld [vmem:[%s3528 + $0x144] sm:$0xff]
          %v3584 = vld [vmem:[%s3528 + $0x14c] sm:$0xf]
          %v3585 = vld [vmem:[%s3528 + $0x150] sm:$0xff]
          %v3586 = vld [vmem:[%s3528 + $0x158] sm:$0xf]
          %v3587 = vld [vmem:[%s3528 + $0x15c] sm:$0xff]
          %v3588 = vld [vmem:[%s3528 + $0x164] sm:$0xf]
          %v3589 = vld [vmem:[%s3528 + $0x168] sm:$0xff]
          %v3590 = vld [vmem:[%s3528 + $0x170] sm:$0xf]
          %v3591 = vld [vmem:[%s3528 + $0x174] sm:$0xff]
          %v3592 = vld [vmem:[%s3528 + $0x17c] sm:$0xf]
          %v3593 = vld [vmem:[%s3528 + $0x180] sm:$0xff]
          %v3594 = vld [vmem:[%s3528 + $0x188] sm:$0xf]
          %v3595 = vld [vmem:[%s3528 + $0x18c] sm:$0xff]
          %v3596 = vld [vmem:[%s3528 + $0x194] sm:$0xf]
          %v3597 = vld [vmem:[%s3528 + $0x198] sm:$0xff]
          %v3598 = vld [vmem:[%s3528 + $0x1a0] sm:$0xf]
          %v3599 = vld [vmem:[%s3528 + $0x1a4] sm:$0xff]
          %v3600 = vld [vmem:[%s3528 + $0x1ac] sm:$0xf]
          %v3601 = vld [vmem:[%s3528 + $0x1b0] sm:$0xff]
          %v3602 = vld [vmem:[%s3528 + $0x1b8] sm:$0xf]
          %v3603 = vld [vmem:[%s3528 + $0x1bc] sm:$0xff]
          %v3604 = vld [vmem:[%s3528 + $0x1c4] sm:$0xf]
          %v3605 = vld [vmem:[%s3528 + $0x1c8] sm:$0xff]
          %v3606 = vld [vmem:[%s3528 + $0x1d0] sm:$0xf]
          %v3607 = vld [vmem:[%s3528 + $0x1d4] sm:$0xff]
          %v3608 = vld [vmem:[%s3528 + $0x1dc] sm:$0xf]
          %v3609 = vld [vmem:[%s3528 + $0x1e0] sm:$0xff]
          %v3610 = vld [vmem:[%s3528 + $0x1e8] sm:$0xf]
          %v3611 = vld [vmem:[%s3528 + $0x1ec] sm:$0xff]
          %v3612 = vld [vmem:[%s3528 + $0x1f4] sm:$0xf]
          %v3613 = vld [vmem:[%s3528 + $0x1f8] sm:$0xff]
          %v3614 = vld [vmem:[%s3528 + $0x200] sm:$0xf]
          %v3615 = vld [vmem:[%s3528 + $0x204] sm:$0xff]
          %v3616 = vld [vmem:[%s3528 + $0x20c] sm:$0xf]
          %v3617 = vld [vmem:[%s3528 + $0x210] sm:$0xff]
          %v3618 = vld [vmem:[%s3528 + $0x218] sm:$0xf]
          %v3619 = vld [vmem:[%s3528 + $0x21c] sm:$0xff]
          %v3620 = vld [vmem:[%s3528 + $0x224] sm:$0xf]
          %v3621 = vld [vmem:[%s3528 + $0x228] sm:$0xff]
          %v3622 = vld [vmem:[%s3528 + $0x230] sm:$0xf]
          %v3623 = vld [vmem:[%s3528 + $0x234] sm:$0xff]
          %v3624 = vld [vmem:[%s3528 + $0x23c] sm:$0xf]
          %s3625 = scalar_lea.vmem %s629, 1 [#allocation21]
          %v3626 = vld [vmem:[%s3625] ss:$4 sm:$0x7]
          %v3627 = vpack.c.bf16 %v3525, %v3525
          %v3628 = vpack.c.bf16 %v3526, %v3526
          %v3629 = vpack.c.bf16 %v3527, %v3527
          %v3631 = vlaneseq
          %v3632 = vshrl.u32 %v3631, 7
          %v3633 = vsub.s32 0, %v3632
          %v3634 = vrot.slane %v3626, %v3633
          %v3635 = vlaneseq
          %v3636 = vshrl.u32 %v3635, 7
          %v3637 = vsub.s32 1, %v3636
          %v3638 = vrot.slane %v3626, %v3637
          %v3639 = vlaneseq
          %v3640 = vshrl.u32 %v3639, 7
          %v3641 = vsub.s32 2, %v3640
          %v3642 = vrot.slane %v3626, %v3641
          %v3742 = vunpack.c.l.b16 %v3529
          %v3743 = vunpack.c.h.b16 %v3529
          %v3744 = vunpack.c.l.b16 %v3530
          %v3745 = vunpack.c.l.b16 %v3531
          %v3746 = vunpack.c.h.b16 %v3531
          %v3747 = vunpack.c.l.b16 %v3532
          %v3748 = vunpack.c.l.b16 %v3533
          %v3749 = vunpack.c.h.b16 %v3533
          %v3750 = vunpack.c.l.b16 %v3534
          %v3751 = vunpack.c.l.b16 %v3535
          %v3752 = vunpack.c.h.b16 %v3535
          %v3753 = vunpack.c.l.b16 %v3536
          %v3754 = vunpack.c.l.b16 %v3537
          %v3755 = vunpack.c.h.b16 %v3537
          %v3756 = vunpack.c.l.b16 %v3538
          %v3757 = vunpack.c.l.b16 %v3539
          %v3758 = vunpack.c.h.b16 %v3539
          %v3759 = vunpack.c.l.b16 %v3540
          %v3760 = vunpack.c.l.b16 %v3541
          %v3761 = vunpack.c.h.b16 %v3541
          %v3762 = vunpack.c.l.b16 %v3542
          %v3763 = vunpack.c.l.b16 %v3543
          %v3764 = vunpack.c.h.b16 %v3543
          %v3765 = vunpack.c.l.b16 %v3544
          %v3766 = vunpack.c.l.b16 %v3545
          %v3767 = vunpack.c.h.b16 %v3545
          %v3768 = vunpack.c.l.b16 %v3546
          %v3769 = vunpack.c.l.b16 %v3547
          %v3770 = vunpack.c.h.b16 %v3547
          %v3771 = vunpack.c.l.b16 %v3548
          %v3772 = vunpack.c.l.b16 %v3549
          %v3773 = vunpack.c.h.b16 %v3549
          %v3774 = vunpack.c.l.b16 %v3550
          %v3775 = vunpack.c.l.b16 %v3551
          %v3776 = vunpack.c.h.b16 %v3551
          %v3777 = vunpack.c.l.b16 %v3552
          %v3778 = vunpack.c.l.b16 %v3553
          %v3779 = vunpack.c.h.b16 %v3553
          %v3780 = vunpack.c.l.b16 %v3554
          %v3781 = vunpack.c.l.b16 %v3555
          %v3782 = vunpack.c.h.b16 %v3555
          %v3783 = vunpack.c.l.b16 %v3556
          %v3784 = vunpack.c.l.b16 %v3557
          %v3785 = vunpack.c.h.b16 %v3557
          %v3786 = vunpack.c.l.b16 %v3558
          %v3787 = vunpack.c.l.b16 %v3559
          %v3788 = vunpack.c.h.b16 %v3559
          %v3789 = vunpack.c.l.b16 %v3560
          %v3790 = vunpack.c.l.b16 %v3561
          %v3791 = vunpack.c.h.b16 %v3561
          %v3792 = vunpack.c.l.b16 %v3562
          %v3793 = vunpack.c.l.b16 %v3563
          %v3794 = vunpack.c.h.b16 %v3563
          %v3795 = vunpack.c.l.b16 %v3564
          %v3796 = vunpack.c.l.b16 %v3565
          %v3797 = vunpack.c.h.b16 %v3565
          %v3798 = vunpack.c.l.b16 %v3566
          %v3799 = vunpack.c.l.b16 %v3567
          %v3800 = vunpack.c.h.b16 %v3567
          %v3801 = vunpack.c.l.b16 %v3568
          %v3802 = vunpack.c.l.b16 %v3569
          %v3803 = vunpack.c.h.b16 %v3569
          %v3804 = vunpack.c.l.b16 %v3570
          %v3805 = vunpack.c.l.b16 %v3571
          %v3806 = vunpack.c.h.b16 %v3571
          %v3807 = vunpack.c.l.b16 %v3572
          %v3808 = vunpack.c.l.b16 %v3573
          %v3809 = vunpack.c.h.b16 %v3573
          %v3810 = vunpack.c.l.b16 %v3574
          %v3811 = vunpack.c.l.b16 %v3575
          %v3812 = vunpack.c.h.b16 %v3575
          %v3813 = vunpack.c.l.b16 %v3576
          %v3814 = vunpack.c.l.b16 %v3577
          %v3815 = vunpack.c.h.b16 %v3577
          %v3816 = vunpack.c.l.b16 %v3578
          %v3817 = vunpack.c.l.b16 %v3579
          %v3818 = vunpack.c.h.b16 %v3579
          %v3819 = vunpack.c.l.b16 %v3580
          %v3820 = vunpack.c.l.b16 %v3581
          %v3821 = vunpack.c.h.b16 %v3581
          %v3822 = vunpack.c.l.b16 %v3582
          %v3823 = vunpack.c.l.b16 %v3583
          %v3824 = vunpack.c.h.b16 %v3583
          %v3825 = vunpack.c.l.b16 %v3584
          %v3826 = vunpack.c.l.b16 %v3585
          %v3827 = vunpack.c.h.b16 %v3585
          %v3828 = vunpack.c.l.b16 %v3586
          %v3829 = vunpack.c.l.b16 %v3587
          %v3830 = vunpack.c.h.b16 %v3587
          %v3831 = vunpack.c.l.b16 %v3588
          %v3832 = vunpack.c.l.b16 %v3589
          %v3833 = vunpack.c.h.b16 %v3589
          %v3834 = vunpack.c.l.b16 %v3590
          %v3835 = vunpack.c.l.b16 %v3591
          %v3836 = vunpack.c.h.b16 %v3591
          %v3837 = vunpack.c.l.b16 %v3592
          %v3838 = vunpack.c.l.b16 %v3593
          %v3839 = vunpack.c.h.b16 %v3593
          %v3840 = vunpack.c.l.b16 %v3594
          %v3841 = vunpack.c.l.b16 %v3595
          %v3842 = vunpack.c.h.b16 %v3595
          %v3843 = vunpack.c.l.b16 %v3596
          %v3844 = vunpack.c.l.b16 %v3597
          %v3845 = vunpack.c.h.b16 %v3597
          %v3846 = vunpack.c.l.b16 %v3598
          %v3847 = vunpack.c.l.b16 %v3599
          %v3848 = vunpack.c.h.b16 %v3599
          %v3849 = vunpack.c.l.b16 %v3600
          %v3850 = vunpack.c.l.b16 %v3601
          %v3851 = vunpack.c.h.b16 %v3601
          %v3852 = vunpack.c.l.b16 %v3602
          %v3853 = vunpack.c.l.b16 %v3603
          %v3854 = vunpack.c.h.b16 %v3603
          %v3855 = vunpack.c.l.b16 %v3604
          %v3856 = vunpack.c.l.b16 %v3605
          %v3857 = vunpack.c.h.b16 %v3605
          %v3858 = vunpack.c.l.b16 %v3606
          %v3859 = vunpack.c.l.b16 %v3607
          %v3860 = vunpack.c.h.b16 %v3607
          %v3861 = vunpack.c.l.b16 %v3608
          %v3862 = vunpack.c.l.b16 %v3609
          %v3863 = vunpack.c.h.b16 %v3609
          %v3864 = vunpack.c.l.b16 %v3610
          %v3865 = vunpack.c.l.b16 %v3611
          %v3866 = vunpack.c.h.b16 %v3611
          %v3867 = vunpack.c.l.b16 %v3612
          %v3868 = vunpack.c.l.b16 %v3613
          %v3869 = vunpack.c.h.b16 %v3613
          %v3870 = vunpack.c.l.b16 %v3614
          %v3871 = vunpack.c.l.b16 %v3615
          %v3872 = vunpack.c.h.b16 %v3615
          %v3873 = vunpack.c.l.b16 %v3616
          %v3874 = vunpack.c.l.b16 %v3617
          %v3875 = vunpack.c.h.b16 %v3617
          %v3876 = vunpack.c.l.b16 %v3618
          %v3877 = vunpack.c.l.b16 %v3619
          %v3878 = vunpack.c.h.b16 %v3619
          %v3879 = vunpack.c.l.b16 %v3620
          %v3880 = vunpack.c.l.b16 %v3621
          %v3881 = vunpack.c.h.b16 %v3621
          %v3882 = vunpack.c.l.b16 %v3622
          %v3883 = vunpack.c.l.b16 %v3623
          %v3884 = vunpack.c.h.b16 %v3623
          %v3885 = vunpack.c.l.b16 %v3624
          %v3886 = vpack.c.b16 %v3745, %v3742
          %v3887 = vpack.c.b16 %v3746, %v3743
          %v3888 = vpack.c.b16 %v3747, %v3744
          %v3889 = vpack.c.b16 %v3751, %v3748
          %v3890 = vpack.c.b16 %v3752, %v3749
          %v3891 = vpack.c.b16 %v3753, %v3750
          %v3892 = vpack.c.b16 %v3757, %v3754
          %v3893 = vpack.c.b16 %v3758, %v3755
          %v3894 = vpack.c.b16 %v3759, %v3756
          %v3895 = vpack.c.b16 %v3763, %v3760
          %v3896 = vpack.c.b16 %v3764, %v3761
          %v3897 = vpack.c.b16 %v3765, %v3762
          %v3898 = vpack.c.b16 %v3769, %v3766
          %v3899 = vpack.c.b16 %v3770, %v3767
          %v3900 = vpack.c.b16 %v3771, %v3768
          %v3901 = vpack.c.b16 %v3775, %v3772
          %v3902 = vpack.c.b16 %v3776, %v3773
          %v3903 = vpack.c.b16 %v3777, %v3774
          %v3904 = vpack.c.b16 %v3781, %v3778
          %v3905 = vpack.c.b16 %v3782, %v3779
          %v3906 = vpack.c.b16 %v3783, %v3780
          %v3907 = vpack.c.b16 %v3787, %v3784
          %v3908 = vpack.c.b16 %v3788, %v3785
          %v3909 = vpack.c.b16 %v3789, %v3786
          %v3910 = vpack.c.b16 %v3793, %v3790
          %v3911 = vpack.c.b16 %v3794, %v3791
          %v3912 = vpack.c.b16 %v3795, %v3792
          %v3913 = vpack.c.b16 %v3799, %v3796
          %v3914 = vpack.c.b16 %v3800, %v3797
          %v3915 = vpack.c.b16 %v3801, %v3798
          %v3916 = vpack.c.b16 %v3805, %v3802
          %v3917 = vpack.c.b16 %v3806, %v3803
          %v3918 = vpack.c.b16 %v3807, %v3804
          %v3919 = vpack.c.b16 %v3811, %v3808
          %v3920 = vpack.c.b16 %v3812, %v3809
          %v3921 = vpack.c.b16 %v3813, %v3810
          %v3922 = vpack.c.b16 %v3817, %v3814
          %v3923 = vpack.c.b16 %v3818, %v3815
          %v3924 = vpack.c.b16 %v3819, %v3816
          %v3925 = vpack.c.b16 %v3823, %v3820
          %v3926 = vpack.c.b16 %v3824, %v3821
          %v3927 = vpack.c.b16 %v3825, %v3822
          %v3928 = vpack.c.b16 %v3829, %v3826
          %v3929 = vpack.c.b16 %v3830, %v3827
          %v3930 = vpack.c.b16 %v3831, %v3828
          %v3931 = vpack.c.b16 %v3835, %v3832
          %v3932 = vpack.c.b16 %v3836, %v3833
          %v3933 = vpack.c.b16 %v3837, %v3834
          %v3934 = vpack.c.b16 %v3841, %v3838
          %v3935 = vpack.c.b16 %v3842, %v3839
          %v3936 = vpack.c.b16 %v3843, %v3840
          %v3937 = vpack.c.b16 %v3847, %v3844
          %v3938 = vpack.c.b16 %v3848, %v3845
          %v3939 = vpack.c.b16 %v3849, %v3846
          %v3940 = vpack.c.b16 %v3853, %v3850
          %v3941 = vpack.c.b16 %v3854, %v3851
          %v3942 = vpack.c.b16 %v3855, %v3852
          %v3943 = vpack.c.b16 %v3859, %v3856
          %v3944 = vpack.c.b16 %v3860, %v3857
          %v3945 = vpack.c.b16 %v3861, %v3858
          %v3946 = vpack.c.b16 %v3865, %v3862
          %v3947 = vpack.c.b16 %v3866, %v3863
          %v3948 = vpack.c.b16 %v3867, %v3864
          %v3949 = vpack.c.b16 %v3871, %v3868
          %v3950 = vpack.c.b16 %v3872, %v3869
          %v3951 = vpack.c.b16 %v3873, %v3870
          %v3952 = vpack.c.b16 %v3877, %v3874
          %v3953 = vpack.c.b16 %v3878, %v3875
          %v3954 = vpack.c.b16 %v3879, %v3876
          %v3955 = vpack.c.b16 %v3883, %v3880
          %v3956 = vpack.c.b16 %v3884, %v3881
          %v3957 = vpack.c.b16 %v3885, %v3882
          %4030 = vmatprep.subr.bf16.mxu0 %v3887
          %4031 = vmatpush1.bf16.msra.mxu0 %v3886
          %4032 = vmatprep.subr.bf16.mxu0 %v3890
          %4033 = vmatpush1.bf16.msra.mxu0 %v3889
          %4034 = vmatprep.subr.bf16.mxu0 %v3893
          %4035 = vmatpush1.bf16.msra.mxu0 %v3892
          %4036 = vmatprep.subr.bf16.mxu0 %v3896
          %4037 = vmatpush1.bf16.msra.mxu0 %v3895
          %4038 = vmatprep.subr.bf16.mxu0 %v3899
          %4039 = vmatpush1.bf16.msra.mxu0 %v3898
          %4040 = vmatprep.subr.bf16.mxu0 %v3902
          %4041 = vmatpush1.bf16.msra.mxu0 %v3901
          %4042 = vmatprep.subr.bf16.mxu0 %v3905
          %4043 = vmatpush1.bf16.msra.mxu0 %v3904
          %4044 = vmatprep.subr.bf16.mxu0 %v3908
          %4045 = vmatpush1.bf16.msra.mxu0 %v3907
          %4046 = vmatprep.subr.bf16.mxu0 %v3911
          %4047 = vmatpush1.bf16.msra.mxu0 %v3910
          %4048 = vmatprep.subr.bf16.mxu0 %v3914
          %4049 = vmatpush1.bf16.msra.mxu0 %v3913
          %4050 = vmatprep.subr.bf16.mxu0 %v3917
          %4051 = vmatpush1.bf16.msra.mxu0 %v3916
          %4052 = vmatprep.subr.bf16.mxu0 %v3920
          %4053 = vmatpush1.bf16.msra.mxu0 %v3919
          %4054 = vmatprep.subr.bf16.mxu0 %v3923
          %4055 = vmatpush1.bf16.msra.mxu0 %v3922
          %4056 = vmatprep.subr.bf16.mxu0 %v3926
          %4057 = vmatpush1.bf16.msra.mxu0 %v3925
          %4058 = vmatprep.subr.bf16.mxu0 %v3929
          %4059 = vmatpush1.bf16.msra.mxu0 %v3928
          %4060 = vmatprep.subr.bf16.mxu0 %v3932
          %4061 = vmatpush1.bf16.msra.mxu0 %v3931
          %4062 = vmatprep.mubr.bf16.mxu0 %v3628
          %4063 = vmatmul.mubr.bf16.gmra.mrb[0].mxu0 %v3627
          %v4064 = vpop.f32.mrb[0].mxu0
          %v4065 = vadd.f32 %v3634, %v4064
          %v4066 = vpop.f32.mrb[0].mxu0
          %v4067 = vadd.f32 %v3638, %v4066
          %v4068 = vpop.f32.mrb[0].mxu0
          %v4069 = vpop.f32.mrb[0].mxu0
          %4070 = vdwg.mxu0
          %4071 = vmatprep.subr.bf16.mxu0 %v3935
          %4072 = vmatpush1.bf16.msra.mxu0 %v3934
          %4073 = vmatprep.subr.bf16.mxu0 %v3938
          %4074 = vmatpush1.bf16.msra.mxu0 %v3937
          %4075 = vmatprep.subr.bf16.mxu0 %v3941
          %4076 = vmatpush1.bf16.msra.mxu0 %v3940
          %4077 = vmatprep.subr.bf16.mxu0 %v3944
          %4078 = vmatpush1.bf16.msra.mxu0 %v3943
          %4079 = vmatprep.subr.bf16.mxu0 %v3947
          %4080 = vmatpush1.bf16.msra.mxu0 %v3946
          %4081 = vmatprep.subr.bf16.mxu0 %v3950
          %4082 = vmatpush1.bf16.msra.mxu0 %v3949
          %4083 = vmatprep.subr.bf16.mxu0 %v3953
          %4084 = vmatpush1.bf16.msra.mxu0 %v3952
          %4085 = vmatprep.subr.bf16.mxu0 %v3956
          %4086 = vmatpush1.bf16.msra.mxu0 %v3955
          %4087 = vmatprep.subr.bf16.mxu0 0
          %4088 = vmatpush1.bf16.msra.mxu0 0
          %4089 = vmatprep.subr.bf16.mxu0 0
          %4090 = vmatpush1.bf16.msra.mxu0 0
          %4091 = vmatprep.subr.bf16.mxu0 0
          %4092 = vmatpush1.bf16.msra.mxu0 0
          %4093 = vmatprep.subr.bf16.mxu0 0
          %4094 = vmatpush1.bf16.msra.mxu0 0
          %4095 = vmatprep.subr.bf16.mxu0 0
          %4096 = vmatpush1.bf16.msra.mxu0 0
          %4097 = vmatprep.subr.bf16.mxu0 0
          %4098 = vmatpush1.bf16.msra.mxu0 0
          %4099 = vmatprep.subr.bf16.mxu0 0
          %4100 = vmatpush1.bf16.msra.mxu0 0
          %4101 = vmatprep.subr.bf16.mxu0 0
          %4102 = vmatpush1.bf16.msra.mxu0 0
          %4103 = vmatprep.mubr.bf16.mxu0 0
          %4104 = vmatmul.mubr.bf16.gmra.mrb[0].mxu0 %v3629
          %v4105 = vpop.f32.mrb[0].mxu0
          %v4106 = vadd.f32 %v4065, %v4105
          %v4107 = vpop.f32.mrb[0].mxu0
          %v4108 = vadd.f32 %v4067, %v4107
          %v4109 = vpop.f32.mrb[0].mxu0
          %v4110 = vpop.f32.mrb[0].mxu0
          %4111 = vdwg.mxu0
          %4112 = vmatprep.subr.bf16.mxu0 0
          %4113 = vmatpush1.bf16.msra.mxu0 %v3888
          %4114 = vmatprep.subr.bf16.mxu0 0
          %4115 = vmatpush1.bf16.msra.mxu0 %v3891
          %4116 = vmatprep.subr.bf16.mxu0 0
          %4117 = vmatpush1.bf16.msra.mxu0 %v3894
          %4118 = vmatprep.subr.bf16.mxu0 0
          %4119 = vmatpush1.bf16.msra.mxu0 %v3897
          %4120 = vmatprep.subr.bf16.mxu0 0
          %4121 = vmatpush1.bf16.msra.mxu0 %v3900
          %4122 = vmatprep.subr.bf16.mxu0 0
          %4123 = vmatpush1.bf16.msra.mxu0 %v3903
          %4124 = vmatprep.subr.bf16.mxu0 0
          %4125 = vmatpush1.bf16.msra.mxu0 %v3906
          %4126 = vmatprep.subr.bf16.mxu0 0
          %4127 = vmatpush1.bf16.msra.mxu0 %v3909
          %4128 = vmatprep.subr.bf16.mxu0 0
          %4129 = vmatpush1.bf16.msra.mxu0 %v3912
          %4130 = vmatprep.subr.bf16.mxu0 0
          %4131 = vmatpush1.bf16.msra.mxu0 %v3915
          %4132 = vmatprep.subr.bf16.mxu0 0
          %4133 = vmatpush1.bf16.msra.mxu0 %v3918
          %4134 = vmatprep.subr.bf16.mxu0 0
          %4135 = vmatpush1.bf16.msra.mxu0 %v3921
          %4136 = vmatprep.subr.bf16.mxu0 0
          %4137 = vmatpush1.bf16.msra.mxu0 %v3924
          %4138 = vmatprep.subr.bf16.mxu0 0
          %4139 = vmatpush1.bf16.msra.mxu0 %v3927
          %4140 = vmatprep.subr.bf16.mxu0 0
          %4141 = vmatpush1.bf16.msra.mxu0 %v3930
          %4142 = vmatprep.subr.bf16.mxu0 0
          %4143 = vmatpush1.bf16.msra.mxu0 %v3933
          %4144 = vmatprep.mubr.bf16.mxu0 %v3628
          %4145 = vmatmul.mubr.bf16.gmra.mrb[0].mxu0 %v3627
          %v4146 = vpop.f32.mrb[0].mxu0
          %v4147 = vadd.f32 %v3642, %v4146
          %v4148 = vpop.f32.mrb[0].mxu0
          %v4149 = vpop.f32.mrb[0].mxu0
          %v4150 = vpop.f32.mrb[0].mxu0
          %4151 = vdwg.mxu0
          %4152 = vmatprep.subr.bf16.mxu0 0
          %4153 = vmatpush1.bf16.msra.mxu0 %v3936
          %4154 = vmatprep.subr.bf16.mxu0 0
          %4155 = vmatpush1.bf16.msra.mxu0 %v3939
          %4156 = vmatprep.subr.bf16.mxu0 0
          %4157 = vmatpush1.bf16.msra.mxu0 %v3942
          %4158 = vmatprep.subr.bf16.mxu0 0
          %4159 = vmatpush1.bf16.msra.mxu0 %v3945
          %4160 = vmatprep.subr.bf16.mxu0 0
          %4161 = vmatpush1.bf16.msra.mxu0 %v3948
          %4162 = vmatprep.subr.bf16.mxu0 0
          %4163 = vmatpush1.bf16.msra.mxu0 %v3951
          %4164 = vmatprep.subr.bf16.mxu0 0
          %4165 = vmatpush1.bf16.msra.mxu0 %v3954
          %4166 = vmatprep.subr.bf16.mxu0 0
          %4167 = vmatpush1.bf16.msra.mxu0 %v3957
          %4168 = vmatprep.subr.bf16.mxu0 0
          %4169 = vmatpush1.bf16.msra.mxu0 0
          %4170 = vmatprep.subr.bf16.mxu0 0
          %4171 = vmatpush1.bf16.msra.mxu0 0
          %4172 = vmatprep.subr.bf16.mxu0 0
          %4173 = vmatpush1.bf16.msra.mxu0 0
          %4174 = vmatprep.subr.bf16.mxu0 0
          %4175 = vmatpush1.bf16.msra.mxu0 0
          %4176 = vmatprep.subr.bf16.mxu0 0
          %4177 = vmatpush1.bf16.msra.mxu0 0
          %4178 = vmatprep.subr.bf16.mxu0 0
          %4179 = vmatpush1.bf16.msra.mxu0 0
          %4180 = vmatprep.subr.bf16.mxu0 0
          %4181 = vmatpush1.bf16.msra.mxu0 0
          %4182 = vmatprep.subr.bf16.mxu0 0
          %4183 = vmatpush1.bf16.msra.mxu0 0
          %4184 = vmatprep.mubr.bf16.mxu0 0
          %4185 = vmatmul.mubr.bf16.gmra.mrb[0].mxu0 %v3629
          %v4186 = vpop.f32.mrb[0].mxu0
          %v4187 = vadd.f32 %v4147, %v4186
          %v4188 = vpop.f32.mrb[0].mxu0
          %v4189 = vpop.f32.mrb[0].mxu0
          %v4190 = vpop.f32.mrb[0].mxu0
          %4191 = vdwg.mxu0
          %v4192 = vmax.f32 %v4106, 0.0
          %v4193 = vmax.f32 %v4108, 0.0
          %v4194 = vmax.f32 %v4187, 0.0
          %s4195 = scalar_lea.vmem %s611, 1152 [#allocation19]
          %v4196 = vld [vmem:[%s4195] sm:$0xff]
          %v4197 = vld [vmem:[%s4195 + $0x8] sm:$0xf]
          %v4198 = vld [vmem:[%s4195 + $0xc] sm:$0xff]
          %v4199 = vld [vmem:[%s4195 + $0x14] sm:$0xf]
          %v4200 = vld [vmem:[%s4195 + $0x18] sm:$0xff]
          %v4201 = vld [vmem:[%s4195 + $0x20] sm:$0xf]
          %v4202 = vld [vmem:[%s4195 + $0x24] sm:$0xff]
          %v4203 = vld [vmem:[%s4195 + $0x2c] sm:$0xf]
          %v4204 = vld [vmem:[%s4195 + $0x30] sm:$0xff]
          %v4205 = vld [vmem:[%s4195 + $0x38] sm:$0xf]
          %v4206 = vld [vmem:[%s4195 + $0x3c] sm:$0xff]
          %v4207 = vld [vmem:[%s4195 + $0x44] sm:$0xf]
          %v4208 = vld [vmem:[%s4195 + $0x48] sm:$0xff]
          %v4209 = vld [vmem:[%s4195 + $0x50] sm:$0xf]
          %v4210 = vld [vmem:[%s4195 + $0x54] sm:$0xff]
          %v4211 = vld [vmem:[%s4195 + $0x5c] sm:$0xf]
          %v4212 = vld [vmem:[%s4195 + $0x60] sm:$0xff]
          %v4213 = vld [vmem:[%s4195 + $0x68] sm:$0xf]
          %v4214 = vld [vmem:[%s4195 + $0x6c] sm:$0xff]
          %v4215 = vld [vmem:[%s4195 + $0x74] sm:$0xf]
          %v4216 = vld [vmem:[%s4195 + $0x78] sm:$0xff]
          %v4217 = vld [vmem:[%s4195 + $0x80] sm:$0xf]
          %v4218 = vld [vmem:[%s4195 + $0x84] sm:$0xff]
          %v4219 = vld [vmem:[%s4195 + $0x8c] sm:$0xf]
          %v4220 = vld [vmem:[%s4195 + $0x90] sm:$0xff]
          %v4221 = vld [vmem:[%s4195 + $0x98] sm:$0xf]
          %v4222 = vld [vmem:[%s4195 + $0x9c] sm:$0xff]
          %v4223 = vld [vmem:[%s4195 + $0xa4] sm:$0xf]
          %v4224 = vld [vmem:[%s4195 + $0xa8] sm:$0xff]
          %v4225 = vld [vmem:[%s4195 + $0xb0] sm:$0xf]
          %v4226 = vld [vmem:[%s4195 + $0xb4] sm:$0xff]
          %v4227 = vld [vmem:[%s4195 + $0xbc] sm:$0xf]
          %v4228 = vld [vmem:[%s4195 + $0xc0] sm:$0xff]
          %v4229 = vld [vmem:[%s4195 + $0xc8] sm:$0xf]
          %v4230 = vld [vmem:[%s4195 + $0xcc] sm:$0xff]
          %v4231 = vld [vmem:[%s4195 + $0xd4] sm:$0xf]
          %v4232 = vld [vmem:[%s4195 + $0xd8] sm:$0xff]
          %v4233 = vld [vmem:[%s4195 + $0xe0] sm:$0xf]
          %v4234 = vld [vmem:[%s4195 + $0xe4] sm:$0xff]
          %v4235 = vld [vmem:[%s4195 + $0xec] sm:$0xf]
          %v4236 = vld [vmem:[%s4195 + $0xf0] sm:$0xff]
          %v4237 = vld [vmem:[%s4195 + $0xf8] sm:$0xf]
          %v4238 = vld [vmem:[%s4195 + $0xfc] sm:$0xff]
          %v4239 = vld [vmem:[%s4195 + $0x104] sm:$0xf]
          %v4240 = vld [vmem:[%s4195 + $0x108] sm:$0xff]
          %v4241 = vld [vmem:[%s4195 + $0x110] sm:$0xf]
          %v4242 = vld [vmem:[%s4195 + $0x114] sm:$0xff]
          %v4243 = vld [vmem:[%s4195 + $0x11c] sm:$0xf]
          %v4244 = vld [vmem:[%s4195 + $0x120] sm:$0xff]
          %v4245 = vld [vmem:[%s4195 + $0x128] sm:$0xf]
          %v4246 = vld [vmem:[%s4195 + $0x12c] sm:$0xff]
          %v4247 = vld [vmem:[%s4195 + $0x134] sm:$0xf]
          %v4248 = vld [vmem:[%s4195 + $0x138] sm:$0xff]
          %v4249 = vld [vmem:[%s4195 + $0x140] sm:$0xf]
          %v4250 = vld [vmem:[%s4195 + $0x144] sm:$0xff]
          %v4251 = vld [vmem:[%s4195 + $0x14c] sm:$0xf]
          %v4252 = vld [vmem:[%s4195 + $0x150] sm:$0xff]
          %v4253 = vld [vmem:[%s4195 + $0x158] sm:$0xf]
          %v4254 = vld [vmem:[%s4195 + $0x15c] sm:$0xff]
          %v4255 = vld [vmem:[%s4195 + $0x164] sm:$0xf]
          %v4256 = vld [vmem:[%s4195 + $0x168] sm:$0xff]
          %v4257 = vld [vmem:[%s4195 + $0x170] sm:$0xf]
          %v4258 = vld [vmem:[%s4195 + $0x174] sm:$0xff]
          %v4259 = vld [vmem:[%s4195 + $0x17c] sm:$0xf]
          %v4260 = vld [vmem:[%s4195 + $0x180] sm:$0xff]
          %v4261 = vld [vmem:[%s4195 + $0x188] sm:$0xf]
          %v4262 = vld [vmem:[%s4195 + $0x18c] sm:$0xff]
          %v4263 = vld [vmem:[%s4195 + $0x194] sm:$0xf]
          %v4264 = vld [vmem:[%s4195 + $0x198] sm:$0xff]
          %v4265 = vld [vmem:[%s4195 + $0x1a0] sm:$0xf]
          %v4266 = vld [vmem:[%s4195 + $0x1a4] sm:$0xff]
          %v4267 = vld [vmem:[%s4195 + $0x1ac] sm:$0xf]
          %v4268 = vld [vmem:[%s4195 + $0x1b0] sm:$0xff]
          %v4269 = vld [vmem:[%s4195 + $0x1b8] sm:$0xf]
          %v4270 = vld [vmem:[%s4195 + $0x1bc] sm:$0xff]
          %v4271 = vld [vmem:[%s4195 + $0x1c4] sm:$0xf]
          %v4272 = vld [vmem:[%s4195 + $0x1c8] sm:$0xff]
          %v4273 = vld [vmem:[%s4195 + $0x1d0] sm:$0xf]
          %v4274 = vld [vmem:[%s4195 + $0x1d4] sm:$0xff]
          %v4275 = vld [vmem:[%s4195 + $0x1dc] sm:$0xf]
          %v4276 = vld [vmem:[%s4195 + $0x1e0] sm:$0xff]
          %v4277 = vld [vmem:[%s4195 + $0x1e8] sm:$0xf]
          %v4278 = vld [vmem:[%s4195 + $0x1ec] sm:$0xff]
          %v4279 = vld [vmem:[%s4195 + $0x1f4] sm:$0xf]
          %v4280 = vld [vmem:[%s4195 + $0x1f8] sm:$0xff]
          %v4281 = vld [vmem:[%s4195 + $0x200] sm:$0xf]
          %v4282 = vld [vmem:[%s4195 + $0x204] sm:$0xff]
          %v4283 = vld [vmem:[%s4195 + $0x20c] sm:$0xf]
          %v4284 = vld [vmem:[%s4195 + $0x210] sm:$0xff]
          %v4285 = vld [vmem:[%s4195 + $0x218] sm:$0xf]
          %v4286 = vld [vmem:[%s4195 + $0x21c] sm:$0xff]
          %v4287 = vld [vmem:[%s4195 + $0x224] sm:$0xf]
          %v4288 = vld [vmem:[%s4195 + $0x228] sm:$0xff]
          %v4289 = vld [vmem:[%s4195 + $0x230] sm:$0xf]
          %v4290 = vld [vmem:[%s4195 + $0x234] sm:$0xff]
          %v4291 = vld [vmem:[%s4195 + $0x23c] sm:$0xf]
          %s4292 = scalar_lea.vmem %s629, 2 [#allocation21]
          %v4293 = vld [vmem:[%s4292] ss:$4 sm:$0x7]
          %v4294 = vpack.c.bf16 %v4192, %v4192
          %v4295 = vpack.c.bf16 %v4193, %v4193
          %v4296 = vpack.c.bf16 %v4194, %v4194
          %v4298 = vlaneseq
          %v4299 = vshrl.u32 %v4298, 7
          %v4300 = vsub.s32 0, %v4299
          %v4301 = vrot.slane %v4293, %v4300
          %v4302 = vlaneseq
          %v4303 = vshrl.u32 %v4302, 7
          %v4304 = vsub.s32 1, %v4303
          %v4305 = vrot.slane %v4293, %v4304
          %v4306 = vlaneseq
          %v4307 = vshrl.u32 %v4306, 7
          %v4308 = vsub.s32 2, %v4307
          %v4309 = vrot.slane %v4293, %v4308
          %v4409 = vunpack.c.l.b16 %v4196
          %v4410 = vunpack.c.h.b16 %v4196
          %v4411 = vunpack.c.l.b16 %v4197
          %v4412 = vunpack.c.l.b16 %v4198
          %v4413 = vunpack.c.h.b16 %v4198
          %v4414 = vunpack.c.l.b16 %v4199
          %v4415 = vunpack.c.l.b16 %v4200
          %v4416 = vunpack.c.h.b16 %v4200
          %v4417 = vunpack.c.l.b16 %v4201
          %v4418 = vunpack.c.l.b16 %v4202
          %v4419 = vunpack.c.h.b16 %v4202
          %v4420 = vunpack.c.l.b16 %v4203
          %v4421 = vunpack.c.l.b16 %v4204
          %v4422 = vunpack.c.h.b16 %v4204
          %v4423 = vunpack.c.l.b16 %v4205
          %v4424 = vunpack.c.l.b16 %v4206
          %v4425 = vunpack.c.h.b16 %v4206
          %v4426 = vunpack.c.l.b16 %v4207
          %v4427 = vunpack.c.l.b16 %v4208
          %v4428 = vunpack.c.h.b16 %v4208
          %v4429 = vunpack.c.l.b16 %v4209
          %v4430 = vunpack.c.l.b16 %v4210
          %v4431 = vunpack.c.h.b16 %v4210
          %v4432 = vunpack.c.l.b16 %v4211
          %v4433 = vunpack.c.l.b16 %v4212
          %v4434 = vunpack.c.h.b16 %v4212
          %v4435 = vunpack.c.l.b16 %v4213
          %v4436 = vunpack.c.l.b16 %v4214
          %v4437 = vunpack.c.h.b16 %v4214
          %v4438 = vunpack.c.l.b16 %v4215
          %v4439 = vunpack.c.l.b16 %v4216
          %v4440 = vunpack.c.h.b16 %v4216
          %v4441 = vunpack.c.l.b16 %v4217
          %v4442 = vunpack.c.l.b16 %v4218
          %v4443 = vunpack.c.h.b16 %v4218
          %v4444 = vunpack.c.l.b16 %v4219
          %v4445 = vunpack.c.l.b16 %v4220
          %v4446 = vunpack.c.h.b16 %v4220
          %v4447 = vunpack.c.l.b16 %v4221
          %v4448 = vunpack.c.l.b16 %v4222
          %v4449 = vunpack.c.h.b16 %v4222
          %v4450 = vunpack.c.l.b16 %v4223
          %v4451 = vunpack.c.l.b16 %v4224
          %v4452 = vunpack.c.h.b16 %v4224
          %v4453 = vunpack.c.l.b16 %v4225
          %v4454 = vunpack.c.l.b16 %v4226
          %v4455 = vunpack.c.h.b16 %v4226
          %v4456 = vunpack.c.l.b16 %v4227
          %v4457 = vunpack.c.l.b16 %v4228
          %v4458 = vunpack.c.h.b16 %v4228
          %v4459 = vunpack.c.l.b16 %v4229
          %v4460 = vunpack.c.l.b16 %v4230
          %v4461 = vunpack.c.h.b16 %v4230
          %v4462 = vunpack.c.l.b16 %v4231
          %v4463 = vunpack.c.l.b16 %v4232
          %v4464 = vunpack.c.h.b16 %v4232
          %v4465 = vunpack.c.l.b16 %v4233
          %v4466 = vunpack.c.l.b16 %v4234
          %v4467 = vunpack.c.h.b16 %v4234
          %v4468 = vunpack.c.l.b16 %v4235
          %v4469 = vunpack.c.l.b16 %v4236
          %v4470 = vunpack.c.h.b16 %v4236
          %v4471 = vunpack.c.l.b16 %v4237
          %v4472 = vunpack.c.l.b16 %v4238
          %v4473 = vunpack.c.h.b16 %v4238
          %v4474 = vunpack.c.l.b16 %v4239
          %v4475 = vunpack.c.l.b16 %v4240
          %v4476 = vunpack.c.h.b16 %v4240
          %v4477 = vunpack.c.l.b16 %v4241
          %v4478 = vunpack.c.l.b16 %v4242
          %v4479 = vunpack.c.h.b16 %v4242
          %v4480 = vunpack.c.l.b16 %v4243
          %v4481 = vunpack.c.l.b16 %v4244
          %v4482 = vunpack.c.h.b16 %v4244
          %v4483 = vunpack.c.l.b16 %v4245
          %v4484 = vunpack.c.l.b16 %v4246
          %v4485 = vunpack.c.h.b16 %v4246
          %v4486 = vunpack.c.l.b16 %v4247
          %v4487 = vunpack.c.l.b16 %v4248
          %v4488 = vunpack.c.h.b16 %v4248
          %v4489 = vunpack.c.l.b16 %v4249
          %v4490 = vunpack.c.l.b16 %v4250
          %v4491 = vunpack.c.h.b16 %v4250
          %v4492 = vunpack.c.l.b16 %v4251
          %v4493 = vunpack.c.l.b16 %v4252
          %v4494 = vunpack.c.h.b16 %v4252
          %v4495 = vunpack.c.l.b16 %v4253
          %v4496 = vunpack.c.l.b16 %v4254
          %v4497 = vunpack.c.h.b16 %v4254
          %v4498 = vunpack.c.l.b16 %v4255
          %v4499 = vunpack.c.l.b16 %v4256
          %v4500 = vunpack.c.h.b16 %v4256
          %v4501 = vunpack.c.l.b16 %v4257
          %v4502 = vunpack.c.l.b16 %v4258
          %v4503 = vunpack.c.h.b16 %v4258
          %v4504 = vunpack.c.l.b16 %v4259
          %v4505 = vunpack.c.l.b16 %v4260
          %v4506 = vunpack.c.h.b16 %v4260
          %v4507 = vunpack.c.l.b16 %v4261
          %v4508 = vunpack.c.l.b16 %v4262
          %v4509 = vunpack.c.h.b16 %v4262
          %v4510 = vunpack.c.l.b16 %v4263
          %v4511 = vunpack.c.l.b16 %v4264
          %v4512 = vunpack.c.h.b16 %v4264
          %v4513 = vunpack.c.l.b16 %v4265
          %v4514 = vunpack.c.l.b16 %v4266
          %v4515 = vunpack.c.h.b16 %v4266
          %v4516 = vunpack.c.l.b16 %v4267
          %v4517 = vunpack.c.l.b16 %v4268
          %v4518 = vunpack.c.h.b16 %v4268
          %v4519 = vunpack.c.l.b16 %v4269
          %v4520 = vunpack.c.l.b16 %v4270
          %v4521 = vunpack.c.h.b16 %v4270
          %v4522 = vunpack.c.l.b16 %v4271
          %v4523 = vunpack.c.l.b16 %v4272
          %v4524 = vunpack.c.h.b16 %v4272
          %v4525 = vunpack.c.l.b16 %v4273
          %v4526 = vunpack.c.l.b16 %v4274
          %v4527 = vunpack.c.h.b16 %v4274
          %v4528 = vunpack.c.l.b16 %v4275
          %v4529 = vunpack.c.l.b16 %v4276
          %v4530 = vunpack.c.h.b16 %v4276
          %v4531 = vunpack.c.l.b16 %v4277
          %v4532 = vunpack.c.l.b16 %v4278
          %v4533 = vunpack.c.h.b16 %v4278
          %v4534 = vunpack.c.l.b16 %v4279
          %v4535 = vunpack.c.l.b16 %v4280
          %v4536 = vunpack.c.h.b16 %v4280
          %v4537 = vunpack.c.l.b16 %v4281
          %v4538 = vunpack.c.l.b16 %v4282
          %v4539 = vunpack.c.h.b16 %v4282
          %v4540 = vunpack.c.l.b16 %v4283
          %v4541 = vunpack.c.l.b16 %v4284
          %v4542 = vunpack.c.h.b16 %v4284
          %v4543 = vunpack.c.l.b16 %v4285
          %v4544 = vunpack.c.l.b16 %v4286
          %v4545 = vunpack.c.h.b16 %v4286
          %v4546 = vunpack.c.l.b16 %v4287
          %v4547 = vunpack.c.l.b16 %v4288
          %v4548 = vunpack.c.h.b16 %v4288
          %v4549 = vunpack.c.l.b16 %v4289
          %v4550 = vunpack.c.l.b16 %v4290
          %v4551 = vunpack.c.h.b16 %v4290
          %v4552 = vunpack.c.l.b16 %v4291
          %v4553 = vpack.c.b16 %v4412, %v4409
          %v4554 = vpack.c.b16 %v4413, %v4410
          %v4555 = vpack.c.b16 %v4414, %v4411
          %v4556 = vpack.c.b16 %v4418, %v4415
          %v4557 = vpack.c.b16 %v4419, %v4416
          %v4558 = vpack.c.b16 %v4420, %v4417
          %v4559 = vpack.c.b16 %v4424, %v4421
          %v4560 = vpack.c.b16 %v4425, %v4422
          %v4561 = vpack.c.b16 %v4426, %v4423
          %v4562 = vpack.c.b16 %v4430, %v4427
          %v4563 = vpack.c.b16 %v4431, %v4428
          %v4564 = vpack.c.b16 %v4432, %v4429
          %v4565 = vpack.c.b16 %v4436, %v4433
          %v4566 = vpack.c.b16 %v4437, %v4434
          %v4567 = vpack.c.b16 %v4438, %v4435
          %v4568 = vpack.c.b16 %v4442, %v4439
          %v4569 = vpack.c.b16 %v4443, %v4440
          %v4570 = vpack.c.b16 %v4444, %v4441
          %v4571 = vpack.c.b16 %v4448, %v4445
          %v4572 = vpack.c.b16 %v4449, %v4446
          %v4573 = vpack.c.b16 %v4450, %v4447
          %v4574 = vpack.c.b16 %v4454, %v4451
          %v4575 = vpack.c.b16 %v4455, %v4452
          %v4576 = vpack.c.b16 %v4456, %v4453
          %v4577 = vpack.c.b16 %v4460, %v4457
          %v4578 = vpack.c.b16 %v4461, %v4458
          %v4579 = vpack.c.b16 %v4462, %v4459
          %v4580 = vpack.c.b16 %v4466, %v4463
          %v4581 = vpack.c.b16 %v4467, %v4464
          %v4582 = vpack.c.b16 %v4468, %v4465
          %v4583 = vpack.c.b16 %v4472, %v4469
          %v4584 = vpack.c.b16 %v4473, %v4470
          %v4585 = vpack.c.b16 %v4474, %v4471
          %v4586 = vpack.c.b16 %v4478, %v4475
          %v4587 = vpack.c.b16 %v4479, %v4476
          %v4588 = vpack.c.b16 %v4480, %v4477
          %v4589 = vpack.c.b16 %v4484, %v4481
          %v4590 = vpack.c.b16 %v4485, %v4482
          %v4591 = vpack.c.b16 %v4486, %v4483
          %v4592 = vpack.c.b16 %v4490, %v4487
          %v4593 = vpack.c.b16 %v4491, %v4488
          %v4594 = vpack.c.b16 %v4492, %v4489
          %v4595 = vpack.c.b16 %v4496, %v4493
          %v4596 = vpack.c.b16 %v4497, %v4494
          %v4597 = vpack.c.b16 %v4498, %v4495
          %v4598 = vpack.c.b16 %v4502, %v4499
          %v4599 = vpack.c.b16 %v4503, %v4500
          %v4600 = vpack.c.b16 %v4504, %v4501
          %v4601 = vpack.c.b16 %v4508, %v4505
          %v4602 = vpack.c.b16 %v4509, %v4506
          %v4603 = vpack.c.b16 %v4510, %v4507
          %v4604 = vpack.c.b16 %v4514, %v4511
          %v4605 = vpack.c.b16 %v4515, %v4512
          %v4606 = vpack.c.b16 %v4516, %v4513
          %v4607 = vpack.c.b16 %v4520, %v4517
          %v4608 = vpack.c.b16 %v4521, %v4518
          %v4609 = vpack.c.b16 %v4522, %v4519
          %v4610 = vpack.c.b16 %v4526, %v4523
          %v4611 = vpack.c.b16 %v4527, %v4524
          %v4612 = vpack.c.b16 %v4528, %v4525
          %v4613 = vpack.c.b16 %v4532, %v4529
          %v4614 = vpack.c.b16 %v4533, %v4530
          %v4615 = vpack.c.b16 %v4534, %v4531
          %v4616 = vpack.c.b16 %v4538, %v4535
          %v4617 = vpack.c.b16 %v4539, %v4536
          %v4618 = vpack.c.b16 %v4540, %v4537
          %v4619 = vpack.c.b16 %v4544, %v4541
          %v4620 = vpack.c.b16 %v4545, %v4542
          %v4621 = vpack.c.b16 %v4546, %v4543
          %v4622 = vpack.c.b16 %v4550, %v4547
          %v4623 = vpack.c.b16 %v4551, %v4548
          %v4624 = vpack.c.b16 %v4552, %v4549
          %4697 = vmatprep.subr.bf16.mxu0 %v4554
          %4698 = vmatpush1.bf16.msra.mxu0 %v4553
          %4699 = vmatprep.subr.bf16.mxu0 %v4557
          %4700 = vmatpush1.bf16.msra.mxu0 %v4556
          %4701 = vmatprep.subr.bf16.mxu0 %v4560
          %4702 = vmatpush1.bf16.msra.mxu0 %v4559
          %4703 = vmatprep.subr.bf16.mxu0 %v4563
          %4704 = vmatpush1.bf16.msra.mxu0 %v4562
          %4705 = vmatprep.subr.bf16.mxu0 %v4566
          %4706 = vmatpush1.bf16.msra.mxu0 %v4565
          %4707 = vmatprep.subr.bf16.mxu0 %v4569
          %4708 = vmatpush1.bf16.msra.mxu0 %v4568
          %4709 = vmatprep.subr.bf16.mxu0 %v4572
          %4710 = vmatpush1.bf16.msra.mxu0 %v4571
          %4711 = vmatprep.subr.bf16.mxu0 %v4575
          %4712 = vmatpush1.bf16.msra.mxu0 %v4574
          %4713 = vmatprep.subr.bf16.mxu0 %v4578
          %4714 = vmatpush1.bf16.msra.mxu0 %v4577
          %4715 = vmatprep.subr.bf16.mxu0 %v4581
          %4716 = vmatpush1.bf16.msra.mxu0 %v4580
          %4717 = vmatprep.subr.bf16.mxu0 %v4584
          %4718 = vmatpush1.bf16.msra.mxu0 %v4583
          %4719 = vmatprep.subr.bf16.mxu0 %v4587
          %4720 = vmatpush1.bf16.msra.mxu0 %v4586
          %4721 = vmatprep.subr.bf16.mxu0 %v4590
          %4722 = vmatpush1.bf16.msra.mxu0 %v4589
          %4723 = vmatprep.subr.bf16.mxu0 %v4593
          %4724 = vmatpush1.bf16.msra.mxu0 %v4592
          %4725 = vmatprep.subr.bf16.mxu0 %v4596
          %4726 = vmatpush1.bf16.msra.mxu0 %v4595
          %4727 = vmatprep.subr.bf16.mxu0 %v4599
          %4728 = vmatpush1.bf16.msra.mxu0 %v4598
          %4729 = vmatprep.mubr.bf16.mxu0 %v4295
          %4730 = vmatmul.mubr.bf16.gmra.mrb[0].mxu0 %v4294
          %v4731 = vpop.f32.mrb[0].mxu0
          %v4732 = vadd.f32 %v4301, %v4731
          %v4733 = vpop.f32.mrb[0].mxu0
          %v4734 = vadd.f32 %v4305, %v4733
          %v4735 = vpop.f32.mrb[0].mxu0
          %v4736 = vpop.f32.mrb[0].mxu0
          %4737 = vdwg.mxu0
          %4738 = vmatprep.subr.bf16.mxu0 %v4602
          %4739 = vmatpush1.bf16.msra.mxu0 %v4601
          %4740 = vmatprep.subr.bf16.mxu0 %v4605
          %4741 = vmatpush1.bf16.msra.mxu0 %v4604
          %4742 = vmatprep.subr.bf16.mxu0 %v4608
          %4743 = vmatpush1.bf16.msra.mxu0 %v4607
          %4744 = vmatprep.subr.bf16.mxu0 %v4611
          %4745 = vmatpush1.bf16.msra.mxu0 %v4610
          %4746 = vmatprep.subr.bf16.mxu0 %v4614
          %4747 = vmatpush1.bf16.msra.mxu0 %v4613
          %4748 = vmatprep.subr.bf16.mxu0 %v4617
          %4749 = vmatpush1.bf16.msra.mxu0 %v4616
          %4750 = vmatprep.subr.bf16.mxu0 %v4620
          %4751 = vmatpush1.bf16.msra.mxu0 %v4619
          %4752 = vmatprep.subr.bf16.mxu0 %v4623
          %4753 = vmatpush1.bf16.msra.mxu0 %v4622
          %4754 = vmatprep.subr.bf16.mxu0 0
          %4755 = vmatpush1.bf16.msra.mxu0 0
          %4756 = vmatprep.subr.bf16.mxu0 0
          %4757 = vmatpush1.bf16.msra.mxu0 0
          %4758 = vmatprep.subr.bf16.mxu0 0
          %4759 = vmatpush1.bf16.msra.mxu0 0
          %4760 = vmatprep.subr.bf16.mxu0 0
          %4761 = vmatpush1.bf16.msra.mxu0 0
          %4762 = vmatprep.subr.bf16.mxu0 0
          %4763 = vmatpush1.bf16.msra.mxu0 0
          %4764 = vmatprep.subr.bf16.mxu0 0
          %4765 = vmatpush1.bf16.msra.mxu0 0
          %4766 = vmatprep.subr.bf16.mxu0 0
          %4767 = vmatpush1.bf16.msra.mxu0 0
          %4768 = vmatprep.subr.bf16.mxu0 0
          %4769 = vmatpush1.bf16.msra.mxu0 0
          %4770 = vmatprep.mubr.bf16.mxu0 0
          %4771 = vmatmul.mubr.bf16.gmra.mrb[0].mxu0 %v4296
          %v4772 = vpop.f32.mrb[0].mxu0
          %v4773 = vadd.f32 %v4732, %v4772
          %v4774 = vpop.f32.mrb[0].mxu0
          %v4775 = vadd.f32 %v4734, %v4774
          %v4776 = vpop.f32.mrb[0].mxu0
          %v4777 = vpop.f32.mrb[0].mxu0
          %4778 = vdwg.mxu0
          %4779 = vmatprep.subr.bf16.mxu0 0
          %4780 = vmatpush1.bf16.msra.mxu0 %v4555
          %4781 = vmatprep.subr.bf16.mxu0 0
          %4782 = vmatpush1.bf16.msra.mxu0 %v4558
          %4783 = vmatprep.subr.bf16.mxu0 0
          %4784 = vmatpush1.bf16.msra.mxu0 %v4561
          %4785 = vmatprep.subr.bf16.mxu0 0
          %4786 = vmatpush1.bf16.msra.mxu0 %v4564
          %4787 = vmatprep.subr.bf16.mxu0 0
          %4788 = vmatpush1.bf16.msra.mxu0 %v4567
          %4789 = vmatprep.subr.bf16.mxu0 0
          %4790 = vmatpush1.bf16.msra.mxu0 %v4570
          %4791 = vmatprep.subr.bf16.mxu0 0
          %4792 = vmatpush1.bf16.msra.mxu0 %v4573
          %4793 = vmatprep.subr.bf16.mxu0 0
          %4794 = vmatpush1.bf16.msra.mxu0 %v4576
          %4795 = vmatprep.subr.bf16.mxu0 0
          %4796 = vmatpush1.bf16.msra.mxu0 %v4579
          %4797 = vmatprep.subr.bf16.mxu0 0
          %4798 = vmatpush1.bf16.msra.mxu0 %v4582
          %4799 = vmatprep.subr.bf16.mxu0 0
          %4800 = vmatpush1.bf16.msra.mxu0 %v4585
          %4801 = vmatprep.subr.bf16.mxu0 0
          %4802 = vmatpush1.bf16.msra.mxu0 %v4588
          %4803 = vmatprep.subr.bf16.mxu0 0
          %4804 = vmatpush1.bf16.msra.mxu0 %v4591
          %4805 = vmatprep.subr.bf16.mxu0 0
          %4806 = vmatpush1.bf16.msra.mxu0 %v4594
          %4807 = vmatprep.subr.bf16.mxu0 0
          %4808 = vmatpush1.bf16.msra.mxu0 %v4597
          %4809 = vmatprep.subr.bf16.mxu0 0
          %4810 = vmatpush1.bf16.msra.mxu0 %v4600
          %4811 = vmatprep.mubr.bf16.mxu0 %v4295
          %4812 = vmatmul.mubr.bf16.gmra.mrb[0].mxu0 %v4294
          %v4813 = vpop.f32.mrb[0].mxu0
          %v4814 = vadd.f32 %v4309, %v4813
          %v4815 = vpop.f32.mrb[0].mxu0
          %v4816 = vpop.f32.mrb[0].mxu0
          %v4817 = vpop.f32.mrb[0].mxu0
          %4818 = vdwg.mxu0
          %4819 = vmatprep.subr.bf16.mxu0 0
          %4820 = vmatpush1.bf16.msra.mxu0 %v4603
          %4821 = vmatprep.subr.bf16.mxu0 0
          %4822 = vmatpush1.bf16.msra.mxu0 %v4606
          %4823 = vmatprep.subr.bf16.mxu0 0
          %4824 = vmatpush1.bf16.msra.mxu0 %v4609
          %4825 = vmatprep.subr.bf16.mxu0 0
          %4826 = vmatpush1.bf16.msra.mxu0 %v4612
          %4827 = vmatprep.subr.bf16.mxu0 0
          %4828 = vmatpush1.bf16.msra.mxu0 %v4615
          %4829 = vmatprep.subr.bf16.mxu0 0
          %4830 = vmatpush1.bf16.msra.mxu0 %v4618
          %4831 = vmatprep.subr.bf16.mxu0 0
          %4832 = vmatpush1.bf16.msra.mxu0 %v4621
          %4833 = vmatprep.subr.bf16.mxu0 0
          %4834 = vmatpush1.bf16.msra.mxu0 %v4624
          %4835 = vmatprep.subr.bf16.mxu0 0
          %4836 = vmatpush1.bf16.msra.mxu0 0
          %4837 = vmatprep.subr.bf16.mxu0 0
          %4838 = vmatpush1.bf16.msra.mxu0 0
          %4839 = vmatprep.subr.bf16.mxu0 0
          %4840 = vmatpush1.bf16.msra.mxu0 0
          %4841 = vmatprep.subr.bf16.mxu0 0
          %4842 = vmatpush1.bf16.msra.mxu0 0
          %4843 = vmatprep.subr.bf16.mxu0 0
          %4844 = vmatpush1.bf16.msra.mxu0 0
          %4845 = vmatprep.subr.bf16.mxu0 0
          %4846 = vmatpush1.bf16.msra.mxu0 0
          %4847 = vmatprep.subr.bf16.mxu0 0
          %4848 = vmatpush1.bf16.msra.mxu0 0
          %4849 = vmatprep.subr.bf16.mxu0 0
          %4850 = vmatpush1.bf16.msra.mxu0 0
          %4851 = vmatprep.mubr.bf16.mxu0 0
          %4852 = vmatmul.mubr.bf16.gmra.mrb[0].mxu0 %v4296
          %v4853 = vpop.f32.mrb[0].mxu0
          %v4854 = vadd.f32 %v4814, %v4853
          %v4855 = vpop.f32.mrb[0].mxu0
          %v4856 = vpop.f32.mrb[0].mxu0
          %v4857 = vpop.f32.mrb[0].mxu0
          %4858 = vdwg.mxu0
          %v4859 = vmax.f32 %v4773, 0.0
          %v4860 = vmax.f32 %v4775, 0.0
          %v4861 = vmax.f32 %v4854, 0.0
          %v4862 = vld [vmem:[%s620] sm:$0xf]
          %v4863 = vld [vmem:[%s620 + $0x4] sm:$0xf]
          %v4864 = vld [vmem:[%s620 + $0x8] sm:$0xf]
          %v4865 = vld [vmem:[%s620 + $0xc] sm:$0xf]
          %v4866 = vld [vmem:[%s620 + $0x10] sm:$0xf]
          %v4867 = vld [vmem:[%s620 + $0x14] sm:$0xf]
          %v4868 = vld [vmem:[%s620 + $0x18] sm:$0xf]
          %v4869 = vld [vmem:[%s620 + $0x1c] sm:$0xf]
          %v4870 = vld [vmem:[%s620 + $0x20] sm:$0xf]
          %v4871 = vld [vmem:[%s620 + $0x24] sm:$0xf]
          %v4872 = vld [vmem:[%s620 + $0x28] sm:$0xf]
          %v4873 = vld [vmem:[%s620 + $0x2c] sm:$0xf]
          %v4874 = vld [vmem:[%s620 + $0x30] sm:$0xf]
          %v4875 = vld [vmem:[%s620 + $0x34] sm:$0xf]
          %v4876 = vld [vmem:[%s620 + $0x38] sm:$0xf]
          %v4877 = vld [vmem:[%s620 + $0x3c] sm:$0xf]
          %v4878 = vld [vmem:[%s620 + $0x40] sm:$0xf]
          %v4879 = vld [vmem:[%s620 + $0x44] sm:$0xf]
          %v4880 = vld [vmem:[%s620 + $0x48] sm:$0xf]
          %v4881 = vld [vmem:[%s620 + $0x4c] sm:$0xf]
          %v4882 = vld [vmem:[%s620 + $0x50] sm:$0xf]
          %v4883 = vld [vmem:[%s620 + $0x54] sm:$0xf]
          %v4884 = vld [vmem:[%s620 + $0x58] sm:$0xf]
          %v4885 = vld [vmem:[%s620 + $0x5c] sm:$0xf]
          %v4886 = vld [vmem:[%s620 + $0x60] sm:$0xf]
          %v4887 = vld [vmem:[%s620 + $0x64] sm:$0xf]
          %v4888 = vld [vmem:[%s620 + $0x68] sm:$0xf]
          %v4889 = vld [vmem:[%s620 + $0x6c] sm:$0xf]
          %v4890 = vld [vmem:[%s620 + $0x70] sm:$0xf]
          %v4891 = vld [vmem:[%s620 + $0x74] sm:$0xf]
          %v4892 = vld [vmem:[%s620 + $0x78] sm:$0xf]
          %v4893 = vld [vmem:[%s620 + $0x7c] sm:$0xf]
          %v4894 = vld [vmem:[%s620 + $0x80] sm:$0xf]
          %v4895 = vld [vmem:[%s620 + $0x84] sm:$0xf]
          %v4896 = vld [vmem:[%s620 + $0x88] sm:$0xf]
          %v4897 = vld [vmem:[%s620 + $0x8c] sm:$0xf]
          %v4898 = vld [vmem:[%s620 + $0x90] sm:$0xf]
          %v4899 = vld [vmem:[%s620 + $0x94] sm:$0xf]
          %v4900 = vld [vmem:[%s620 + $0x98] sm:$0xf]
          %v4901 = vld [vmem:[%s620 + $0x9c] sm:$0xf]
          %v4902 = vld [vmem:[%s620 + $0xa0] sm:$0xf]
          %v4903 = vld [vmem:[%s620 + $0xa4] sm:$0xf]
          %v4904 = vld [vmem:[%s620 + $0xa8] sm:$0xf]
          %v4905 = vld [vmem:[%s620 + $0xac] sm:$0xf]
          %v4906 = vld [vmem:[%s620 + $0xb0] sm:$0xf]
          %v4907 = vld [vmem:[%s620 + $0xb4] sm:$0xf]
          %v4908 = vld [vmem:[%s620 + $0xb8] sm:$0xf]
          %v4909 = vld [vmem:[%s620 + $0xbc] sm:$0xf]
          %v4910 = vld [vmem:[%s629 + $0x3] sm:$0x1]
          %v4911 = vpack.c.bf16 %v4859, %v4859
          %v4912 = vpack.c.bf16 %v4860, %v4860
          %v4913 = vpack.c.bf16 %v4861, %v4861
          %v4914 = vlaneseq
          %v4915 = vshrl.u32 %v4914, 7
          %v4916 = vsub.s32 0, %v4915
          %v4917 = vrot.slane %v4910, %v4916
          %v4966 = vunpack.c.l.b16 %v4862
          %v4967 = vunpack.c.l.b16 %v4863
          %v4968 = vunpack.c.l.b16 %v4864
          %v4969 = vunpack.c.l.b16 %v4865
          %v4970 = vunpack.c.l.b16 %v4866
          %v4971 = vunpack.c.l.b16 %v4867
          %v4972 = vunpack.c.l.b16 %v4868
          %v4973 = vunpack.c.l.b16 %v4869
          %v4974 = vunpack.c.l.b16 %v4870
          %v4975 = vunpack.c.l.b16 %v4871
          %v4976 = vunpack.c.l.b16 %v4872
          %v4977 = vunpack.c.l.b16 %v4873
          %v4978 = vunpack.c.l.b16 %v4874
          %v4979 = vunpack.c.l.b16 %v4875
          %v4980 = vunpack.c.l.b16 %v4876
          %v4981 = vunpack.c.l.b16 %v4877
          %v4982 = vunpack.c.l.b16 %v4878
          %v4983 = vunpack.c.l.b16 %v4879
          %v4984 = vunpack.c.l.b16 %v4880
          %v4985 = vunpack.c.l.b16 %v4881
          %v4986 = vunpack.c.l.b16 %v4882
          %v4987 = vunpack.c.l.b16 %v4883
          %v4988 = vunpack.c.l.b16 %v4884
          %v4989 = vunpack.c.l.b16 %v4885
          %v4990 = vunpack.c.l.b16 %v4886
          %v4991 = vunpack.c.l.b16 %v4887
          %v4992 = vunpack.c.l.b16 %v4888
          %v4993 = vunpack.c.l.b16 %v4889
          %v4994 = vunpack.c.l.b16 %v4890
          %v4995 = vunpack.c.l.b16 %v4891
          %v4996 = vunpack.c.l.b16 %v4892
          %v4997 = vunpack.c.l.b16 %v4893
          %v4998 = vunpack.c.l.b16 %v4894
          %v4999 = vunpack.c.l.b16 %v4895
          %v5000 = vunpack.c.l.b16 %v4896
          %v5001 = vunpack.c.l.b16 %v4897
          %v5002 = vunpack.c.l.b16 %v4898
          %v5003 = vunpack.c.l.b16 %v4899
          %v5004 = vunpack.c.l.b16 %v4900
          %v5005 = vunpack.c.l.b16 %v4901
          %v5006 = vunpack.c.l.b16 %v4902
          %v5007 = vunpack.c.l.b16 %v4903
          %v5008 = vunpack.c.l.b16 %v4904
          %v5009 = vunpack.c.l.b16 %v4905
          %v5010 = vunpack.c.l.b16 %v4906
          %v5011 = vunpack.c.l.b16 %v4907
          %v5012 = vunpack.c.l.b16 %v4908
          %v5013 = vunpack.c.l.b16 %v4909
          %v5014 = vpack.c.b16 %v4967, %v4966
          %v5015 = vpack.c.b16 %v4969, %v4968
          %v5016 = vpack.c.b16 %v4971, %v4970
          %v5017 = vpack.c.b16 %v4973, %v4972
          %v5018 = vpack.c.b16 %v4975, %v4974
          %v5019 = vpack.c.b16 %v4977, %v4976
          %v5020 = vpack.c.b16 %v4979, %v4978
          %v5021 = vpack.c.b16 %v4981, %v4980
          %v5022 = vpack.c.b16 %v4983, %v4982
          %v5023 = vpack.c.b16 %v4985, %v4984
          %v5024 = vpack.c.b16 %v4987, %v4986
          %v5025 = vpack.c.b16 %v4989, %v4988
          %v5026 = vpack.c.b16 %v4991, %v4990
          %v5027 = vpack.c.b16 %v4993, %v4992
          %v5028 = vpack.c.b16 %v4995, %v4994
          %v5029 = vpack.c.b16 %v4997, %v4996
          %v5030 = vpack.c.b16 %v4999, %v4998
          %v5031 = vpack.c.b16 %v5001, %v5000
          %v5032 = vpack.c.b16 %v5003, %v5002
          %v5033 = vpack.c.b16 %v5005, %v5004
          %v5034 = vpack.c.b16 %v5007, %v5006
          %v5035 = vpack.c.b16 %v5009, %v5008
          %v5036 = vpack.c.b16 %v5011, %v5010
          %v5037 = vpack.c.b16 %v5013, %v5012
          %5062 = vmatprep.subr.bf16.mxu0 0
          %5063 = vmatpush1.bf16.msra.mxu0 %v5014
          %5064 = vmatprep.subr.bf16.mxu0 0
          %5065 = vmatpush1.bf16.msra.mxu0 %v5015
          %5066 = vmatprep.subr.bf16.mxu0 0
          %5067 = vmatpush1.bf16.msra.mxu0 %v5016
          %5068 = vmatprep.subr.bf16.mxu0 0
          %5069 = vmatpush1.bf16.msra.mxu0 %v5017
          %5070 = vmatprep.subr.bf16.mxu0 0
          %5071 = vmatpush1.bf16.msra.mxu0 %v5018
          %5072 = vmatprep.subr.bf16.mxu0 0
          %5073 = vmatpush1.bf16.msra.mxu0 %v5019
          %5074 = vmatprep.subr.bf16.mxu0 0
          %5075 = vmatpush1.bf16.msra.mxu0 %v5020
          %5076 = vmatprep.subr.bf16.mxu0 0
          %5077 = vmatpush1.bf16.msra.mxu0 %v5021
          %5078 = vmatprep.subr.bf16.mxu0 0
          %5079 = vmatpush1.bf16.msra.mxu0 %v5022
          %5080 = vmatprep.subr.bf16.mxu0 0
          %5081 = vmatpush1.bf16.msra.mxu0 %v5023
          %5082 = vmatprep.subr.bf16.mxu0 0
          %5083 = vmatpush1.bf16.msra.mxu0 %v5024
          %5084 = vmatprep.subr.bf16.mxu0 0
          %5085 = vmatpush1.bf16.msra.mxu0 %v5025
          %5086 = vmatprep.subr.bf16.mxu0 0
          %5087 = vmatpush1.bf16.msra.mxu0 %v5026
          %5088 = vmatprep.subr.bf16.mxu0 0
          %5089 = vmatpush1.bf16.msra.mxu0 %v5027
          %5090 = vmatprep.subr.bf16.mxu0 0
          %5091 = vmatpush1.bf16.msra.mxu0 %v5028
          %5092 = vmatprep.subr.bf16.mxu0 0
          %5093 = vmatpush1.bf16.msra.mxu0 %v5029
          %5094 = vmatprep.mubr.bf16.mxu0 %v4912
          %5095 = vmatmul.mubr.bf16.gmra.mrb[0].mxu0 %v4911
          %v5096 = vpop.f32.mrb[0].mxu0
          %v5097 = vadd.f32 %v4917, %v5096
          %v5098 = vpop.f32.mrb[0].mxu0
          %v5099 = vpop.f32.mrb[0].mxu0
          %v5100 = vpop.f32.mrb[0].mxu0
          %5101 = vdwg.mxu0
          %5102 = vmatprep.subr.bf16.mxu0 0
          %5103 = vmatpush1.bf16.msra.mxu0 %v5030
          %5104 = vmatprep.subr.bf16.mxu0 0
          %5105 = vmatpush1.bf16.msra.mxu0 %v5031
          %5106 = vmatprep.subr.bf16.mxu0 0
          %5107 = vmatpush1.bf16.msra.mxu0 %v5032
          %5108 = vmatprep.subr.bf16.mxu0 0
          %5109 = vmatpush1.bf16.msra.mxu0 %v5033
          %5110 = vmatprep.subr.bf16.mxu0 0
          %5111 = vmatpush1.bf16.msra.mxu0 %v5034
          %5112 = vmatprep.subr.bf16.mxu0 0
          %5113 = vmatpush1.bf16.msra.mxu0 %v5035
          %5114 = vmatprep.subr.bf16.mxu0 0
          %5115 = vmatpush1.bf16.msra.mxu0 %v5036
          %5116 = vmatprep.subr.bf16.mxu0 0
          %5117 = vmatpush1.bf16.msra.mxu0 %v5037
          %5118 = vmatprep.subr.bf16.mxu0 0
          %5119 = vmatpush1.bf16.msra.mxu0 0
          %5120 = vmatprep.subr.bf16.mxu0 0
          %5121 = vmatpush1.bf16.msra.mxu0 0
          %5122 = vmatprep.subr.bf16.mxu0 0
          %5123 = vmatpush1.bf16.msra.mxu0 0
          %5124 = vmatprep.subr.bf16.mxu0 0
          %5125 = vmatpush1.bf16.msra.mxu0 0
          %5126 = vmatprep.subr.bf16.mxu0 0
          %5127 = vmatpush1.bf16.msra.mxu0 0
          %5128 = vmatprep.subr.bf16.mxu0 0
          %5129 = vmatpush1.bf16.msra.mxu0 0
          %5130 = vmatprep.subr.bf16.mxu0 0
          %5131 = vmatpush1.bf16.msra.mxu0 0
          %5132 = vmatprep.subr.bf16.mxu0 0
          %5133 = vmatpush1.bf16.msra.mxu0 0
          %5134 = vmatprep.mubr.bf16.mxu0 0
          %5135 = vmatmul.mubr.bf16.gmra.mrb[0].mxu0 %v4913
          %v5136 = vpop.f32.mrb[0].mxu0
          %v5137 = vadd.f32 %v5097, %v5136
          %v5138 = vpop.f32.mrb[0].mxu0
          %v5139 = vpop.f32.mrb[0].mxu0
          %v5140 = vpop.f32.mrb[0].mxu0
          %5141 = vdwg.mxu0
          %v5142 = vld [vmem:[%s692] sm:$0xff]
          %v5143 = vstv %s2852
          %vm5144 = vcmp.eq.s32.totalorder %v5142, %v5143
          %v5145 = vsel %vm5144, 1, 0
          %v5146 = vcvt.s32.f32 %v5145
          %v5147 = vld [vmem:[%s703] sm:$0xff]
          %5149 = vset.pattern.permute.xlu0 0
          %5150 = vperm.xlu0 %5149, %v5146
          %v5151 = vpop.permute.xlu0 %5150
          %v5153 = vmul.f32 %v5151, %v5137
          %v5154 = vadd.f32 %v5147, %v5153
          %5155 = vst [vmem:[%s703] sm:$0xff] %v5154
        $region124: #{mapping_network_forward.1} parent=71 // pred_fallthru
          _
        %p5156 = scmp.lt.s32.totalorder %s42, 0
        %s5157 = scalar_select %p5156, %s42, 0
        %s5158 = smul.addr %s5157, 8
        %s5159 = scalar_lea.vmem %s15, %s5158
        // Predicated region
        $region125: #{mapping_network_forward.1} parent=71 // pred_check
          %p5160 = pneg %p372
        $region126: #{mapping_network_forward.1} parent=71 // pred_check_branch
          %5162 = sbr.rel (%p5160) target = $region128
        $region127: #{mapping_network_forward.1} parent=71 // pred_region
          _
        $region128: #{mapping_network_forward.1} parent=71 // pred_fallthru
          _
        // Predicated region
        $region129: #{mapping_network_forward.1} parent=71 // pred_check
          %p5163 = pneg %p372
        $region130: #{mapping_network_forward.1} parent=71 // pred_check_branch
          %5165 = sbr.rel (%p5163) target = $region132
        $region131: #{mapping_network_forward.1} parent=71 // pred_region
          %p5166 = scmp.lt.s32.totalorder %s42, 0
          %s5167 = scalar_select %p5166, %s42, 0
          %s5168 = smul.addr %s5167, 8
          %s5169 = scalar_lea.vmem %s15, %s5168
        $region132: #{mapping_network_forward.1} parent=71 // pred_fallthru
          _
      $region72: #{mapping_network_forward.1} parent=5 // pred_fallthru
        _
      %p5170 = scmp.le.s32.totalorder 2, %s33
      // Predicated region
      $region133: #{mapping_network_forward.1} parent=5 // pred_check
        %p5171 = pneg %p5170
      $region134: #{mapping_network_forward.1} parent=5 // pred_check_branch
        %5173 = sbr.rel (%p5171) target = $region136
      $region135: #{mapping_network_forward.1} parent=5 // pred_region
        %s5174 = ssub.s32 %s33, 2
      $region136: #{mapping_network_forward.1} parent=5 // pred_fallthru
        _
    $region6: #{mapping_network_forward.1} parent=1 // loop_footer
      %s37 = sadd.s32 1, %s33
    $region7: #{mapping_network_forward.1} parent=1 // loop_footer_branch
      %32 = sbr.rel target = $region3
    $region8: #{mapping_network_forward.1} parent=1 // loop_exit
      _
    %5175 = vsyncpa [#allocation7], 1
    %s5176 = scalar_lea.sflag [#allocation7], 1
    %5177 = vsyncpa %s5176, 1
    %5178 = vsyncpa [#allocation9], 1
    %5179 = vsyncpa [#allocation12], 1
    %5180 = vsyncpa [#allocation15], 1
    %5181 = vsyncpa [#allocation18], 1

</llo_original>
